<compile_context>
chip_gen: v7x
topology: tpu7x:2x2x1
jax: 0.10.0
libtpu: 0.0.40
codegen_flags: <defaults>
</compile_context>

<pallas_src>
import math

import jax
import jax.numpy as jnp
from jax.experimental import pallas as pl
from jax.experimental.pallas import tpu as pltpu

# ----------------------------- model hyper-params (small, synthetic) -----------------------------
B = 2            # batch
F_DIM = 32       # spectrogram frequency bins   (module uses 128; small for the demo)
T_DIM = 32       # spectrogram time frames      (module uses ~2757; small for the demo)
PATCH = 8        # patch_size                   (module uses 16)
STRIDE = 6       # patch_stride                 (module uses 10)
EMB = 32         # vit.embed_dim                (module uses 768 for deit_base)
NUM_HEADS = 4
HEAD_DIM = EMB // NUM_HEADS
MLP_DIM = 4 * EMB
DEPTH = 2        # number of transformer blocks (deit_base has 12)
NUM_CLASSES = 10 # module default is 50
LN_EPS = 1e-6    # timm ViT LayerNorm eps

N_H = (F_DIM - PATCH) // STRIDE + 1
N_W = (T_DIM - PATCH) // STRIDE + 1
N_PATCH = N_H * N_W
SEQ = N_PATCH + 1
S_PAD = ((SEQ + 7) // 8) * 8      # pad sequence to a sublane multiple (26 -> 32); pad keys masked
PP = PATCH * PATCH
C_PAD = 128                        # pad classifier width to one full lane tile (unmasked stores)

# -------- packed per-block small-parameter slab layout (one streamed DMA per depth step) --------
SLAB_W = 128
ROW_LN1_G = 0
ROW_LN1_B = 1
ROW_BQ = 2                         # + head index
ROW_BK = ROW_BQ + NUM_HEADS
ROW_BV = ROW_BK + NUM_HEADS
ROW_BPROJ = ROW_BV + NUM_HEADS
ROW_LN2_G = ROW_BPROJ + 1
ROW_LN2_B = ROW_LN2_G + 1
ROW_B1 = ROW_LN2_B + 1
ROW_B2 = ROW_B1 + 1
N_SLAB_ROWS = ROW_B2 + 1
assert MLP_DIM <= SLAB_W


# ------------------------------------------ Pallas kernel ----------------------------------------
def _layernorm(x, gamma, beta):
    mu = jnp.mean(x, axis=-1, keepdims=True)
    var = jnp.mean((x - mu) * (x - mu), axis=-1, keepdims=True)
    return (x - mu) * jax.lax.rsqrt(var + LN_EPS) * gamma + beta


def ast_fused_kernel(patches_ref, base_ref, pe_w_ref,
                     slab_ref, wqkv_ref, wproj_ref, w1_ref, w2_ref,
                     norm_ref, head_w_ref,
                     o_ref, tok_ref):
    # grid axis = transformer depth ("arbitrary"); tok_ref (B*S_PAD, EMB) scratch is resident
    # across the whole stack.  Per-block weight refs carry block d's weights (BlockSpec streamed).
    d = pl.program_id(0)

    # ---- d==0 prologue: patch-embed matmul; CLS token / pos-embed / conv bias folded in `base`.
    #      CLS and padded rows of `patches` are zero, so emb contributes nothing there. ----
    @pl.when(d == 0)
    def _():
        emb = jnp.dot(patches_ref[...], pe_w_ref[...], preferred_element_type=jnp.float32)
        tok_ref[...] = emb + base_ref[...]

    x = tok_ref[...]                                              # (B*S_PAD, D), f32
    slab = slab_ref[0]                                            # (N_SLAB_ROWS, 128)

    # ---------------------------------- attention sub-block -------------------------------------
    xh = _layernorm(x, slab[ROW_LN1_G, :EMB], slab[ROW_LN1_B, :EMB])
    key_id = jax.lax.broadcasted_iota(jnp.int32, (1, 1, S_PAD), 2)
    key_ok = key_id < SEQ                                         # mask padded key positions
    scale = 1.0 / math.sqrt(HEAD_DIM)

    attn = None
    for h_i in range(NUM_HEADS):                                  # Python-unrolled; no concats,
        wq = wqkv_ref[0, 0 * NUM_HEADS + h_i]                     # (D, hd) per-head, pre-split
        wk = wqkv_ref[0, 1 * NUM_HEADS + h_i]
        wv = wqkv_ref[0, 2 * NUM_HEADS + h_i]
        q = jnp.dot(xh, wq, preferred_element_type=jnp.float32) + slab[ROW_BQ + h_i, :HEAD_DIM]
        k = jnp.dot(xh, wk, preferred_element_type=jnp.float32) + slab[ROW_BK + h_i, :HEAD_DIM]
        v = jnp.dot(xh, wv, preferred_element_type=jnp.float32) + slab[ROW_BV + h_i, :HEAD_DIM]
        q3 = q.reshape(B, S_PAD, HEAD_DIM)
        k3 = k.reshape(B, S_PAD, HEAD_DIM)
        v3 = v.reshape(B, S_PAD, HEAD_DIM)

        s = jnp.einsum("bqd,bkd->bqk", q3, k3, preferred_element_type=jnp.float32) * scale
        s = jnp.where(key_ok, s, -1e30)
        s = s - jnp.max(s, axis=-1, keepdims=True)
        p = jnp.exp(s)
        p = p / jnp.sum(p, axis=-1, keepdims=True)                # exact reciprocal (review note)
        ctx = jnp.einsum("bqk,bkd->bqd", p, v3, preferred_element_type=jnp.float32)
        ctx2 = ctx.reshape(B * S_PAD, HEAD_DIM)

        wo = wproj_ref[0, h_i * HEAD_DIM:(h_i + 1) * HEAD_DIM, :]  # (hd, D) sublane-aligned slice
        part = jnp.dot(ctx2, wo, preferred_element_type=jnp.float32)
        attn = part if attn is None else attn + part              # == concat(heads) @ Wproj

    x = x + attn + slab[ROW_BPROJ, :EMB]

    # ------------------------------------- MLP sub-block ----------------------------------------
    xm = _layernorm(x, slab[ROW_LN2_G, :EMB], slab[ROW_LN2_B, :EMB])
    h1 = jnp.dot(xm, w1_ref[0], preferred_element_type=jnp.float32) + slab[ROW_B1, :MLP_DIM]
    h1 = 0.5 * h1 * (1.0 + jax.lax.erf(h1 * (1.0 / math.sqrt(2.0))))   # exact GELU
    x = x + jnp.dot(h1, w2_ref[0], preferred_element_type=jnp.float32) + slab[ROW_B2, :EMB]

    # keep padded sequence rows at exactly zero across the residual stream
    row_id = jax.lax.broadcasted_iota(jnp.int32, (B * S_PAD, 1), 0)
    x = jnp.where((row_id % S_PAD) < SEQ, x, 0.0)
    tok_ref[...] = x

    # ---- fused epilogue: final LayerNorm + classifier + sigmoid on the CLS token --------------
    @pl.when(d == DEPTH - 1)
    def _():
        cls = tok_ref[pl.ds(0, B, stride=S_PAD), :]               # CLS rows b*S_PAD, strided load
        hc = _layernorm(cls, norm_ref[0, :EMB], norm_ref[1, :EMB])
        logits = jnp.dot(hc, head_w_ref[...], preferred_element_type=jnp.float32) + norm_ref[2]
        o_ref[...] = 1.0 / (1.0 + jnp.exp(-logits))


# -------------------------------------- pallas_call wrapper --------------------------------------
def _const_spec(shape):
    nd = len(shape)
    return pl.BlockSpec(tuple(shape), lambda d, _nd=nd: (0,) * _nd)


def _stream_spec(tail_shape):
    nz = len(tail_shape)
    return pl.BlockSpec((1,) + tuple(tail_shape), lambda d, _nz=nz: (d,) + (0,) * _nz)


def fused_ast_call(patches, base, pe_w, slab, wqkv, wproj, w1, w2, norm_slab, head_w):
    in_specs = [
        _const_spec(patches.shape),            # DMA'd once (constant block index)
        _const_spec(base.shape),
        _const_spec(pe_w.shape),
        _stream_spec(slab.shape[1:]),          # streamed per depth step
        _stream_spec(wqkv.shape[1:]),
        _stream_spec(wproj.shape[1:]),
        _stream_spec(w1.shape[1:]),
        _stream_spec(w2.shape[1:]),
        _const_spec(norm_slab.shape),
        _const_spec(head_w.shape),
    ]
    return pl.pallas_call(
        ast_fused_kernel,
        out_shape=jax.ShapeDtypeStruct((B, C_PAD), jnp.float32),
        grid=(DEPTH,),
        in_specs=in_specs,
        out_specs=pl.BlockSpec((B, C_PAD), lambda d: (0, 0)),
        scratch_shapes=[pltpu.VMEM((B * S_PAD, EMB), jnp.float32)],   # tokens live here
        compiler_params=pltpu.CompilerParams(dimension_semantics=("arbitrary",)),
    )(patches, base, pe_w, slab, wqkv, wproj, w1, w2, norm_slab, head_w)


# ---------------------------------------- host-side packing --------------------------------------
def im2col(x):
    # x: (B, 1, F, T) -> patches (B, N_PATCH, PP); gather kept as plain-JAX glue (indexing only).
    xi = x[:, 0]
    rows = (jnp.arange(N_H) * STRIDE)[:, None] + jnp.arange(PATCH)[None, :]
    cols = (jnp.arange(N_W) * STRIDE)[:, None] + jnp.arange(PATCH)[None, :]
    patches = xi[:, rows[:, None, :, None], cols[None, :, None, :]]           # (B, N_H, N_W, P, P)
    return patches.reshape(x.shape[0], N_PATCH, PP)


def pack_block_params(blocks):
    slabs, wqkvs, wprojs, w1s, w2s = [], [], [], [], []
    for p in blocks:
        slab = jnp.zeros((N_SLAB_ROWS, SLAB_W), jnp.float32)
        slab = slab.at[ROW_LN1_G, :EMB].set(p["ln1_g"])
        slab = slab.at[ROW_LN1_B, :EMB].set(p["ln1_b"])
        bqkv = p["bqkv"].reshape(3, NUM_HEADS, HEAD_DIM)
        for h in range(NUM_HEADS):
            slab = slab.at[ROW_BQ + h, :HEAD_DIM].set(bqkv[0, h])
            slab = slab.at[ROW_BK + h, :HEAD_DIM].set(bqkv[1, h])
            slab = slab.at[ROW_BV + h, :HEAD_DIM].set(bqkv[2, h])
        slab = slab.at[ROW_BPROJ, :EMB].set(p["bproj"])
        slab = slab.at[ROW_LN2_G, :EMB].set(p["ln2_g"])
        slab = slab.at[ROW_LN2_B, :EMB].set(p["ln2_b"])
        slab = slab.at[ROW_B1, :MLP_DIM].set(p["b1"])
        slab = slab.at[ROW_B2, :EMB].set(p["b2"])
        slabs.append(slab)

        w = p["wqkv"].reshape(EMB, 3, NUM_HEADS, HEAD_DIM)        # pre-split QKV per head
        w = jnp.transpose(w, (1, 2, 0, 3)).reshape(3 * NUM_HEADS, EMB, HEAD_DIM)
        wqkvs.append(w)
        wprojs.append(p["wproj"])
        w1s.append(p["w1"])
        w2s.append(p["w2"])
    return (jnp.stack(slabs), jnp.stack(wqkvs), jnp.stack(wprojs),
            jnp.stack(w1s), jnp.stack(w2s))


# ------------------------------------------ full forward -----------------------------------------
@jax.jit
def ast_forward(x, params):
    if x.ndim == 3:
        x = x[:, None]                                   # unsqueeze channel, as in the module
    assert x.shape[0] == B

    # im2col gather (glue); row layout already matches the token layout: row b*S_PAD is the CLS
    # slot (zeros), rows +1..+N_PATCH are the patches, the remainder are zero pad rows.
    pat = im2col(x)                                                          # (B, NP, PP)
    pat = jnp.pad(pat, ((0, 0), (1, S_PAD - SEQ), (0, 0)))                   # (B, S_PAD, PP)
    patches = pat.reshape(B * S_PAD, PP)

    # parameter-only fold: base row b*S_PAD   = cls_token + pos[0]
    #                      base patch rows    = pos[1:]   + conv bias
    #                      base pad rows      = 0
    pos = params["pos_embed"][0]                                             # (SEQ, EMB)
    base = jnp.concatenate([params["cls_token"][None, :] + pos[:1],
                            pos[1:] + params["pe_b"][None, :]], axis=0)      # (SEQ, EMB)
    base = jnp.pad(base, ((0, S_PAD - SEQ), (0, 0)))
    base = jnp.broadcast_to(base[None], (B, S_PAD, EMB)).reshape(B * S_PAD, EMB)

    slab, wqkv, wproj, w1, w2 = pack_block_params(params["blocks"])
    norm_slab = jnp.zeros((3, SLAB_W), jnp.float32)
    norm_slab = norm_slab.at[0, :EMB].set(params["norm_g"])
    norm_slab = norm_slab.at[1, :EMB].set(params["norm_b"])
    norm_slab = norm_slab.at[2, :NUM_CLASSES].set(params["head_b"])
    head_w = jnp.pad(params["head_w"], ((0, 0), (0, C_PAD - NUM_CLASSES)))   # lane-dense output

    probs = fused_ast_call(patches, base, params["pe_w"], slab, wqkv, wproj, w1, w2,
                           norm_slab, head_w)
    return probs[:, :NUM_CLASSES]


# -------------------------------------- pure-JAX reference ---------------------------------------
def reference_forward(x, params):
    if x.ndim == 3:
        x = x[:, None]
    patches = im2col(x)
    tok = patches @ params["pe_w"] + params["pe_b"]
    cls = jnp.broadcast_to(params["cls_token"][None, None, :], (x.shape[0], 1, EMB))
    tok = jnp.concatenate([cls, tok], axis=1) + params["pos_embed"][:, :SEQ]

    def ln(v, g, b):
        mu = jnp.mean(v, axis=-1, keepdims=True)
        var = jnp.mean((v - mu) ** 2, axis=-1, keepdims=True)
        return (v - mu) / jnp.sqrt(var + LN_EPS) * g + b

    for p in params["blocks"]:
        h = ln(tok, p["ln1_g"], p["ln1_b"])
        qkv = h @ p["wqkv"] + p["bqkv"]
        q, k, v = jnp.split(qkv, 3, axis=-1)

        def heads(a):
            return a.reshape(a.shape[0], a.shape[1], NUM_HEADS, HEAD_DIM).transpose(0, 2, 1, 3)

        q, k, v = heads(q), heads(k), heads(v)
        s = jnp.einsum("bhqd,bhkd->bhqk", q, k) / math.sqrt(HEAD_DIM)
        a = jax.nn.softmax(s, axis=-1)
        o = jnp.einsum("bhqk,bhkd->bhqd", a, v).transpose(0, 2, 1, 3).reshape(tok.shape)
        tok = tok + o @ p["wproj"] + p["bproj"]
        h = ln(tok, p["ln2_g"], p["ln2_b"])
        h1 = h @ p["w1"] + p["b1"]
        h1 = 0.5 * h1 * (1.0 + jax.lax.erf(h1 / math.sqrt(2.0)))
        tok = tok + h1 @ p["w2"] + p["b2"]

    cls_tok = ln(tok, params["norm_g"], params["norm_b"])[:, 0]
    return jax.nn.sigmoid(cls_tok @ params["head_w"] + params["head_b"])


# -------------------------------------- deterministic init ---------------------------------------
def init_params(key):
    def nrm(k, shape, scale=0.02):
        return (scale * jax.random.normal(k, shape)).astype(jnp.float32)

    keys = iter(jax.random.split(key, 128))
    params = {
        "pe_w": nrm(next(keys), (PP, EMB)),                      # Conv2d weight, flattened
        "pe_b": nrm(next(keys), (EMB,)),
        "cls_token": nrm(next(keys), (EMB,)),
        "pos_embed": nrm(next(keys), (1, SEQ, EMB)),             # already at the interpolated size
        "norm_g": jnp.ones((EMB,), jnp.float32),
        "norm_b": jnp.zeros((EMB,), jnp.float32),
        "head_w": nrm(next(keys), (EMB, NUM_CLASSES)),
        "head_b": nrm(next(keys), (NUM_CLASSES,)),
        "blocks": [],
    }
    for _ in range(DEPTH):
        params["blocks"].append({
            "ln1_g": jnp.ones((EMB,), jnp.float32),
            "ln1_b": jnp.zeros((EMB,), jnp.float32),
            "wqkv": nrm(next(keys), (EMB, 3 * EMB)),
            "bqkv": nrm(next(keys), (3 * EMB,)),
            "wproj": nrm(next(keys), (EMB, EMB)),
            "bproj": nrm(next(keys), (EMB,)),
            "ln2_g": jnp.ones((EMB,), jnp.float32),
            "ln2_b": jnp.zeros((EMB,), jnp.float32),
            "w1": nrm(next(keys), (EMB, MLP_DIM)),
            "b1": nrm(next(keys), (MLP_DIM,)),
            "w2": nrm(next(keys), (MLP_DIM, EMB)),
            "b2": nrm(next(keys), (EMB,)),
        })
    return params


# ------------------------------------------------ main -------------------------------------------
if __name__ == "__main__":
    key = jax.random.PRNGKey(0)
    k_params, k_x = jax.random.split(key)
    params = init_params(k_params)

    # input spectrogram: (B, F, T) — forward unsqueezes the channel dim, as in the PyTorch module
    x = jax.random.normal(k_x, (B, F_DIM, T_DIM), dtype=jnp.float32)

    out = jax.block_until_ready(ast_forward(x, params))
    ref = jax.block_until_ready(reference_forward(x, params))

    assert out.shape == (B, NUM_CLASSES), out.shape
    max_err = float(jnp.max(jnp.abs(out - ref)))
    assert max_err < 1e-3, f"mismatch vs reference: {max_err}"

    print("KERNEL_OK")
</pallas_src>

<mosaic_0001>
module attributes {stable_mosaic.version = 11 : i64} {
  func.func private @main(%arg0: i32) attributes {dimension_semantics = [#tpu.dimension_semantics<core_parallel>], iteration_bounds = array<i64: 2>, tpu.core_type = #tpu.core_type<sc_scalar_subcore>, window_params = []} {
    return
  }
}

module attributes {stable_mosaic.version = 11 : i64} {
  func.func private @main(%arg0: i32) attributes {dimension_semantics = [#tpu.dimension_semantics<core_parallel>], iteration_bounds = array<i64: 2>, tpu.core_type = #tpu.core_type<sc_scalar_subcore>, window_params = []} {
    return
  }
}

module attributes {stable_mosaic.version = 11 : i64} {
  func.func @ast_fused_kernel(%arg0: i32, %arg1: memref<64x64xf32, #tpu.memory_space<vmem>>, %arg2: memref<64x32xf32, #tpu.memory_space<vmem>>, %arg3: memref<64x32xf32, #tpu.memory_space<vmem>>, %arg4: memref<1x19x128xf32, #tpu.memory_space<vmem>>, %arg5: memref<1x12x32x8xf32, #tpu.memory_space<vmem>>, %arg6: memref<1x32x32xf32, #tpu.memory_space<vmem>>, %arg7: memref<1x32x128xf32, #tpu.memory_space<vmem>>, %arg8: memref<1x128x32xf32, #tpu.memory_space<vmem>>, %arg9: memref<3x128xf32, #tpu.memory_space<vmem>>, %arg10: memref<32x128xf32, #tpu.memory_space<vmem>>, %arg11: memref<2x128xf32, #tpu.memory_space<vmem>>, %arg12: memref<64x32xf32, #tpu.memory_space<vmem>>) attributes {dimension_semantics = [#tpu.dimension_semantics<arbitrary>], iteration_bounds = array<i64: 2>, scalar_prefetch = 0 : i64, scratch_operands = 1 : i64, tpu.core_type = #tpu.core_type<tc>, window_params = [{pipeline_mode = #tpu.pipeline_mode<synchronous>, transform_indices = @transform_0, window_bounds = array<i64: 64, 64>}, {pipeline_mode = #tpu.pipeline_mode<synchronous>, transform_indices = @transform_1, window_bounds = array<i64: 64, 32>}, {pipeline_mode = #tpu.pipeline_mode<synchronous>, transform_indices = @transform_2, window_bounds = array<i64: 64, 32>}, {transform_indices = @transform_3, window_bounds = array<i64: 1, 19, 128>}, {transform_indices = @transform_4, window_bounds = array<i64: 1, 12, 32, 8>}, {transform_indices = @transform_5, window_bounds = array<i64: 1, 32, 32>}, {transform_indices = @transform_6, window_bounds = array<i64: 1, 32, 128>}, {transform_indices = @transform_7, window_bounds = array<i64: 1, 128, 32>}, {pipeline_mode = #tpu.pipeline_mode<synchronous>, transform_indices = @transform_8, window_bounds = array<i64: 3, 128>}, {pipeline_mode = #tpu.pipeline_mode<synchronous>, transform_indices = @transform_9, window_bounds = array<i64: 32, 128>}, {pipeline_mode = #tpu.pipeline_mode<synchronous>, transform_indices = @transform_10, window_bounds = array<i64: 2, 128>}]} {
    %c0_i32 = arith.constant 0 : i32
    %0 = arith.cmpi eq, %arg0, %c0_i32 : i32
    %1 = arith.extui %0 : i1 to i32
    %c0_i32_0 = arith.constant 0 : i32
    %2 = arith.cmpi ne, %1, %c0_i32_0 : i32
    scf.if %2 {
      %c0_122 = arith.constant 0 : index
      %c0_123 = arith.constant 0 : index
      %322 = vector.load %arg1[%c0_122, %c0_123] : memref<64x64xf32, #tpu.memory_space<vmem>>, vector<64x64xf32>
      %c0_124 = arith.constant 0 : index
      %c0_125 = arith.constant 0 : index
      %323 = vector.load %arg3[%c0_124, %c0_125] : memref<64x32xf32, #tpu.memory_space<vmem>>, vector<64x32xf32>
      %cst_126 = arith.constant dense<0.000000e+00> : vector<64x32xf32>
      %324 = tpu.matmul %322, %323, %cst_126 {dimension_numbers = #tpu.dot_dimension_numbers<[1], [0], [0], [1], [0, 0, 1, 1], [], []>} : vector<64x64xf32>, vector<64x32xf32>, vector<64x32xf32> -> vector<64x32xf32>
      %c0_127 = arith.constant 0 : index
      %c0_128 = arith.constant 0 : index
      %325 = vector.load %arg2[%c0_127, %c0_128] : memref<64x32xf32, #tpu.memory_space<vmem>>, vector<64x32xf32>
      %326 = arith.addf %324, %325 : vector<64x32xf32>
      %c0_129 = arith.constant 0 : index
      %c0_130 = arith.constant 0 : index
      %327 = vector.load %arg12[%c0_129, %c0_130] : memref<64x32xf32, #tpu.memory_space<vmem>>, vector<64x32xf32>
      tpu.vector_store %arg12[%c0_129, %c0_130], %326 {strides = array<i32>} : memref<64x32xf32, #tpu.memory_space<vmem>>, vector<64x32xf32>,
    } else {
    }
    %c0 = arith.constant 0 : index
    %c0_1 = arith.constant 0 : index
    %3 = vector.load %arg12[%c0, %c0_1] : memref<64x32xf32, #tpu.memory_space<vmem>>, vector<64x32xf32>
    %c0_2 = arith.constant 0 : index
    %c0_3 = arith.constant 0 : index
    %c0_4 = arith.constant 0 : index
    %4 = vector.load %arg4[%c0_2, %c0_3, %c0_4] : memref<1x19x128xf32, #tpu.memory_space<vmem>>, vector<1x19x128xf32>
    %5 = vector.shape_cast %4 : vector<1x19x128xf32> to vector<19x128xf32>
    %6 = vector.extract_strided_slice %5 {offsets = [0, 0], sizes = [1, 32], strides = [1, 1]} : vector<19x128xf32> to vector<1x32xf32>
    %7 = vector.shape_cast %6 : vector<1x32xf32> to vector<32xf32>
    %8 = vector.extract_strided_slice %5 {offsets = [1, 0], sizes = [1, 32], strides = [1, 1]} : vector<19x128xf32> to vector<1x32xf32>
    %9 = vector.shape_cast %8 : vector<1x32xf32> to vector<32xf32>
    %cst = arith.constant dense<0.000000e+00> : vector<64xf32>
    %10 = vector.multi_reduction <add>, %3, %cst [1] : vector<64x32xf32> to vector<64xf32>
    %11 = vector.shape_cast %10 : vector<64xf32> to vector<64x1xf32>
    %cst_5 = arith.constant 3.200000e+01 : f32
    %12 = vector.broadcast %cst_5 : f32 to vector<64x1xf32>
    %13 = arith.divf %11, %12 : vector<64x1xf32>
    %14 = vector.broadcast %13 : vector<64x1xf32> to vector<64x32xf32>
    %15 = arith.subf %3, %14 : vector<64x32xf32>
    %16 = vector.broadcast %13 : vector<64x1xf32> to vector<64x32xf32>
    %17 = arith.subf %3, %16 : vector<64x32xf32>
    %18 = arith.mulf %15, %17 : vector<64x32xf32>
    %cst_6 = arith.constant dense<0.000000e+00> : vector<64xf32>
    %19 = vector.multi_reduction <add>, %18, %cst_6 [1] : vector<64x32xf32> to vector<64xf32>
    %20 = vector.shape_cast %19 : vector<64xf32> to vector<64x1xf32>
    %cst_7 = arith.constant 3.200000e+01 : f32
    %21 = vector.broadcast %cst_7 : f32 to vector<64x1xf32>
    %22 = arith.divf %20, %21 : vector<64x1xf32>
    %23 = vector.broadcast %13 : vector<64x1xf32> to vector<64x32xf32>
    %24 = arith.subf %3, %23 : vector<64x32xf32>
    %cst_8 = arith.constant 9.99999997E-7 : f32
    %25 = vector.broadcast %cst_8 : f32 to vector<64x1xf32>
    %26 = arith.addf %22, %25 : vector<64x1xf32>
    %27 = math.rsqrt %26 : vector<64x1xf32>
    %28 = vector.broadcast %27 : vector<64x1xf32> to vector<64x32xf32>
    %29 = arith.mulf %24, %28 : vector<64x32xf32>
    %30 = vector.shape_cast %7 : vector<32xf32> to vector<1x32xf32>
    %31 = vector.broadcast %30 : vector<1x32xf32> to vector<64x32xf32>
    %32 = arith.mulf %29, %31 : vector<64x32xf32>
    %33 = vector.shape_cast %9 : vector<32xf32> to vector<1x32xf32>
    %34 = vector.broadcast %33 : vector<1x32xf32> to vector<64x32xf32>
    %35 = arith.addf %32, %34 : vector<64x32xf32>
    %36 = tpu.iota {dimensions = array<i32: 2>} : vector<1x1x32xi32>
    %c26_i32 = arith.constant 26 : i32
    %37 = vector.broadcast %c26_i32 : i32 to vector<1x1x32xi32>
    %38 = arith.cmpi slt, %36, %37 : vector<1x1x32xi32>
    %c0_9 = arith.constant 0 : index
    %c0_10 = arith.constant 0 : index
    %c0_11 = arith.constant 0 : index
    %c0_12 = arith.constant 0 : index
    %39 = vector.load %arg5[%c0_9, %c0_10, %c0_11, %c0_12] : memref<1x12x32x8xf32, #tpu.memory_space<vmem>>, vector<1x1x32x8xf32>
    %40 = vector.shape_cast %39 : vector<1x1x32x8xf32> to vector<32x8xf32>
    %c0_13 = arith.constant 0 : index
    %c4 = arith.constant 4 : index
    %c0_14 = arith.constant 0 : index
    %c0_15 = arith.constant 0 : index
    %41 = vector.load %arg5[%c0_13, %c4, %c0_14, %c0_15] : memref<1x12x32x8xf32, #tpu.memory_space<vmem>>, vector<1x1x32x8xf32>
    %42 = vector.shape_cast %41 : vector<1x1x32x8xf32> to vector<32x8xf32>
    %c0_16 = arith.constant 0 : index
    %c8 = arith.constant 8 : index
    %c0_17 = arith.constant 0 : index
    %c0_18 = arith.constant 0 : index
    %43 = vector.load %arg5[%c0_16, %c8, %c0_17, %c0_18] : memref<1x12x32x8xf32, #tpu.memory_space<vmem>>, vector<1x1x32x8xf32>
    %44 = vector.shape_cast %43 : vector<1x1x32x8xf32> to vector<32x8xf32>
    %cst_19 = arith.constant dense<0.000000e+00> : vector<64x8xf32>
    %45 = tpu.matmul %35, %40, %cst_19 {dimension_numbers = #tpu.dot_dimension_numbers<[1], [0], [0], [1], [0, 0, 1, 1], [], []>} : vector<64x32xf32>, vector<32x8xf32>, vector<64x8xf32> -> vector<64x8xf32>
    %46 = vector.extract_strided_slice %5 {offsets = [2, 0], sizes = [1, 8], strides = [1, 1]} : vector<19x128xf32> to vector<1x8xf32>
    %47 = vector.shape_cast %46 : vector<1x8xf32> to vector<8xf32>
    %48 = vector.shape_cast %47 : vector<8xf32> to vector<1x8xf32>
    %49 = vector.broadcast %48 : vector<1x8xf32> to vector<64x8xf32>
    %50 = arith.addf %45, %49 : vector<64x8xf32>
    %cst_20 = arith.constant dense<0.000000e+00> : vector<64x8xf32>
    %51 = tpu.matmul %35, %42, %cst_20 {dimension_numbers = #tpu.dot_dimension_numbers<[1], [0], [0], [1], [0, 0, 1, 1], [], []>} : vector<64x32xf32>, vector<32x8xf32>, vector<64x8xf32> -> vector<64x8xf32>
    %52 = vector.extract_strided_slice %5 {offsets = [6, 0], sizes = [1, 8], strides = [1, 1]} : vector<19x128xf32> to vector<1x8xf32>
    %53 = vector.shape_cast %52 : vector<1x8xf32> to vector<8xf32>
    %54 = vector.shape_cast %53 : vector<8xf32> to vector<1x8xf32>
    %55 = vector.broadcast %54 : vector<1x8xf32> to vector<64x8xf32>
    %56 = arith.addf %51, %55 : vector<64x8xf32>
    %cst_21 = arith.constant dense<0.000000e+00> : vector<64x8xf32>
    %57 = tpu.matmul %35, %44, %cst_21 {dimension_numbers = #tpu.dot_dimension_numbers<[1], [0], [0], [1], [0, 0, 1, 1], [], []>} : vector<64x32xf32>, vector<32x8xf32>, vector<64x8xf32> -> vector<64x8xf32>
    %58 = vector.extract_strided_slice %5 {offsets = [10, 0], sizes = [1, 8], strides = [1, 1]} : vector<19x128xf32> to vector<1x8xf32>
    %59 = vector.shape_cast %58 : vector<1x8xf32> to vector<8xf32>
    %60 = vector.shape_cast %59 : vector<8xf32> to vector<1x8xf32>
    %61 = vector.broadcast %60 : vector<1x8xf32> to vector<64x8xf32>
    %62 = arith.addf %57, %61 : vector<64x8xf32>
    %63 = vector.shape_cast %50 : vector<64x8xf32> to vector<2x32x8xf32>
    %64 = vector.shape_cast %56 : vector<64x8xf32> to vector<2x32x8xf32>
    %65 = vector.shape_cast %62 : vector<64x8xf32> to vector<2x32x8xf32>
    "tpu.trace_start"() <{level = 10 : i32, message = "bqd,bkd->bqk"}> : () -> ()
    %cst_22 = arith.constant dense<0.000000e+00> : vector<2x32x32xf32>
    %66 = tpu.matmul %63, %64, %cst_22 {dimension_numbers = #tpu.dot_dimension_numbers<[2], [2], [1], [1], [0, 0, 0, 1, 1, 1], [0], [0]>} : vector<2x32x8xf32>, vector<2x32x8xf32>, vector<2x32x32xf32> -> vector<2x32x32xf32>
    "tpu.trace_stop"() : () -> ()
    %cst_23 = arith.constant 0.353553385 : f32
    %67 = vector.broadcast %cst_23 : f32 to vector<2x32x32xf32>
    %68 = arith.mulf %66, %67 : vector<2x32x32xf32>
    %cst_24 = arith.constant -1.000000e+30 : f32
    %69 = vector.shape_cast %38 : vector<1x1x32xi1> to vector<1x1x32xi1>
    %70 = vector.broadcast %69 : vector<1x1x32xi1> to vector<2x32x32xi1>
    %71 = vector.broadcast %cst_24 : f32 to vector<2x32x32xf32>
    %72 = arith.select %70, %68, %71 : vector<2x32x32xi1>, vector<2x32x32xf32>
    %cst_25 = arith.constant dense<0xFF800000> : vector<2x32xf32>
    %73 = vector.multi_reduction <maximumf>, %72, %cst_25 [2] : vector<2x32x32xf32> to vector<2x32xf32>
    %74 = vector.shape_cast %73 : vector<2x32xf32> to vector<2x32x1xf32>
    %75 = vector.broadcast %74 : vector<2x32x1xf32> to vector<2x32x32xf32>
    %76 = arith.subf %72, %75 : vector<2x32x32xf32>
    %77 = math.exp %76 : vector<2x32x32xf32>
    %cst_26 = arith.constant dense<0.000000e+00> : vector<2x32xf32>
    %78 = vector.multi_reduction <add>, %77, %cst_26 [2] : vector<2x32x32xf32> to vector<2x32xf32>
    %79 = vector.shape_cast %78 : vector<2x32xf32> to vector<2x32x1xf32>
    %80 = vector.broadcast %79 : vector<2x32x1xf32> to vector<2x32x32xf32>
    %81 = arith.divf %77, %80 : vector<2x32x32xf32>
    "tpu.trace_start"() <{level = 10 : i32, message = "bqk,bkd->bqd"}> : () -> ()
    %cst_27 = arith.constant dense<0.000000e+00> : vector<2x32x8xf32>
    %82 = tpu.matmul %81, %65, %cst_27 {dimension_numbers = #tpu.dot_dimension_numbers<[2], [1], [1], [2], [0, 0, 0, 1, 1, 2], [0], [0]>} : vector<2x32x32xf32>, vector<2x32x8xf32>, vector<2x32x8xf32> -> vector<2x32x8xf32>
    "tpu.trace_stop"() : () -> ()
    %83 = vector.shape_cast %82 : vector<2x32x8xf32> to vector<64x8xf32>
    %c0_28 = arith.constant 0 : index
    %c0_29 = arith.constant 0 : index
    %c0_30 = arith.constant 0 : index
    %84 = vector.load %arg6[%c0_28, %c0_29, %c0_30] : memref<1x32x32xf32, #tpu.memory_space<vmem>>, vector<1x8x32xf32>
    %85 = vector.shape_cast %84 : vector<1x8x32xf32> to vector<8x32xf32>
    %cst_31 = arith.constant dense<0.000000e+00> : vector<64x32xf32>
    %86 = tpu.matmul %83, %85, %cst_31 {dimension_numbers = #tpu.dot_dimension_numbers<[1], [0], [0], [1], [0, 0, 1, 1], [], []>} : vector<64x8xf32>, vector<8x32xf32>, vector<64x32xf32> -> vector<64x32xf32>
    %c0_32 = arith.constant 0 : index
    %c1 = arith.constant 1 : index
    %c0_33 = arith.constant 0 : index
    %c0_34 = arith.constant 0 : index
    %87 = vector.load %arg5[%c0_32, %c1, %c0_33, %c0_34] : memref<1x12x32x8xf32, #tpu.memory_space<vmem>>, vector<1x1x32x8xf32>
    %88 = vector.shape_cast %87 : vector<1x1x32x8xf32> to vector<32x8xf32>
    %c0_35 = arith.constant 0 : index
    %c5 = arith.constant 5 : index
    %c0_36 = arith.constant 0 : index
    %c0_37 = arith.constant 0 : index
    %89 = vector.load %arg5[%c0_35, %c5, %c0_36, %c0_37] : memref<1x12x32x8xf32, #tpu.memory_space<vmem>>, vector<1x1x32x8xf32>
    %90 = vector.shape_cast %89 : vector<1x1x32x8xf32> to vector<32x8xf32>
    %c0_38 = arith.constant 0 : index
    %c9 = arith.constant 9 : index
    %c0_39 = arith.constant 0 : index
    %c0_40 = arith.constant 0 : index
    %91 = vector.load %arg5[%c0_38, %c9, %c0_39, %c0_40] : memref<1x12x32x8xf32, #tpu.memory_space<vmem>>, vector<1x1x32x8xf32>
    %92 = vector.shape_cast %91 : vector<1x1x32x8xf32> to vector<32x8xf32>
    %cst_41 = arith.constant dense<0.000000e+00> : vector<64x8xf32>
    %93 = tpu.matmul %35, %88, %cst_41 {dimension_numbers = #tpu.dot_dimension_numbers<[1], [0], [0], [1], [0, 0, 1, 1], [], []>} : vector<64x32xf32>, vector<32x8xf32>, vector<64x8xf32> -> vector<64x8xf32>
    %94 = vector.extract_strided_slice %5 {offsets = [3, 0], sizes = [1, 8], strides = [1, 1]} : vector<19x128xf32> to vector<1x8xf32>
    %95 = vector.shape_cast %94 : vector<1x8xf32> to vector<8xf32>
    %96 = vector.shape_cast %95 : vector<8xf32> to vector<1x8xf32>
    %97 = vector.broadcast %96 : vector<1x8xf32> to vector<64x8xf32>
    %98 = arith.addf %93, %97 : vector<64x8xf32>
    %cst_42 = arith.constant dense<0.000000e+00> : vector<64x8xf32>
    %99 = tpu.matmul %35, %90, %cst_42 {dimension_numbers = #tpu.dot_dimension_numbers<[1], [0], [0], [1], [0, 0, 1, 1], [], []>} : vector<64x32xf32>, vector<32x8xf32>, vector<64x8xf32> -> vector<64x8xf32>
    %100 = vector.extract_strided_slice %5 {offsets = [7, 0], sizes = [1, 8], strides = [1, 1]} : vector<19x128xf32> to vector<1x8xf32>
    %101 = vector.shape_cast %100 : vector<1x8xf32> to vector<8xf32>
    %102 = vector.shape_cast %101 : vector<8xf32> to vector<1x8xf32>
    %103 = vector.broadcast %102 : vector<1x8xf32> to vector<64x8xf32>
    %104 = arith.addf %99, %103 : vector<64x8xf32>
    %cst_43 = arith.constant dense<0.000000e+00> : vector<64x8xf32>
    %105 = tpu.matmul %35, %92, %cst_43 {dimension_numbers = #tpu.dot_dimension_numbers<[1], [0], [0], [1], [0, 0, 1, 1], [], []>} : vector<64x32xf32>, vector<32x8xf32>, vector<64x8xf32> -> vector<64x8xf32>
    %106 = vector.extract_strided_slice %5 {offsets = [11, 0], sizes = [1, 8], strides = [1, 1]} : vector<19x128xf32> to vector<1x8xf32>
    %107 = vector.shape_cast %106 : vector<1x8xf32> to vector<8xf32>
    %108 = vector.shape_cast %107 : vector<8xf32> to vector<1x8xf32>
    %109 = vector.broadcast %108 : vector<1x8xf32> to vector<64x8xf32>
    %110 = arith.addf %105, %109 : vector<64x8xf32>
    %111 = vector.shape_cast %98 : vector<64x8xf32> to vector<2x32x8xf32>
    %112 = vector.shape_cast %104 : vector<64x8xf32> to vector<2x32x8xf32>
    %113 = vector.shape_cast %110 : vector<64x8xf32> to vector<2x32x8xf32>
    "tpu.trace_start"() <{level = 10 : i32, message = "bqd,bkd->bqk"}> : () -> ()
    %cst_44 = arith.constant dense<0.000000e+00> : vector<2x32x32xf32>
    %114 = tpu.matmul %111, %112, %cst_44 {dimension_numbers = #tpu.dot_dimension_numbers<[2], [2], [1], [1], [0, 0, 0, 1, 1, 1], [0], [0]>} : vector<2x32x8xf32>, vector<2x32x8xf32>, vector<2x32x32xf32> -> vector<2x32x32xf32>
    "tpu.trace_stop"() : () -> ()
    %cst_45 = arith.constant 0.353553385 : f32
    %115 = vector.broadcast %cst_45 : f32 to vector<2x32x32xf32>
    %116 = arith.mulf %114, %115 : vector<2x32x32xf32>
    %cst_46 = arith.constant -1.000000e+30 : f32
    %117 = vector.shape_cast %38 : vector<1x1x32xi1> to vector<1x1x32xi1>
    %118 = vector.broadcast %117 : vector<1x1x32xi1> to vector<2x32x32xi1>
    %119 = vector.broadcast %cst_46 : f32 to vector<2x32x32xf32>
    %120 = arith.select %118, %116, %119 : vector<2x32x32xi1>, vector<2x32x32xf32>
    %cst_47 = arith.constant dense<0xFF800000> : vector<2x32xf32>
    %121 = vector.multi_reduction <maximumf>, %120, %cst_47 [2] : vector<2x32x32xf32> to vector<2x32xf32>
    %122 = vector.shape_cast %121 : vector<2x32xf32> to vector<2x32x1xf32>
    %123 = vector.broadcast %122 : vector<2x32x1xf32> to vector<2x32x32xf32>
    %124 = arith.subf %120, %123 : vector<2x32x32xf32>
    %125 = math.exp %124 : vector<2x32x32xf32>
    %cst_48 = arith.constant dense<0.000000e+00> : vector<2x32xf32>
    %126 = vector.multi_reduction <add>, %125, %cst_48 [2] : vector<2x32x32xf32> to vector<2x32xf32>
    %127 = vector.shape_cast %126 : vector<2x32xf32> to vector<2x32x1xf32>
    %128 = vector.broadcast %127 : vector<2x32x1xf32> to vector<2x32x32xf32>
    %129 = arith.divf %125, %128 : vector<2x32x32xf32>
    "tpu.trace_start"() <{level = 10 : i32, message = "bqk,bkd->bqd"}> : () -> ()
    %cst_49 = arith.constant dense<0.000000e+00> : vector<2x32x8xf32>
    %130 = tpu.matmul %129, %113, %cst_49 {dimension_numbers = #tpu.dot_dimension_numbers<[2], [1], [1], [2], [0, 0, 0, 1, 1, 2], [0], [0]>} : vector<2x32x32xf32>, vector<2x32x8xf32>, vector<2x32x8xf32> -> vector<2x32x8xf32>
    "tpu.trace_stop"() : () -> ()
    %131 = vector.shape_cast %130 : vector<2x32x8xf32> to vector<64x8xf32>
    %c0_50 = arith.constant 0 : index
    %c8_51 = arith.constant 8 : index
    %c0_52 = arith.constant 0 : index
    %132 = vector.load %arg6[%c0_50, %c8_51, %c0_52] : memref<1x32x32xf32, #tpu.memory_space<vmem>>, vector<1x8x32xf32>
    %133 = vector.shape_cast %132 : vector<1x8x32xf32> to vector<8x32xf32>
    %cst_53 = arith.constant dense<0.000000e+00> : vector<64x32xf32>
    %134 = tpu.matmul %131, %133, %cst_53 {dimension_numbers = #tpu.dot_dimension_numbers<[1], [0], [0], [1], [0, 0, 1, 1], [], []>} : vector<64x8xf32>, vector<8x32xf32>, vector<64x32xf32> -> vector<64x32xf32>
    %135 = arith.addf %86, %134 : vector<64x32xf32>
    %c0_54 = arith.constant 0 : index
    %c2 = arith.constant 2 : index
    %c0_55 = arith.constant 0 : index
    %c0_56 = arith.constant 0 : index
    %136 = vector.load %arg5[%c0_54, %c2, %c0_55, %c0_56] : memref<1x12x32x8xf32, #tpu.memory_space<vmem>>, vector<1x1x32x8xf32>
    %137 = vector.shape_cast %136 : vector<1x1x32x8xf32> to vector<32x8xf32>
    %c0_57 = arith.constant 0 : index
    %c6 = arith.constant 6 : index
    %c0_58 = arith.constant 0 : index
    %c0_59 = arith.constant 0 : index
    %138 = vector.load %arg5[%c0_57, %c6, %c0_58, %c0_59] : memref<1x12x32x8xf32, #tpu.memory_space<vmem>>, vector<1x1x32x8xf32>
    %139 = vector.shape_cast %138 : vector<1x1x32x8xf32> to vector<32x8xf32>
    %c0_60 = arith.constant 0 : index
    %c10 = arith.constant 10 : index
    %c0_61 = arith.constant 0 : index
    %c0_62 = arith.constant 0 : index
    %140 = vector.load %arg5[%c0_60, %c10, %c0_61, %c0_62] : memref<1x12x32x8xf32, #tpu.memory_space<vmem>>, vector<1x1x32x8xf32>
    %141 = vector.shape_cast %140 : vector<1x1x32x8xf32> to vector<32x8xf32>
    %cst_63 = arith.constant dense<0.000000e+00> : vector<64x8xf32>
    %142 = tpu.matmul %35, %137, %cst_63 {dimension_numbers = #tpu.dot_dimension_numbers<[1], [0], [0], [1], [0, 0, 1, 1], [], []>} : vector<64x32xf32>, vector<32x8xf32>, vector<64x8xf32> -> vector<64x8xf32>
    %143 = vector.extract_strided_slice %5 {offsets = [4, 0], sizes = [1, 8], strides = [1, 1]} : vector<19x128xf32> to vector<1x8xf32>
    %144 = vector.shape_cast %143 : vector<1x8xf32> to vector<8xf32>
    %145 = vector.shape_cast %144 : vector<8xf32> to vector<1x8xf32>
    %146 = vector.broadcast %145 : vector<1x8xf32> to vector<64x8xf32>
    %147 = arith.addf %142, %146 : vector<64x8xf32>
    %cst_64 = arith.constant dense<0.000000e+00> : vector<64x8xf32>
    %148 = tpu.matmul %35, %139, %cst_64 {dimension_numbers = #tpu.dot_dimension_numbers<[1], [0], [0], [1], [0, 0, 1, 1], [], []>} : vector<64x32xf32>, vector<32x8xf32>, vector<64x8xf32> -> vector<64x8xf32>
    %149 = vector.extract_strided_slice %5 {offsets = [8, 0], sizes = [1, 8], strides = [1, 1]} : vector<19x128xf32> to vector<1x8xf32>
    %150 = vector.shape_cast %149 : vector<1x8xf32> to vector<8xf32>
    %151 = vector.shape_cast %150 : vector<8xf32> to vector<1x8xf32>
    %152 = vector.broadcast %151 : vector<1x8xf32> to vector<64x8xf32>
    %153 = arith.addf %148, %152 : vector<64x8xf32>
    %cst_65 = arith.constant dense<0.000000e+00> : vector<64x8xf32>
    %154 = tpu.matmul %35, %141, %cst_65 {dimension_numbers = #tpu.dot_dimension_numbers<[1], [0], [0], [1], [0, 0, 1, 1], [], []>} : vector<64x32xf32>, vector<32x8xf32>, vector<64x8xf32> -> vector<64x8xf32>
    %155 = vector.extract_strided_slice %5 {offsets = [12, 0], sizes = [1, 8], strides = [1, 1]} : vector<19x128xf32> to vector<1x8xf32>
    %156 = vector.shape_cast %155 : vector<1x8xf32> to vector<8xf32>
    %157 = vector.shape_cast %156 : vector<8xf32> to vector<1x8xf32>
    %158 = vector.broadcast %157 : vector<1x8xf32> to vector<64x8xf32>
    %159 = arith.addf %154, %158 : vector<64x8xf32>
    %160 = vector.shape_cast %147 : vector<64x8xf32> to vector<2x32x8xf32>
    %161 = vector.shape_cast %153 : vector<64x8xf32> to vector<2x32x8xf32>
    %162 = vector.shape_cast %159 : vector<64x8xf32> to vector<2x32x8xf32>
    "tpu.trace_start"() <{level = 10 : i32, message = "bqd,bkd->bqk"}> : () -> ()
    %cst_66 = arith.constant dense<0.000000e+00> : vector<2x32x32xf32>
    %163 = tpu.matmul %160, %161, %cst_66 {dimension_numbers = #tpu.dot_dimension_numbers<[2], [2], [1], [1], [0, 0, 0, 1, 1, 1], [0], [0]>} : vector<2x32x8xf32>, vector<2x32x8xf32>, vector<2x32x32xf32> -> vector<2x32x32xf32>
    "tpu.trace_stop"() : () -> ()
    %cst_67 = arith.constant 0.353553385 : f32
    %164 = vector.broadcast %cst_67 : f32 to vector<2x32x32xf32>
    %165 = arith.mulf %163, %164 : vector<2x32x32xf32>
    %cst_68 = arith.constant -1.000000e+30 : f32
    %166 = vector.shape_cast %38 : vector<1x1x32xi1> to vector<1x1x32xi1>
    %167 = vector.broadcast %166 : vector<1x1x32xi1> to vector<2x32x32xi1>
    %168 = vector.broadcast %cst_68 : f32 to vector<2x32x32xf32>
    %169 = arith.select %167, %165, %168 : vector<2x32x32xi1>, vector<2x32x32xf32>
    %cst_69 = arith.constant dense<0xFF800000> : vector<2x32xf32>
    %170 = vector.multi_reduction <maximumf>, %169, %cst_69 [2] : vector<2x32x32xf32> to vector<2x32xf32>
    %171 = vector.shape_cast %170 : vector<2x32xf32> to vector<2x32x1xf32>
    %172 = vector.broadcast %171 : vector<2x32x1xf32> to vector<2x32x32xf32>
    %173 = arith.subf %169, %172 : vector<2x32x32xf32>
    %174 = math.exp %173 : vector<2x32x32xf32>
    %cst_70 = arith.constant dense<0.000000e+00> : vector<2x32xf32>
    %175 = vector.multi_reduction <add>, %174, %cst_70 [2] : vector<2x32x32xf32> to vector<2x32xf32>
    %176 = vector.shape_cast %175 : vector<2x32xf32> to vector<2x32x1xf32>
    %177 = vector.broadcast %176 : vector<2x32x1xf32> to vector<2x32x32xf32>
    %178 = arith.divf %174, %177 : vector<2x32x32xf32>
    "tpu.trace_start"() <{level = 10 : i32, message = "bqk,bkd->bqd"}> : () -> ()
    %cst_71 = arith.constant dense<0.000000e+00> : vector<2x32x8xf32>
    %179 = tpu.matmul %178, %162, %cst_71 {dimension_numbers = #tpu.dot_dimension_numbers<[2], [1], [1], [2], [0, 0, 0, 1, 1, 2], [0], [0]>} : vector<2x32x32xf32>, vector<2x32x8xf32>, vector<2x32x8xf32> -> vector<2x32x8xf32>
    "tpu.trace_stop"() : () -> ()
    %180 = vector.shape_cast %179 : vector<2x32x8xf32> to vector<64x8xf32>
    %c0_72 = arith.constant 0 : index
    %c16 = arith.constant 16 : index
    %c0_73 = arith.constant 0 : index
    %181 = vector.load %arg6[%c0_72, %c16, %c0_73] : memref<1x32x32xf32, #tpu.memory_space<vmem>>, vector<1x8x32xf32>
    %182 = vector.shape_cast %181 : vector<1x8x32xf32> to vector<8x32xf32>
    %cst_74 = arith.constant dense<0.000000e+00> : vector<64x32xf32>
    %183 = tpu.matmul %180, %182, %cst_74 {dimension_numbers = #tpu.dot_dimension_numbers<[1], [0], [0], [1], [0, 0, 1, 1], [], []>} : vector<64x8xf32>, vector<8x32xf32>, vector<64x32xf32> -> vector<64x32xf32>
    %184 = arith.addf %135, %183 : vector<64x32xf32>
    %c0_75 = arith.constant 0 : index
    %c3 = arith.constant 3 : index
    %c0_76 = arith.constant 0 : index
    %c0_77 = arith.constant 0 : index
    %185 = vector.load %arg5[%c0_75, %c3, %c0_76, %c0_77] : memref<1x12x32x8xf32, #tpu.memory_space<vmem>>, vector<1x1x32x8xf32>
    %186 = vector.shape_cast %185 : vector<1x1x32x8xf32> to vector<32x8xf32>
    %c0_78 = arith.constant 0 : index
    %c7 = arith.constant 7 : index
    %c0_79 = arith.constant 0 : index
    %c0_80 = arith.constant 0 : index
    %187 = vector.load %arg5[%c0_78, %c7, %c0_79, %c0_80] : memref<1x12x32x8xf32, #tpu.memory_space<vmem>>, vector<1x1x32x8xf32>
    %188 = vector.shape_cast %187 : vector<1x1x32x8xf32> to vector<32x8xf32>
    %c0_81 = arith.constant 0 : index
    %c11 = arith.constant 11 : index
    %c0_82 = arith.constant 0 : index
    %c0_83 = arith.constant 0 : index
    %189 = vector.load %arg5[%c0_81, %c11, %c0_82, %c0_83] : memref<1x12x32x8xf32, #tpu.memory_space<vmem>>, vector<1x1x32x8xf32>
    %190 = vector.shape_cast %189 : vector<1x1x32x8xf32> to vector<32x8xf32>
    %cst_84 = arith.constant dense<0.000000e+00> : vector<64x8xf32>
    %191 = tpu.matmul %35, %186, %cst_84 {dimension_numbers = #tpu.dot_dimension_numbers<[1], [0], [0], [1], [0, 0, 1, 1], [], []>} : vector<64x32xf32>, vector<32x8xf32>, vector<64x8xf32> -> vector<64x8xf32>
    %192 = vector.extract_strided_slice %5 {offsets = [5, 0], sizes = [1, 8], strides = [1, 1]} : vector<19x128xf32> to vector<1x8xf32>
    %193 = vector.shape_cast %192 : vector<1x8xf32> to vector<8xf32>
    %194 = vector.shape_cast %193 : vector<8xf32> to vector<1x8xf32>
    %195 = vector.broadcast %194 : vector<1x8xf32> to vector<64x8xf32>
    %196 = arith.addf %191, %195 : vector<64x8xf32>
    %cst_85 = arith.constant dense<0.000000e+00> : vector<64x8xf32>
    %197 = tpu.matmul %35, %188, %cst_85 {dimension_numbers = #tpu.dot_dimension_numbers<[1], [0], [0], [1], [0, 0, 1, 1], [], []>} : vector<64x32xf32>, vector<32x8xf32>, vector<64x8xf32> -> vector<64x8xf32>
    %198 = vector.extract_strided_slice %5 {offsets = [9, 0], sizes = [1, 8], strides = [1, 1]} : vector<19x128xf32> to vector<1x8xf32>
    %199 = vector.shape_cast %198 : vector<1x8xf32> to vector<8xf32>
    %200 = vector.shape_cast %199 : vector<8xf32> to vector<1x8xf32>
    %201 = vector.broadcast %200 : vector<1x8xf32> to vector<64x8xf32>
    %202 = arith.addf %197, %201 : vector<64x8xf32>
    %cst_86 = arith.constant dense<0.000000e+00> : vector<64x8xf32>
    %203 = tpu.matmul %35, %190, %cst_86 {dimension_numbers = #tpu.dot_dimension_numbers<[1], [0], [0], [1], [0, 0, 1, 1], [], []>} : vector<64x32xf32>, vector<32x8xf32>, vector<64x8xf32> -> vector<64x8xf32>
    %204 = vector.extract_strided_slice %5 {offsets = [13, 0], sizes = [1, 8], strides = [1, 1]} : vector<19x128xf32> to vector<1x8xf32>
    %205 = vector.shape_cast %204 : vector<1x8xf32> to vector<8xf32>
    %206 = vector.shape_cast %205 : vector<8xf32> to vector<1x8xf32>
    %207 = vector.broadcast %206 : vector<1x8xf32> to vector<64x8xf32>
    %208 = arith.addf %203, %207 : vector<64x8xf32>
    %209 = vector.shape_cast %196 : vector<64x8xf32> to vector<2x32x8xf32>
    %210 = vector.shape_cast %202 : vector<64x8xf32> to vector<2x32x8xf32>
    %211 = vector.shape_cast %208 : vector<64x8xf32> to vector<2x32x8xf32>
    "tpu.trace_start"() <{level = 10 : i32, message = "bqd,bkd->bqk"}> : () -> ()
    %cst_87 = arith.constant dense<0.000000e+00> : vector<2x32x32xf32>
    %212 = tpu.matmul %209, %210, %cst_87 {dimension_numbers = #tpu.dot_dimension_numbers<[2], [2], [1], [1], [0, 0, 0, 1, 1, 1], [0], [0]>} : vector<2x32x8xf32>, vector<2x32x8xf32>, vector<2x32x32xf32> -> vector<2x32x32xf32>
    "tpu.trace_stop"() : () -> ()
    %cst_88 = arith.constant 0.353553385 : f32
    %213 = vector.broadcast %cst_88 : f32 to vector<2x32x32xf32>
    %214 = arith.mulf %212, %213 : vector<2x32x32xf32>
    %cst_89 = arith.constant -1.000000e+30 : f32
    %215 = vector.shape_cast %38 : vector<1x1x32xi1> to vector<1x1x32xi1>
    %216 = vector.broadcast %215 : vector<1x1x32xi1> to vector<2x32x32xi1>
    %217 = vector.broadcast %cst_89 : f32 to vector<2x32x32xf32>
    %218 = arith.select %216, %214, %217 : vector<2x32x32xi1>, vector<2x32x32xf32>
    %cst_90 = arith.constant dense<0xFF800000> : vector<2x32xf32>
    %219 = vector.multi_reduction <maximumf>, %218, %cst_90 [2] : vector<2x32x32xf32> to vector<2x32xf32>
    %220 = vector.shape_cast %219 : vector<2x32xf32> to vector<2x32x1xf32>
    %221 = vector.broadcast %220 : vector<2x32x1xf32> to vector<2x32x32xf32>
    %222 = arith.subf %218, %221 : vector<2x32x32xf32>
    %223 = math.exp %222 : vector<2x32x32xf32>
    %cst_91 = arith.constant dense<0.000000e+00> : vector<2x32xf32>
    %224 = vector.multi_reduction <add>, %223, %cst_91 [2] : vector<2x32x32xf32> to vector<2x32xf32>
    %225 = vector.shape_cast %224 : vector<2x32xf32> to vector<2x32x1xf32>
    %226 = vector.broadcast %225 : vector<2x32x1xf32> to vector<2x32x32xf32>
    %227 = arith.divf %223, %226 : vector<2x32x32xf32>
    "tpu.trace_start"() <{level = 10 : i32, message = "bqk,bkd->bqd"}> : () -> ()
    %cst_92 = arith.constant dense<0.000000e+00> : vector<2x32x8xf32>
    %228 = tpu.matmul %227, %211, %cst_92 {dimension_numbers = #tpu.dot_dimension_numbers<[2], [1], [1], [2], [0, 0, 0, 1, 1, 2], [0], [0]>} : vector<2x32x32xf32>, vector<2x32x8xf32>, vector<2x32x8xf32> -> vector<2x32x8xf32>
    "tpu.trace_stop"() : () -> ()
    %229 = vector.shape_cast %228 : vector<2x32x8xf32> to vector<64x8xf32>
    %c0_93 = arith.constant 0 : index
    %c24 = arith.constant 24 : index
    %c0_94 = arith.constant 0 : index
    %230 = vector.load %arg6[%c0_93, %c24, %c0_94] : memref<1x32x32xf32, #tpu.memory_space<vmem>>, vector<1x8x32xf32>
    %231 = vector.shape_cast %230 : vector<1x8x32xf32> to vector<8x32xf32>
    %cst_95 = arith.constant dense<0.000000e+00> : vector<64x32xf32>
    %232 = tpu.matmul %229, %231, %cst_95 {dimension_numbers = #tpu.dot_dimension_numbers<[1], [0], [0], [1], [0, 0, 1, 1], [], []>} : vector<64x8xf32>, vector<8x32xf32>, vector<64x32xf32> -> vector<64x32xf32>
    %233 = arith.addf %184, %232 : vector<64x32xf32>
    %234 = arith.addf %3, %233 : vector<64x32xf32>
    %235 = vector.extract_strided_slice %5 {offsets = [14, 0], sizes = [1, 32], strides = [1, 1]} : vector<19x128xf32> to vector<1x32xf32>
    %236 = vector.shape_cast %235 : vector<1x32xf32> to vector<32xf32>
    %237 = vector.shape_cast %236 : vector<32xf32> to vector<1x32xf32>
    %238 = vector.broadcast %237 : vector<1x32xf32> to vector<64x32xf32>
    %239 = arith.addf %234, %238 : vector<64x32xf32>
    %240 = vector.extract_strided_slice %5 {offsets = [15, 0], sizes = [1, 32], strides = [1, 1]} : vector<19x128xf32> to vector<1x32xf32>
    %241 = vector.shape_cast %240 : vector<1x32xf32> to vector<32xf32>
    %242 = vector.extract_strided_slice %5 {offsets = [16, 0], sizes = [1, 32], strides = [1, 1]} : vector<19x128xf32> to vector<1x32xf32>
    %243 = vector.shape_cast %242 : vector<1x32xf32> to vector<32xf32>
    %cst_96 = arith.constant dense<0.000000e+00> : vector<64xf32>
    %244 = vector.multi_reduction <add>, %239, %cst_96 [1] : vector<64x32xf32> to vector<64xf32>
    %245 = vector.shape_cast %244 : vector<64xf32> to vector<64x1xf32>
    %cst_97 = arith.constant 3.200000e+01 : f32
    %246 = vector.broadcast %cst_97 : f32 to vector<64x1xf32>
    %247 = arith.divf %245, %246 : vector<64x1xf32>
    %248 = vector.broadcast %247 : vector<64x1xf32> to vector<64x32xf32>
    %249 = arith.subf %239, %248 : vector<64x32xf32>
    %250 = vector.broadcast %247 : vector<64x1xf32> to vector<64x32xf32>
    %251 = arith.subf %239, %250 : vector<64x32xf32>
    %252 = arith.mulf %249, %251 : vector<64x32xf32>
    %cst_98 = arith.constant dense<0.000000e+00> : vector<64xf32>
    %253 = vector.multi_reduction <add>, %252, %cst_98 [1] : vector<64x32xf32> to vector<64xf32>
    %254 = vector.shape_cast %253 : vector<64xf32> to vector<64x1xf32>
    %cst_99 = arith.constant 3.200000e+01 : f32
    %255 = vector.broadcast %cst_99 : f32 to vector<64x1xf32>
    %256 = arith.divf %254, %255 : vector<64x1xf32>
    %257 = vector.broadcast %247 : vector<64x1xf32> to vector<64x32xf32>
    %258 = arith.subf %239, %257 : vector<64x32xf32>
    %cst_100 = arith.constant 9.99999997E-7 : f32
    %259 = vector.broadcast %cst_100 : f32 to vector<64x1xf32>
    %260 = arith.addf %256, %259 : vector<64x1xf32>
    %261 = math.rsqrt %260 : vector<64x1xf32>
    %262 = vector.broadcast %261 : vector<64x1xf32> to vector<64x32xf32>
    %263 = arith.mulf %258, %262 : vector<64x32xf32>
    %264 = vector.shape_cast %241 : vector<32xf32> to vector<1x32xf32>
    %265 = vector.broadcast %264 : vector<1x32xf32> to vector<64x32xf32>
    %266 = arith.mulf %263, %265 : vector<64x32xf32>
    %267 = vector.shape_cast %243 : vector<32xf32> to vector<1x32xf32>
    %268 = vector.broadcast %267 : vector<1x32xf32> to vector<64x32xf32>
    %269 = arith.addf %266, %268 : vector<64x32xf32>
    %c0_101 = arith.constant 0 : index
    %c0_102 = arith.constant 0 : index
    %c0_103 = arith.constant 0 : index
    %270 = vector.load %arg7[%c0_101, %c0_102, %c0_103] : memref<1x32x128xf32, #tpu.memory_space<vmem>>, vector<1x32x128xf32>
    %271 = vector.shape_cast %270 : vector<1x32x128xf32> to vector<32x128xf32>
    %cst_104 = arith.constant dense<0.000000e+00> : vector<64x128xf32>
    %272 = tpu.matmul %269, %271, %cst_104 {dimension_numbers = #tpu.dot_dimension_numbers<[1], [0], [0], [1], [0, 0, 1, 1], [], []>} : vector<64x32xf32>, vector<32x128xf32>, vector<64x128xf32> -> vector<64x128xf32>
    %273 = vector.extract_strided_slice %5 {offsets = [17, 0], sizes = [1, 128], strides = [1, 1]} : vector<19x128xf32> to vector<1x128xf32>
    %274 = vector.shape_cast %273 : vector<1x128xf32> to vector<128xf32>
    %275 = vector.shape_cast %274 : vector<128xf32> to vector<1x128xf32>
    %276 = vector.broadcast %275 : vector<1x128xf32> to vector<64x128xf32>
    %277 = arith.addf %272, %276 : vector<64x128xf32>
    %cst_105 = arith.constant 5.000000e-01 : f32
    %278 = vector.broadcast %cst_105 : f32 to vector<64x128xf32>
    %279 = arith.mulf %278, %277 : vector<64x128xf32>
    %cst_106 = arith.constant 0.707106769 : f32
    %280 = vector.broadcast %cst_106 : f32 to vector<64x128xf32>
    %281 = arith.mulf %277, %280 : vector<64x128xf32>
    %282 = math.erf %281 : vector<64x128xf32>
    %cst_107 = arith.constant 1.000000e+00 : f32
    %283 = vector.broadcast %cst_107 : f32 to vector<64x128xf32>
    %284 = arith.addf %283, %282 : vector<64x128xf32>
    %285 = arith.mulf %279, %284 : vector<64x128xf32>
    %c0_108 = arith.constant 0 : index
    %c0_109 = arith.constant 0 : index
    %c0_110 = arith.constant 0 : index
    %286 = vector.load %arg8[%c0_108, %c0_109, %c0_110] : memref<1x128x32xf32, #tpu.memory_space<vmem>>, vector<1x128x32xf32>
    %287 = vector.shape_cast %286 : vector<1x128x32xf32> to vector<128x32xf32>
    %cst_111 = arith.constant dense<0.000000e+00> : vector<64x32xf32>
    %288 = tpu.matmul %285, %287, %cst_111 {dimension_numbers = #tpu.dot_dimension_numbers<[1], [0], [0], [1], [0, 0, 1, 1], [], []>} : vector<64x128xf32>, vector<128x32xf32>, vector<64x32xf32> -> vector<64x32xf32>
    %289 = arith.addf %239, %288 : vector<64x32xf32>
    %290 = vector.extract_strided_slice %5 {offsets = [18, 0], sizes = [1, 32], strides = [1, 1]} : vector<19x128xf32> to vector<1x32xf32>
    %291 = vector.shape_cast %290 : vector<1x32xf32> to vector<32xf32>
    %292 = vector.shape_cast %291 : vector<32xf32> to vector<1x32xf32>
    %293 = vector.broadcast %292 : vector<1x32xf32> to vector<64x32xf32>
    %294 = arith.addf %289, %293 : vector<64x32xf32>
    %295 = tpu.iota {dimensions = array<i32: 0>} : vector<64x1xi32>
    %c32_i32 = arith.constant 32 : i32
    %c0_i32_112 = arith.constant 0 : i32
    %296 = arith.cmpi eq, %c32_i32, %c0_i32_112 : i32
    %c1_i32 = arith.constant 1 : i32
    %297 = arith.select %296, %c1_i32, %c32_i32 : i32
    %298 = vector.broadcast %297 : i32 to vector<64x1xi32>
    %299 = arith.remsi %295, %298 : vector<64x1xi32>
    %c0_i32_113 = arith.constant 0 : i32
    %300 = vector.broadcast %c0_i32_113 : i32 to vector<64x1xi32>
    %301 = arith.cmpi ne, %299, %300 : vector<64x1xi32>
    %c0_i32_114 = arith.constant 0 : i32
    %302 = vector.broadcast %c0_i32_114 : i32 to vector<64x1xi32>
    %303 = arith.cmpi slt, %299, %302 : vector<64x1xi32>
    %c0_i32_115 = arith.constant 0 : i32
    %304 = arith.cmpi slt, %297, %c0_i32_115 : i32
    %305 = vector.broadcast %304 : i1 to vector<64x1xi1>
    %306 = vector.broadcast %305 : vector<64x1xi1> to vector<64x1xi1>
    %307 = arith.xori %303, %306 : vector<64x1xi1>
    %308 = arith.andi %307, %301 : vector<64x1xi1>
    %309 = vector.broadcast %297 : i32 to vector<64x1xi32>
    %310 = arith.addi %299, %309 : vector<64x1xi32>
    %311 = arith.select %308, %310, %299 : vector<64x1xi1>, vector<64x1xi32>
    %c26_i32_116 = arith.constant 26 : i32
    %312 = vector.broadcast %c26_i32_116 : i32 to vector<64x1xi32>
    %313 = arith.cmpi slt, %311, %312 : vector<64x1xi32>
    %cst_117 = arith.constant 0.000000e+00 : f32
    %314 = vector.shape_cast %313 : vector<64x1xi1> to vector<64x1xi1>
    %315 = vector.broadcast %314 : vector<64x1xi1> to vector<64x32xi1>
    %316 = vector.broadcast %cst_117 : f32 to vector<64x32xf32>
    %317 = arith.select %315, %294, %316 : vector<64x32xi1>, vector<64x32xf32>
    %c0_118 = arith.constant 0 : index
    %c0_119 = arith.constant 0 : index
    %318 = vector.load %arg12[%c0_118, %c0_119] : memref<64x32xf32, #tpu.memory_space<vmem>>, vector<64x32xf32>
    tpu.vector_store %arg12[%c0_118, %c0_119], %317 {strides = array<i32>} : memref<64x32xf32, #tpu.memory_space<vmem>>, vector<64x32xf32>,
    %c1_i32_120 = arith.constant 1 : i32
    %319 = arith.cmpi eq, %arg0, %c1_i32_120 : i32
    %320 = arith.extui %319 : i1 to i32
    %c0_i32_121 = arith.constant 0 : i32
    %321 = arith.cmpi ne, %320, %c0_i32_121 : i32
    scf.if %321 {
      %c0_122 = arith.constant 0 : index
      %c0_123 = arith.constant 0 : index
      %322 = tpu.strided_load %arg12[%c0_122, %c0_123] {strides = array<i32: 32, 1>} : memref<64x32xf32, #tpu.memory_space<vmem>>, vector<2x32xf32>
      %c0_124 = arith.constant 0 : index
      %c0_125 = arith.constant 0 : index
      %323 = vector.load %arg9[%c0_124, %c0_125] : memref<3x128xf32, #tpu.memory_space<vmem>>, vector<1x32xf32>
      %324 = vector.shape_cast %323 : vector<1x32xf32> to vector<32xf32>
      %c1_126 = arith.constant 1 : index
      %c0_127 = arith.constant 0 : index
      %325 = vector.load %arg9[%c1_126, %c0_127] : memref<3x128xf32, #tpu.memory_space<vmem>>, vector<1x32xf32>
      %326 = vector.shape_cast %325 : vector<1x32xf32> to vector<32xf32>
      %cst_128 = arith.constant dense<0.000000e+00> : vector<2xf32>
      %327 = vector.multi_reduction <add>, %322, %cst_128 [1] : vector<2x32xf32> to vector<2xf32>
      %328 = vector.shape_cast %327 : vector<2xf32> to vector<2x1xf32>
      %cst_129 = arith.constant 3.200000e+01 : f32
      %329 = vector.broadcast %cst_129 : f32 to vector<2x1xf32>
      %330 = arith.divf %328, %329 : vector<2x1xf32>
      %331 = vector.broadcast %330 : vector<2x1xf32> to vector<2x32xf32>
      %332 = arith.subf %322, %331 : vector<2x32xf32>
      %333 = vector.broadcast %330 : vector<2x1xf32> to vector<2x32xf32>
      %334 = arith.subf %322, %333 : vector<2x32xf32>
      %335 = arith.mulf %332, %334 : vector<2x32xf32>
      %cst_130 = arith.constant dense<0.000000e+00> : vector<2xf32>
      %336 = vector.multi_reduction <add>, %335, %cst_130 [1] : vector<2x32xf32> to vector<2xf32>
      %337 = vector.shape_cast %336 : vector<2xf32> to vector<2x1xf32>
      %cst_131 = arith.constant 3.200000e+01 : f32
      %338 = vector.broadcast %cst_131 : f32 to vector<2x1xf32>
      %339 = arith.divf %337, %338 : vector<2x1xf32>
      %340 = vector.broadcast %330 : vector<2x1xf32> to vector<2x32xf32>
      %341 = arith.subf %322, %340 : vector<2x32xf32>
      %cst_132 = arith.constant 9.99999997E-7 : f32
      %342 = vector.broadcast %cst_132 : f32 to vector<2x1xf32>
      %343 = arith.addf %339, %342 : vector<2x1xf32>
      %344 = math.rsqrt %343 : vector<2x1xf32>
      %345 = vector.broadcast %344 : vector<2x1xf32> to vector<2x32xf32>
      %346 = arith.mulf %341, %345 : vector<2x32xf32>
      %347 = vector.shape_cast %324 : vector<32xf32> to vector<1x32xf32>
      %348 = vector.broadcast %347 : vector<1x32xf32> to vector<2x32xf32>
      %349 = arith.mulf %346, %348 : vector<2x32xf32>
      %350 = vector.shape_cast %326 : vector<32xf32> to vector<1x32xf32>
      %351 = vector.broadcast %350 : vector<1x32xf32> to vector<2x32xf32>
      %352 = arith.addf %349, %351 : vector<2x32xf32>
      %c0_133 = arith.constant 0 : index
      %c0_134 = arith.constant 0 : index
      %353 = vector.load %arg10[%c0_133, %c0_134] : memref<32x128xf32, #tpu.memory_space<vmem>>, vector<32x128xf32>
      %cst_135 = arith.constant dense<0.000000e+00> : vector<2x128xf32>
      %354 = tpu.matmul %352, %353, %cst_135 {dimension_numbers = #tpu.dot_dimension_numbers<[1], [0], [0], [1], [0, 0, 1, 1], [], []>} : vector<2x32xf32>, vector<32x128xf32>, vector<2x128xf32> -> vector<2x128xf32>
      %c2_136 = arith.constant 2 : index
      %c0_137 = arith.constant 0 : index
      %355 = vector.load %arg9[%c2_136, %c0_137] : memref<3x128xf32, #tpu.memory_space<vmem>>, vector<1x128xf32>
      %356 = vector.shape_cast %355 : vector<1x128xf32> to vector<128xf32>
      %357 = vector.shape_cast %356 : vector<128xf32> to vector<1x128xf32>
      %358 = vector.broadcast %357 : vector<1x128xf32> to vector<2x128xf32>
      %359 = arith.addf %354, %358 : vector<2x128xf32>
      %cst_138 = arith.constant 0.000000e+00 : f32
      %360 = vector.broadcast %cst_138 : f32 to vector<2x128xf32>
      %361 = arith.subf %360, %359 : vector<2x128xf32>
      %362 = math.exp %361 : vector<2x128xf32>
      %cst_139 = arith.constant 1.000000e+00 : f32
      %363 = vector.broadcast %cst_139 : f32 to vector<2x128xf32>
      %364 = arith.addf %363, %362 : vector<2x128xf32>
      %cst_140 = arith.constant 1.000000e+00 : f32
      %365 = vector.broadcast %cst_140 : f32 to vector<2x128xf32>
      %366 = arith.divf %365, %364 : vector<2x128xf32>
      %c0_141 = arith.constant 0 : index
      %c0_142 = arith.constant 0 : index
      %367 = vector.load %arg11[%c0_141, %c0_142] : memref<2x128xf32, #tpu.memory_space<vmem>>, vector<2x128xf32>
      tpu.vector_store %arg11[%c0_141, %c0_142], %366 {strides = array<i32>} : memref<2x128xf32, #tpu.memory_space<vmem>>, vector<2x128xf32>,
    } else {
    }
    return
  }
  func.func @transform_0(%arg0: i32) -> (i32, i32) {
    %c0_i32 = arith.constant 0 : i32
    %c0_i32_0 = arith.constant 0 : i32
    %c0_i32_1 = arith.constant 0 : i32
    return %c0_i32, %c0_i32_0 : i32, i32
  }
  func.func @transform_1(%arg0: i32) -> (i32, i32) {
    %c0_i32 = arith.constant 0 : i32
    %c0_i32_0 = arith.constant 0 : i32
    %c0_i32_1 = arith.constant 0 : i32
    return %c0_i32, %c0_i32_0 : i32, i32
  }
  func.func @transform_2(%arg0: i32) -> (i32, i32) {
    %c0_i32 = arith.constant 0 : i32
    %c0_i32_0 = arith.constant 0 : i32
    %c0_i32_1 = arith.constant 0 : i32
    return %c0_i32, %c0_i32_0 : i32, i32
  }
  func.func @transform_3(%arg0: i32) -> (i32, i32, i32) {
    %c0_i32 = arith.constant 0 : i32
    %c0_i32_0 = arith.constant 0 : i32
    %c0_i32_1 = arith.constant 0 : i32
    return %arg0, %c0_i32, %c0_i32_0 : i32, i32, i32
  }
  func.func @transform_4(%arg0: i32) -> (i32, i32, i32, i32) {
    %c0_i32 = arith.constant 0 : i32
    %c0_i32_0 = arith.constant 0 : i32
    %c0_i32_1 = arith.constant 0 : i32
    %c0_i32_2 = arith.constant 0 : i32
    return %arg0, %c0_i32, %c0_i32_0, %c0_i32_1 : i32, i32, i32, i32
  }
  func.func @transform_5(%arg0: i32) -> (i32, i32, i32) {
    %c0_i32 = arith.constant 0 : i32
    %c0_i32_0 = arith.constant 0 : i32
    %c0_i32_1 = arith.constant 0 : i32
    return %arg0, %c0_i32, %c0_i32_0 : i32, i32, i32
  }
  func.func @transform_6(%arg0: i32) -> (i32, i32, i32) {
    %c0_i32 = arith.constant 0 : i32
    %c0_i32_0 = arith.constant 0 : i32
    %c0_i32_1 = arith.constant 0 : i32
    return %arg0, %c0_i32, %c0_i32_0 : i32, i32, i32
  }
  func.func @transform_7(%arg0: i32) -> (i32, i32, i32) {
    %c0_i32 = arith.constant 0 : i32
    %c0_i32_0 = arith.constant 0 : i32
    %c0_i32_1 = arith.constant 0 : i32
    return %arg0, %c0_i32, %c0_i32_0 : i32, i32, i32
  }
  func.func @transform_8(%arg0: i32) -> (i32, i32) {
    %c0_i32 = arith.constant 0 : i32
    %c0_i32_0 = arith.constant 0 : i32
    %c0_i32_1 = arith.constant 0 : i32
    return %c0_i32, %c0_i32_0 : i32, i32
  }
  func.func @transform_9(%arg0: i32) -> (i32, i32) {
    %c0_i32 = arith.constant 0 : i32
    %c0_i32_0 = arith.constant 0 : i32
    %c0_i32_1 = arith.constant 0 : i32
    return %c0_i32, %c0_i32_0 : i32, i32
  }
  func.func @transform_10(%arg0: i32) -> (i32, i32) {
    %c0_i32 = arith.constant 0 : i32
    %c0_i32_0 = arith.constant 0 : i32
    %c0_i32_1 = arith.constant 0 : i32
    return %c0_i32, %c0_i32_0 : i32, i32
  }
}

</mosaic_0001>

<llo_original>
// kernel: ast_forward.1
$region0: #{ast_forward.1}
  #allocation0 [shape = 'u32[]', space=smem, size = 0x4, offset = 0x4, fixed_abs, tag = 'smem constant byte address 0x4 - core index']
  #allocation1 [shape = 'u32[144,128]{1,0:T(1,128)}', space=vmem, size = 0x12000, scoped, tag = 'internal scratch']
  #allocation2 [shape = 'f32[64,32]{1,0:T(8,128)}', space=vmem, size = 0x8000, scoped, tag = 'scratch operand']
  %s0 = inlined_call_operand.vmem [shape: f32[64,64], index: 0, kind: input, shape index: {}]
  %s1 = inlined_call_operand.vmem [shape: f32[64,32], index: 1, kind: input, shape index: {}]
  %s2 = inlined_call_operand.vmem [shape: f32[64,32], index: 2, kind: input, shape index: {}]
  %s3 = inlined_call_operand.vmem [shape: f32[2,19,128], index: 3, kind: input, shape index: {}]
  %s4 = inlined_call_operand.vmem [shape: f32[2,12,32,8], index: 4, kind: input, shape index: {}]
  %s5 = inlined_call_operand.vmem [shape: f32[2,32,32], index: 5, kind: input, shape index: {}]
  %s6 = inlined_call_operand.vmem [shape: f32[2,32,128], index: 6, kind: input, shape index: {}]
  %s7 = inlined_call_operand.vmem [shape: f32[2,128,32], index: 7, kind: input, shape index: {}]
  %s8 = inlined_call_operand.vmem [shape: f32[3,128], index: 8, kind: input, shape index: {}]
  %s9 = inlined_call_operand.vmem [shape: f32[32,128], index: 9, kind: input, shape index: {}]
  %s10 = inlined_call_operand.hbm [shape: f32[2,128], index: 10, kind: output, shape index: {}]
  %s11 = sld [smem:[#allocation0]]
  $region81: #{ast_forward.1} parent=0
    _
  %s13 = ssub.s32 1, %s11
  %s14 = scalar_select 0, %s13, %s11
  $region1: #{ast_forward.1} parent=0
    #allocation3 [shape = 'u8[1024]{0}', space=vmem, size = 0x400, scoped, tag = 'output window, operand 0, single buffered']
    #allocation4 [shape = 's32[2]{0}', space=sflag, size = 0x8, scoped, tag = 'scoped memory for ast_forward.1']
    %15 = vsyncpa [#allocation4], 0
    loop: start=0, step=1, limit=4
    $region2: #{ast_forward.1} parent=1 // loop_pre_header
      _
    $region3: #{ast_forward.1} parent=1 // loop_header
      %s17 = sphi 0, %s21
      %p18 = scmp.ge.s32.totalorder %s17, 4
      %s25 = sphi 0, %s25
      %s27 = sphi 0, %s25
      %s28 = sphi 0, %s27
      %s42 = sphi 0, %s28
      %s46 = sphi 0, %s46
      %s48 = sphi 0, %s46
      %s49 = sphi 0, %s48
      %s63 = sphi 0, %s49
      %s67 = sphi 0, %s67
      %s69 = sphi 0, %s67
      %s70 = sphi 0, %s69
      %s84 = sphi 0, %s70
      %s90 = sphi 0, %s92
      %s93 = sphi 0, %s90
      %s94 = sphi 0, %s93
      %s110 = sphi 0, %s94
      %s116 = sphi 0, %s118
      %s119 = sphi 0, %s116
      %s120 = sphi 0, %s119
      %s136 = sphi 0, %s120
      %s142 = sphi 0, %s144
      %s145 = sphi 0, %s142
      %s146 = sphi 0, %s145
      %s162 = sphi 0, %s146
      %s168 = sphi 0, %s170
      %s171 = sphi 0, %s168
      %s172 = sphi 0, %s171
      %s188 = sphi 0, %s172
      %s194 = sphi 0, %s196
      %s197 = sphi 0, %s194
      %s198 = sphi 0, %s197
      %s214 = sphi 0, %s198
      %s218 = sphi 0, %s218
      %s220 = sphi 0, %s218
      %s221 = sphi 0, %s220
      %s235 = sphi 0, %s221
      %s239 = sphi 0, %s239
      %s241 = sphi 0, %s239
      %s242 = sphi 0, %s241
      %s256 = sphi 0, %s242
      %s260 = sphi 0, %s260
      %s262 = sphi 0, %s260
      %s263 = sphi 0, %s262
      %s277 = sphi 0, %s263
    $region4: #{ast_forward.1} parent=1 // loop_header_branch
      %20 = sbr.rel (%p18) target = $region8
    $region5: #{ast_forward.1} parent=1 // loop_body
      %s22 = ssub.s32 %s17, 1
      %s23 = ssub.s32 %s17, 2
      %s24 = sadd.s32 %s17, 1
      %s26 = sadd.s32 %s25, 1
      %p29 = scmp.eq.s32.totalorder %s17, 1
      %p30 = scmp.ne.s32.totalorder %s25, %s27
      %p31 = scmp.eq.s32.totalorder %s17, 0
      %p32 = por %p30, %p31
      %p33 = scmp.ne.s32.totalorder %s25, %s27
      %p34 = scmp.eq.s32.totalorder %s22, 1
      %p35 = por %p33, %p34
      %p36 = scmp.ne.s32.totalorder %s27, %s28
      %p37 = scmp.eq.s32.totalorder %s22, 0
      %p38 = por %p36, %p37
      %p39 = scmp.ne.s32.totalorder %s27, %s28
      %p40 = scmp.eq.s32.totalorder %s23, 1
      %p41 = por %p39, %p40
      %p43 = scmp.ne.s32.totalorder %s28, %s42
      %p44 = scmp.eq.s32.totalorder %s23, 0
      %p45 = por %p43, %p44
      %s47 = sadd.s32 %s46, 1
      %p50 = scmp.eq.s32.totalorder %s17, 1
      %p51 = scmp.ne.s32.totalorder %s46, %s48
      %p52 = scmp.eq.s32.totalorder %s17, 0
      %p53 = por %p51, %p52
      %p54 = scmp.ne.s32.totalorder %s46, %s48
      %p55 = scmp.eq.s32.totalorder %s22, 1
      %p56 = por %p54, %p55
      %p57 = scmp.ne.s32.totalorder %s48, %s49
      %p58 = scmp.eq.s32.totalorder %s22, 0
      %p59 = por %p57, %p58
      %p60 = scmp.ne.s32.totalorder %s48, %s49
      %p61 = scmp.eq.s32.totalorder %s23, 1
      %p62 = por %p60, %p61
      %p64 = scmp.ne.s32.totalorder %s49, %s63
      %p65 = scmp.eq.s32.totalorder %s23, 0
      %p66 = por %p64, %p65
      %s68 = sadd.s32 %s67, 1
      %p71 = scmp.eq.s32.totalorder %s17, 1
      %p72 = scmp.ne.s32.totalorder %s67, %s69
      %p73 = scmp.eq.s32.totalorder %s17, 0
      %p74 = por %p72, %p73
      %p75 = scmp.ne.s32.totalorder %s67, %s69
      %p76 = scmp.eq.s32.totalorder %s22, 1
      %p77 = por %p75, %p76
      %p78 = scmp.ne.s32.totalorder %s69, %s70
      %p79 = scmp.eq.s32.totalorder %s22, 0
      %p80 = por %p78, %p79
      %p81 = scmp.ne.s32.totalorder %s69, %s70
      %p82 = scmp.eq.s32.totalorder %s23, 1
      %p83 = por %p81, %p82
      %p85 = scmp.ne.s32.totalorder %s70, %s84
      %p86 = scmp.eq.s32.totalorder %s23, 0
      %p87 = por %p85, %p86
      %s88 = ssub.s32 %s17, %s24
      %p89 = scmp.eq.s32.totalorder %s88, 0
      %s91 = sadd.s32 %s90, 1
      %s92 = scalar_select %p89, %s90, %s91
      %p95 = pneg %p89
      %p96 = scmp.eq.s32.totalorder %s17, 1
      %p97 = por %p95, %p96
      %p98 = scmp.ne.s32.totalorder %s90, %s93
      %p99 = scmp.eq.s32.totalorder %s17, 0
      %p100 = por %p98, %p99
      %p101 = scmp.ne.s32.totalorder %s90, %s93
      %p102 = scmp.eq.s32.totalorder %s22, 1
      %p103 = por %p101, %p102
      %p104 = scmp.ne.s32.totalorder %s93, %s94
      %p105 = scmp.eq.s32.totalorder %s22, 0
      %p106 = por %p104, %p105
      %p107 = scmp.ne.s32.totalorder %s93, %s94
      %p108 = scmp.eq.s32.totalorder %s23, 1
      %p109 = por %p107, %p108
      %p111 = scmp.ne.s32.totalorder %s94, %s110
      %p112 = scmp.eq.s32.totalorder %s23, 0
      %p113 = por %p111, %p112
      %s114 = ssub.s32 %s17, %s24
      %p115 = scmp.eq.s32.totalorder %s114, 0
      %s117 = sadd.s32 %s116, 1
      %s118 = scalar_select %p115, %s116, %s117
      %p121 = pneg %p115
      %p122 = scmp.eq.s32.totalorder %s17, 1
      %p123 = por %p121, %p122
      %p124 = scmp.ne.s32.totalorder %s116, %s119
      %p125 = scmp.eq.s32.totalorder %s17, 0
      %p126 = por %p124, %p125
      %p127 = scmp.ne.s32.totalorder %s116, %s119
      %p128 = scmp.eq.s32.totalorder %s22, 1
      %p129 = por %p127, %p128
      %p130 = scmp.ne.s32.totalorder %s119, %s120
      %p131 = scmp.eq.s32.totalorder %s22, 0
      %p132 = por %p130, %p131
      %p133 = scmp.ne.s32.totalorder %s119, %s120
      %p134 = scmp.eq.s32.totalorder %s23, 1
      %p135 = por %p133, %p134
      %p137 = scmp.ne.s32.totalorder %s120, %s136
      %p138 = scmp.eq.s32.totalorder %s23, 0
      %p139 = por %p137, %p138
      %s140 = ssub.s32 %s17, %s24
      %p141 = scmp.eq.s32.totalorder %s140, 0
      %s143 = sadd.s32 %s142, 1
      %s144 = scalar_select %p141, %s142, %s143
      %p147 = pneg %p141
      %p148 = scmp.eq.s32.totalorder %s17, 1
      %p149 = por %p147, %p148
      %p150 = scmp.ne.s32.totalorder %s142, %s145
      %p151 = scmp.eq.s32.totalorder %s17, 0
      %p152 = por %p150, %p151
      %p153 = scmp.ne.s32.totalorder %s142, %s145
      %p154 = scmp.eq.s32.totalorder %s22, 1
      %p155 = por %p153, %p154
      %p156 = scmp.ne.s32.totalorder %s145, %s146
      %p157 = scmp.eq.s32.totalorder %s22, 0
      %p158 = por %p156, %p157
      %p159 = scmp.ne.s32.totalorder %s145, %s146
      %p160 = scmp.eq.s32.totalorder %s23, 1
      %p161 = por %p159, %p160
      %p163 = scmp.ne.s32.totalorder %s146, %s162
      %p164 = scmp.eq.s32.totalorder %s23, 0
      %p165 = por %p163, %p164
      %s166 = ssub.s32 %s17, %s24
      %p167 = scmp.eq.s32.totalorder %s166, 0
      %s169 = sadd.s32 %s168, 1
      %s170 = scalar_select %p167, %s168, %s169
      %p173 = pneg %p167
      %p174 = scmp.eq.s32.totalorder %s17, 1
      %p175 = por %p173, %p174
      %p176 = scmp.ne.s32.totalorder %s168, %s171
      %p177 = scmp.eq.s32.totalorder %s17, 0
      %p178 = por %p176, %p177
      %p179 = scmp.ne.s32.totalorder %s168, %s171
      %p180 = scmp.eq.s32.totalorder %s22, 1
      %p181 = por %p179, %p180
      %p182 = scmp.ne.s32.totalorder %s171, %s172
      %p183 = scmp.eq.s32.totalorder %s22, 0
      %p184 = por %p182, %p183
      %p185 = scmp.ne.s32.totalorder %s171, %s172
      %p186 = scmp.eq.s32.totalorder %s23, 1
      %p187 = por %p185, %p186
      %p189 = scmp.ne.s32.totalorder %s172, %s188
      %p190 = scmp.eq.s32.totalorder %s23, 0
      %p191 = por %p189, %p190
      %s192 = ssub.s32 %s17, %s24
      %p193 = scmp.eq.s32.totalorder %s192, 0
      %s195 = sadd.s32 %s194, 1
      %s196 = scalar_select %p193, %s194, %s195
      %p199 = pneg %p193
      %p200 = scmp.eq.s32.totalorder %s17, 1
      %p201 = por %p199, %p200
      %p202 = scmp.ne.s32.totalorder %s194, %s197
      %p203 = scmp.eq.s32.totalorder %s17, 0
      %p204 = por %p202, %p203
      %p205 = scmp.ne.s32.totalorder %s194, %s197
      %p206 = scmp.eq.s32.totalorder %s22, 1
      %p207 = por %p205, %p206
      %p208 = scmp.ne.s32.totalorder %s197, %s198
      %p209 = scmp.eq.s32.totalorder %s22, 0
      %p210 = por %p208, %p209
      %p211 = scmp.ne.s32.totalorder %s197, %s198
      %p212 = scmp.eq.s32.totalorder %s23, 1
      %p213 = por %p211, %p212
      %p215 = scmp.ne.s32.totalorder %s198, %s214
      %p216 = scmp.eq.s32.totalorder %s23, 0
      %p217 = por %p215, %p216
      %s219 = sadd.s32 %s218, 1
      %p222 = scmp.eq.s32.totalorder %s17, 1
      %p223 = scmp.ne.s32.totalorder %s218, %s220
      %p224 = scmp.eq.s32.totalorder %s17, 0
      %p225 = por %p223, %p224
      %p226 = scmp.ne.s32.totalorder %s218, %s220
      %p227 = scmp.eq.s32.totalorder %s22, 1
      %p228 = por %p226, %p227
      %p229 = scmp.ne.s32.totalorder %s220, %s221
      %p230 = scmp.eq.s32.totalorder %s22, 0
      %p231 = por %p229, %p230
      %p232 = scmp.ne.s32.totalorder %s220, %s221
      %p233 = scmp.eq.s32.totalorder %s23, 1
      %p234 = por %p232, %p233
      %p236 = scmp.ne.s32.totalorder %s221, %s235
      %p237 = scmp.eq.s32.totalorder %s23, 0
      %p238 = por %p236, %p237
      %s240 = sadd.s32 %s239, 1
      %p243 = scmp.eq.s32.totalorder %s17, 1
      %p244 = scmp.ne.s32.totalorder %s239, %s241
      %p245 = scmp.eq.s32.totalorder %s17, 0
      %p246 = por %p244, %p245
      %p247 = scmp.ne.s32.totalorder %s239, %s241
      %p248 = scmp.eq.s32.totalorder %s22, 1
      %p249 = por %p247, %p248
      %p250 = scmp.ne.s32.totalorder %s241, %s242
      %p251 = scmp.eq.s32.totalorder %s22, 0
      %p252 = por %p250, %p251
      %p253 = scmp.ne.s32.totalorder %s241, %s242
      %p254 = scmp.eq.s32.totalorder %s23, 1
      %p255 = por %p253, %p254
      %p257 = scmp.ne.s32.totalorder %s242, %s256
      %p258 = scmp.eq.s32.totalorder %s23, 0
      %p259 = por %p257, %p258
      %s261 = sadd.s32 %s260, 1
      %p264 = scmp.eq.s32.totalorder %s17, 1
      %p265 = scmp.ne.s32.totalorder %s260, %s262
      %p266 = scmp.eq.s32.totalorder %s17, 0
      %p267 = por %p265, %p266
      %p268 = scmp.ne.s32.totalorder %s260, %s262
      %p269 = scmp.eq.s32.totalorder %s22, 1
      %p270 = por %p268, %p269
      %p271 = scmp.ne.s32.totalorder %s262, %s263
      %p272 = scmp.eq.s32.totalorder %s22, 0
      %p273 = por %p271, %p272
      %p274 = scmp.ne.s32.totalorder %s262, %s263
      %p275 = scmp.eq.s32.totalorder %s23, 1
      %p276 = por %p274, %p275
      %p278 = scmp.ne.s32.totalorder %s263, %s277
      %p279 = scmp.eq.s32.totalorder %s23, 0
      %p280 = por %p278, %p279
      %p281 = scmp.le.s32.totalorder 1, %s17
      %p282 = scmp.lt.s32.totalorder %s17, 3
      %p283 = pnand %p281, %p282
      %p284 = pneg %p283
      // Predicated region
      $region9: #{ast_forward.1} parent=5 // pred_check
        _
      $region10: #{ast_forward.1} parent=5 // pred_check_branch
        %286 = sbr.rel (%p283) target = $region12
      $region11: #{ast_forward.1} parent=5 // pred_region
        %s287 = ssub.s32 %s17, 1
        // Predicated region
        $region13: #{ast_forward.1} parent=11 // pred_check
          %p288 = pneg %p38
        $region14: #{ast_forward.1} parent=11 // pred_check_branch
          %290 = sbr.rel (%p288) target = $region16
        $region15: #{ast_forward.1} parent=11 // pred_region
          _
        $region16: #{ast_forward.1} parent=11 // pred_fallthru
          _
        // Predicated region
        $region17: #{ast_forward.1} parent=11 // pred_check
          %p291 = pneg %p59
        $region18: #{ast_forward.1} parent=11 // pred_check_branch
          %293 = sbr.rel (%p291) target = $region20
        $region19: #{ast_forward.1} parent=11 // pred_region
          _
        $region20: #{ast_forward.1} parent=11 // pred_fallthru
          _
        // Predicated region
        $region21: #{ast_forward.1} parent=11 // pred_check
          %p294 = pneg %p80
        $region22: #{ast_forward.1} parent=11 // pred_check_branch
          %296 = sbr.rel (%p294) target = $region24
        $region23: #{ast_forward.1} parent=11 // pred_region
          _
        $region24: #{ast_forward.1} parent=11 // pred_fallthru
          _
        // Predicated region
        $region25: #{ast_forward.1} parent=11 // pred_check
          %p297 = pneg %p231
        $region26: #{ast_forward.1} parent=11 // pred_check_branch
          %299 = sbr.rel (%p297) target = $region28
        $region27: #{ast_forward.1} parent=11 // pred_region
          _
        $region28: #{ast_forward.1} parent=11 // pred_fallthru
          _
        // Predicated region
        $region29: #{ast_forward.1} parent=11 // pred_check
          %p300 = pneg %p252
        $region30: #{ast_forward.1} parent=11 // pred_check_branch
          %302 = sbr.rel (%p300) target = $region32
        $region31: #{ast_forward.1} parent=11 // pred_region
          _
        $region32: #{ast_forward.1} parent=11 // pred_fallthru
          _
      $region12: #{ast_forward.1} parent=5 // pred_fallthru
        _
      %p303 = scmp.lt.s32.totalorder %s17, 2
      // Predicated region
      $region33: #{ast_forward.1} parent=5 // pred_check
        %p304 = pneg %p303
      $region34: #{ast_forward.1} parent=5 // pred_check_branch
        %306 = sbr.rel (%p304) target = $region36
      $region35: #{ast_forward.1} parent=5 // pred_region
        // Predicated region
        $region37: #{ast_forward.1} parent=35 // pred_check
          %p307 = pneg %p100
        $region38: #{ast_forward.1} parent=35 // pred_check_branch
          %309 = sbr.rel (%p307) target = $region40
        $region39: #{ast_forward.1} parent=35 // pred_region
          %p310 = scmp.lt.s32.totalorder %s17, 1
          %s311 = scalar_select %p310, %s17, 1
          %s312 = smul.addr %s311, 3
          %s313 = smul.addr %s312, 8
          %s314 = scalar_lea.vmem %s3, %s313
        $region40: #{ast_forward.1} parent=35 // pred_fallthru
          _
        // Predicated region
        $region41: #{ast_forward.1} parent=35 // pred_check
          %p315 = pneg %p126
        $region42: #{ast_forward.1} parent=35 // pred_check_branch
          %317 = sbr.rel (%p315) target = $region44
        $region43: #{ast_forward.1} parent=35 // pred_region
          %p318 = scmp.lt.s32.totalorder %s17, 1
          %s319 = scalar_select %p318, %s17, 1
          %s320 = smul.addr %s319, 48
          %s321 = smul.addr %s320, 8
          %s322 = scalar_lea.vmem %s4, %s321
        $region44: #{ast_forward.1} parent=35 // pred_fallthru
          _
        // Predicated region
        $region45: #{ast_forward.1} parent=35 // pred_check
          %p323 = pneg %p152
        $region46: #{ast_forward.1} parent=35 // pred_check_branch
          %325 = sbr.rel (%p323) target = $region48
        $region47: #{ast_forward.1} parent=35 // pred_region
          %p326 = scmp.lt.s32.totalorder %s17, 1
          %s327 = scalar_select %p326, %s17, 1
          %s328 = smul.addr %s327, 4
          %s329 = smul.addr %s328, 8
          %s330 = scalar_lea.vmem %s5, %s329
        $region48: #{ast_forward.1} parent=35 // pred_fallthru
          _
        // Predicated region
        $region49: #{ast_forward.1} parent=35 // pred_check
          %p331 = pneg %p178
        $region50: #{ast_forward.1} parent=35 // pred_check_branch
          %333 = sbr.rel (%p331) target = $region52
        $region51: #{ast_forward.1} parent=35 // pred_region
          %p334 = scmp.lt.s32.totalorder %s17, 1
          %s335 = scalar_select %p334, %s17, 1
          %s336 = smul.addr %s335, 4
          %s337 = smul.addr %s336, 8
          %s338 = scalar_lea.vmem %s6, %s337
        $region52: #{ast_forward.1} parent=35 // pred_fallthru
          _
        // Predicated region
        $region53: #{ast_forward.1} parent=35 // pred_check
          %p339 = pneg %p204
        $region54: #{ast_forward.1} parent=35 // pred_check_branch
          %341 = sbr.rel (%p339) target = $region56
        $region55: #{ast_forward.1} parent=35 // pred_region
          %p342 = scmp.lt.s32.totalorder %s17, 1
          %s343 = scalar_select %p342, %s17, 1
          %s344 = smul.addr %s343, 16
          %s345 = smul.addr %s344, 8
          %s346 = scalar_lea.vmem %s7, %s345
        $region56: #{ast_forward.1} parent=35 // pred_fallthru
          _
      $region36: #{ast_forward.1} parent=5 // pred_fallthru
        _
      %p347 = scmp.le.s32.totalorder 1, %s17
      %p348 = scmp.lt.s32.totalorder %s17, 3
      %p349 = pnand %p347, %p348
      %p350 = pneg %p349
      // Predicated region
      $region57: #{ast_forward.1} parent=5 // pred_check
        _
      $region58: #{ast_forward.1} parent=5 // pred_check_branch
        %352 = sbr.rel (%p349) target = $region60
      $region59: #{ast_forward.1} parent=5 // pred_region
        %s353 = ssub.s32 %s17, 1
        %p354 = pneg %p38
        %p355 = pneg %p35
        %p356 = pneg %p59
        %p357 = pneg %p56
        %p358 = pneg %p80
        %p359 = pneg %p77
        %p360 = scmp.lt.s32.totalorder %s22, 1
        %s361 = scalar_select %p360, %s22, 1
        %s362 = smul.addr %s361, 3
        %s363 = smul.addr %s362, 8
        %s364 = scalar_lea.vmem %s3, %s363
        %p365 = pneg %p106
        %p366 = pneg %p103
        %p367 = scmp.lt.s32.totalorder %s22, 1
        %s368 = scalar_select %p367, %s22, 1
        %s369 = smul.addr %s368, 48
        %s370 = smul.addr %s369, 8
        %s371 = scalar_lea.vmem %s4, %s370
        %p372 = pneg %p132
        %p373 = pneg %p129
        %p374 = scmp.lt.s32.totalorder %s22, 1
        %s375 = scalar_select %p374, %s22, 1
        %s376 = smul.addr %s375, 4
        %s377 = smul.addr %s376, 8
        %s378 = scalar_lea.vmem %s5, %s377
        %p379 = pneg %p158
        %p380 = pneg %p155
        %p381 = scmp.lt.s32.totalorder %s22, 1
        %s382 = scalar_select %p381, %s22, 1
        %s383 = smul.addr %s382, 4
        %s384 = smul.addr %s383, 8
        %s385 = scalar_lea.vmem %s6, %s384
        %p386 = pneg %p184
        %p387 = pneg %p181
        %p388 = scmp.lt.s32.totalorder %s22, 1
        %s389 = scalar_select %p388, %s22, 1
        %s390 = smul.addr %s389, 16
        %s391 = smul.addr %s390, 8
        %s392 = scalar_lea.vmem %s7, %s391
        %p393 = pneg %p210
        %p394 = pneg %p207
        %p395 = pneg %p231
        %p396 = pneg %p228
        %p397 = pneg %p252
        %p398 = pneg %p249
        %p399 = pneg %p273
        %p400 = pneg %p270
        %p401 = scmp.lt.s32.totalorder %s22, 1
        %s402 = scalar_select %p401, %s22, 1
        %s403 = smul.addr %s402, 3
        %s404 = smul.addr %s403, 8
        %s405 = scalar_lea.vmem %s3, %s404
        %p406 = scmp.lt.s32.totalorder %s22, 1
        %s407 = scalar_select %p406, %s22, 1
        %s408 = smul.addr %s407, 48
        %s409 = smul.addr %s408, 8
        %s410 = scalar_lea.vmem %s4, %s409
        %p411 = scmp.lt.s32.totalorder %s22, 1
        %s412 = scalar_select %p411, %s22, 1
        %s413 = smul.addr %s412, 4
        %s414 = smul.addr %s413, 8
        %s415 = scalar_lea.vmem %s5, %s414
        %p416 = scmp.lt.s32.totalorder %s22, 1
        %s417 = scalar_select %p416, %s22, 1
        %s418 = smul.addr %s417, 4
        %s419 = smul.addr %s418, 8
        %s420 = scalar_lea.vmem %s6, %s419
        %p421 = scmp.lt.s32.totalorder %s22, 1
        %s422 = scalar_select %p421, %s22, 1
        %s423 = smul.addr %s422, 16
        %s424 = smul.addr %s423, 8
        %s425 = scalar_lea.vmem %s7, %s424
        %p426 = scmp.eq.s32.totalorder %s22, 0
        // Predicated region
        $region61: #{ast_forward.1} parent=59 // pred_check
          %p427 = pneg %p426
        $region62: #{ast_forward.1} parent=59 // pred_check_branch
          %429 = sbr.rel (%p427) target = $region64
        $region63: #{ast_forward.1} parent=59 // pred_region
          %v430 = vld [vmem:[%s0] sm:$0xff]
          %v431 = vld [vmem:[%s0 + $0x8] sm:$0xff]
          %v432 = vld [vmem:[%s0 + $0x10] sm:$0xff]
          %v433 = vld [vmem:[%s0 + $0x18] sm:$0xff]
          %v434 = vld [vmem:[%s0 + $0x20] sm:$0xff]
          %v435 = vld [vmem:[%s0 + $0x28] sm:$0xff]
          %v436 = vld [vmem:[%s0 + $0x30] sm:$0xff]
          %v437 = vld [vmem:[%s0 + $0x38] sm:$0xff]
          %v438 = vld [vmem:[%s2] sm:$0xff]
          %v439 = vld [vmem:[%s2 + $0x8] sm:$0xff]
          %v440 = vld [vmem:[%s2 + $0x10] sm:$0xff]
          %v441 = vld [vmem:[%s2 + $0x18] sm:$0xff]
          %v442 = vld [vmem:[%s2 + $0x20] sm:$0xff]
          %v443 = vld [vmem:[%s2 + $0x28] sm:$0xff]
          %v444 = vld [vmem:[%s2 + $0x30] sm:$0xff]
          %v445 = vld [vmem:[%s2 + $0x38] sm:$0xff]
          %v446 = vld [vmem:[%s1] sm:$0xff]
          %v447 = vld [vmem:[%s1 + $0x8] sm:$0xff]
          %v448 = vld [vmem:[%s1 + $0x10] sm:$0xff]
          %v449 = vld [vmem:[%s1 + $0x18] sm:$0xff]
          %v450 = vld [vmem:[%s1 + $0x20] sm:$0xff]
          %v451 = vld [vmem:[%s1 + $0x28] sm:$0xff]
          %v452 = vld [vmem:[%s1 + $0x30] sm:$0xff]
          %v453 = vld [vmem:[%s1 + $0x38] sm:$0xff]
          %vm454 = vcmask 523264
          %v456 = vsel %vm454, %v430, 0
          %v459 = vsel %vm454, %v431, 0
          %v462 = vsel %vm454, %v432, 0
          %v465 = vsel %vm454, %v433, 0
          %v468 = vsel %vm454, %v434, 0
          %v471 = vsel %vm454, %v435, 0
          %v474 = vsel %vm454, %v436, 0
          %v477 = vsel %vm454, %v437, 0
          %479 = vmatprep.subr.mxu0 0.0
          %480 = vmatpush1.msra.mxu0 %v438
          %481 = vmatprep.subr.mxu0 0.0
          %482 = vmatpush1.msra.mxu0 %v439
          %483 = vmatprep.subr.mxu0 0.0
          %484 = vmatpush1.msra.mxu0 %v440
          %485 = vmatprep.subr.mxu0 0.0
          %486 = vmatpush1.msra.mxu0 %v441
          %487 = vmatprep.subr.mxu0 0.0
          %488 = vmatpush1.msra.mxu0 %v442
          %489 = vmatprep.subr.mxu0 0.0
          %490 = vmatpush1.msra.mxu0 %v443
          %491 = vmatprep.subr.mxu0 0.0
          %492 = vmatpush1.msra.mxu0 %v444
          %493 = vmatprep.subr.mxu0 0.0
          %494 = vmatpush1.msra.mxu0 %v445
          %495 = vmatprep.subr.mxu0 0.0
          %496 = vmatpush1.msra.mxu0 0.0
          %497 = vmatprep.subr.mxu0 0.0
          %498 = vmatpush1.msra.mxu0 0.0
          %499 = vmatprep.subr.mxu0 0.0
          %500 = vmatpush1.msra.mxu0 0.0
          %501 = vmatprep.subr.mxu0 0.0
          %502 = vmatpush1.msra.mxu0 0.0
          %503 = vmatprep.subr.mxu0 0.0
          %504 = vmatpush1.msra.mxu0 0.0
          %505 = vmatprep.subr.mxu0 0.0
          %506 = vmatpush1.msra.mxu0 0.0
          %507 = vmatprep.subr.mxu0 0.0
          %508 = vmatpush1.msra.mxu0 0.0
          %509 = vmatprep.subr.mxu0 0.0
          %510 = vmatpush1.msra.mxu0 0.0
          %511 = vmatprep.subr.mxu0 0.0
          %512 = vmatpush1.msra.mxu0 0.0
          %513 = vmatprep.subr.mxu0 0.0
          %514 = vmatpush1.msra.mxu0 0.0
          %515 = vmatprep.subr.mxu0 0.0
          %516 = vmatpush1.msra.mxu0 0.0
          %517 = vmatprep.subr.mxu0 0.0
          %518 = vmatpush1.msra.mxu0 0.0
          %519 = vmatprep.subr.mxu0 0.0
          %520 = vmatpush1.msra.mxu0 0.0
          %521 = vmatprep.subr.mxu0 0.0
          %522 = vmatpush1.msra.mxu0 0.0
          %523 = vmatprep.subr.mxu0 0.0
          %524 = vmatpush1.msra.mxu0 0.0
          %525 = vmatprep.subr.mxu0 0.0
          %526 = vmatpush1.msra.mxu0 0.0
          %527 = vmatprep.subr.mxu0 0.0
          %528 = vmatpush1.msra.mxu0 0.0
          %529 = vmatprep.subr.mxu0 0.0
          %530 = vmatpush1.msra.mxu0 0.0
          %531 = vmatprep.subr.mxu0 0.0
          %532 = vmatpush1.msra.mxu0 0.0
          %533 = vmatprep.subr.mxu0 0.0
          %534 = vmatpush1.msra.mxu0 0.0
          %535 = vmatprep.subr.mxu0 0.0
          %536 = vmatpush1.msra.mxu0 0.0
          %537 = vmatprep.subr.mxu0 0.0
          %538 = vmatpush1.msra.mxu0 0.0
          %539 = vmatprep.subr.mxu0 0.0
          %540 = vmatpush1.msra.mxu0 0.0
          %541 = vmatprep.subr.mxu0 0.0
          %542 = vmatpush1.msra.mxu0 0.0
          %543 = vmatprep.mubr.f32.mxu0 0.0
          %544 = vmatmul.mubr.f32.gmra.mrb[0].mxu0 %v456
          %v545 = vpop.f32.mrb[0].mxu0
          %v546 = vadd.f32 %v446, %v545
          %v547 = vpop.f32.mrb[0].mxu0
          %548 = vmatprep.mubr.f32.mxu0 0.0
          %549 = vmatmul.mubr.f32.gmra.mrb[0].mxu0 %v459
          %v550 = vpop.f32.mrb[0].mxu0
          %v551 = vadd.f32 %v447, %v550
          %v552 = vpop.f32.mrb[0].mxu0
          %553 = vmatprep.mubr.f32.mxu0 0.0
          %554 = vmatmul.mubr.f32.gmra.mrb[0].mxu0 %v462
          %v555 = vpop.f32.mrb[0].mxu0
          %v556 = vadd.f32 %v448, %v555
          %v557 = vpop.f32.mrb[0].mxu0
          %558 = vmatprep.mubr.f32.mxu0 0.0
          %559 = vmatmul.mubr.f32.gmra.mrb[0].mxu0 %v465
          %v560 = vpop.f32.mrb[0].mxu0
          %v561 = vadd.f32 %v449, %v560
          %v562 = vpop.f32.mrb[0].mxu0
          %563 = vmatprep.mubr.f32.mxu0 0.0
          %564 = vmatmul.mubr.f32.gmra.mrb[0].mxu0 %v468
          %v565 = vpop.f32.mrb[0].mxu0
          %v566 = vadd.f32 %v450, %v565
          %v567 = vpop.f32.mrb[0].mxu0
          %568 = vmatprep.mubr.f32.mxu0 0.0
          %569 = vmatmul.mubr.f32.gmra.mrb[0].mxu0 %v471
          %v570 = vpop.f32.mrb[0].mxu0
          %v571 = vadd.f32 %v451, %v570
          %v572 = vpop.f32.mrb[0].mxu0
          %573 = vmatprep.mubr.f32.mxu0 0.0
          %574 = vmatmul.mubr.f32.gmra.mrb[0].mxu0 %v474
          %v575 = vpop.f32.mrb[0].mxu0
          %v576 = vadd.f32 %v452, %v575
          %v577 = vpop.f32.mrb[0].mxu0
          %578 = vmatprep.mubr.f32.mxu0 0.0
          %579 = vmatmul.mubr.f32.gmra.mrb[0].mxu0 %v477
          %v580 = vpop.f32.mrb[0].mxu0
          %v581 = vadd.f32 %v453, %v580
          %v582 = vpop.f32.mrb[0].mxu0
          %583 = vdwg.mxu0
          %vm584 = vcmask 261120
          %585 = vst.msk [vmem:[#allocation2] sm:$0xff] %vm584, %v546
          %586 = vst.msk [vmem:[#allocation2 + $0x8] sm:$0xff] %vm584, %v551
          %587 = vst.msk [vmem:[#allocation2 + $0x10] sm:$0xff] %vm584, %v556
          %588 = vst.msk [vmem:[#allocation2 + $0x18] sm:$0xff] %vm584, %v561
          %589 = vst.msk [vmem:[#allocation2 + $0x20] sm:$0xff] %vm584, %v566
          %590 = vst.msk [vmem:[#allocation2 + $0x28] sm:$0xff] %vm584, %v571
          %591 = vst.msk [vmem:[#allocation2 + $0x30] sm:$0xff] %vm584, %v576
          %592 = vst.msk [vmem:[#allocation2 + $0x38] sm:$0xff] %vm584, %v581
        $region64: #{ast_forward.1} parent=59 // pred_fallthru
          _
        %v593 = vld [vmem:[#allocation2] sm:$0xff]
        %v594 = vld [vmem:[#allocation2 + $0x8] sm:$0xff]
        %v595 = vld [vmem:[#allocation2 + $0x10] sm:$0xff]
        %v596 = vld [vmem:[#allocation2 + $0x18] sm:$0xff]
        %v597 = vld [vmem:[#allocation2 + $0x20] sm:$0xff]
        %v598 = vld [vmem:[#allocation2 + $0x28] sm:$0xff]
        %v599 = vld [vmem:[#allocation2 + $0x30] sm:$0xff]
        %v600 = vld [vmem:[#allocation2 + $0x38] sm:$0xff]
        %v601 = vld [vmem:[%s405] sm:$0xff]
        %v602 = vld [vmem:[%s405 + $0x8] sm:$0xff]
        %v603 = vld [vmem:[%s405 + $0x10] sm:$0x7]
        %vm604 = vcmask 261120
        %v605 = vsel %vm604, %v593, 0.0
        %606 = vadd.xlane.f32.xlu0 %v605
        %v607 = vpop.xlane.xlu0 %606
        %v608 = vsel %vm604, %v594, 0.0
        %609 = vadd.xlane.f32.xlu0 %v608
        %v610 = vpop.xlane.xlu0 %609
        %v611 = vsel %vm604, %v595, 0.0
        %612 = vadd.xlane.f32.xlu0 %v611
        %v613 = vpop.xlane.xlu0 %612
        %v614 = vsel %vm604, %v596, 0.0
        %615 = vadd.xlane.f32.xlu0 %v614
        %v616 = vpop.xlane.xlu0 %615
        %v617 = vsel %vm604, %v597, 0.0
        %618 = vadd.xlane.f32.xlu0 %v617
        %v619 = vpop.xlane.xlu0 %618
        %v620 = vsel %vm604, %v598, 0.0
        %621 = vadd.xlane.f32.xlu0 %v620
        %v622 = vpop.xlane.xlu0 %621
        %v623 = vsel %vm604, %v599, 0.0
        %624 = vadd.xlane.f32.xlu0 %v623
        %v625 = vpop.xlane.xlu0 %624
        %v626 = vsel %vm604, %v600, 0.0
        %627 = vadd.xlane.f32.xlu0 %v626
        %v628 = vpop.xlane.xlu0 %627
        %v629 = vrcp.pop 32.0
        %v630 = vmul.f32 %v607, %v629
        %v631 = vmul.f32 %v610, %v629
        %v632 = vmul.f32 %v613, %v629
        %v633 = vmul.f32 %v616, %v629
        %v634 = vmul.f32 %v619, %v629
        %v635 = vmul.f32 %v622, %v629
        %v636 = vmul.f32 %v625, %v629
        %v637 = vmul.f32 %v628, %v629
        %v638 = vsub.f32 %v593, %v630
        %v639 = vsub.f32 %v594, %v631
        %v640 = vsub.f32 %v595, %v632
        %v641 = vsub.f32 %v596, %v633
        %v642 = vsub.f32 %v597, %v634
        %v643 = vsub.f32 %v598, %v635
        %v644 = vsub.f32 %v599, %v636
        %v645 = vsub.f32 %v600, %v637
        %v646 = vmul.f32 %v638, %v638
        %v647 = vmul.f32 %v639, %v639
        %v648 = vmul.f32 %v640, %v640
        %v649 = vmul.f32 %v641, %v641
        %v650 = vmul.f32 %v642, %v642
        %v651 = vmul.f32 %v643, %v643
        %v652 = vmul.f32 %v644, %v644
        %v653 = vmul.f32 %v645, %v645
        %v654 = vsel %vm604, %v646, 0.0
        %655 = vadd.xlane.f32.xlu0 %v654
        %v656 = vpop.xlane.xlu0 %655
        %v657 = vsel %vm604, %v647, 0.0
        %658 = vadd.xlane.f32.xlu0 %v657
        %v659 = vpop.xlane.xlu0 %658
        %v660 = vsel %vm604, %v648, 0.0
        %661 = vadd.xlane.f32.xlu0 %v660
        %v662 = vpop.xlane.xlu0 %661
        %v663 = vsel %vm604, %v649, 0.0
        %664 = vadd.xlane.f32.xlu0 %v663
        %v665 = vpop.xlane.xlu0 %664
        %v666 = vsel %vm604, %v650, 0.0
        %667 = vadd.xlane.f32.xlu0 %v666
        %v668 = vpop.xlane.xlu0 %667
        %v669 = vsel %vm604, %v651, 0.0
        %670 = vadd.xlane.f32.xlu0 %v669
        %v671 = vpop.xlane.xlu0 %670
        %v672 = vsel %vm604, %v652, 0.0
        %673 = vadd.xlane.f32.xlu0 %v672
        %v674 = vpop.xlane.xlu0 %673
        %v675 = vsel %vm604, %v653, 0.0
        %676 = vadd.xlane.f32.xlu0 %v675
        %v677 = vpop.xlane.xlu0 %676
        %v678 = vmul.f32 %v656, %v629
        %v679 = vmul.f32 %v659, %v629
        %v680 = vmul.f32 %v662, %v629
        %v681 = vmul.f32 %v665, %v629
        %v682 = vmul.f32 %v668, %v629
        %v683 = vmul.f32 %v671, %v629
        %v684 = vmul.f32 %v674, %v629
        %v685 = vmul.f32 %v677, %v629
        %v686 = vadd.f32 %v678, 1e-06
        %v687 = vadd.f32 %v679, 1e-06
        %v688 = vadd.f32 %v680, 1e-06
        %v689 = vadd.f32 %v681, 1e-06
        %v690 = vadd.f32 %v682, 1e-06
        %v691 = vadd.f32 %v683, 1e-06
        %v692 = vadd.f32 %v684, 1e-06
        %v693 = vadd.f32 %v685, 1e-06
        %v694 = vrsqrt.pop %v686
        %v695 = vrsqrt.pop %v687
        %v696 = vrsqrt.pop %v688
        %v697 = vrsqrt.pop %v689
        %v698 = vrsqrt.pop %v690
        %v699 = vrsqrt.pop %v691
        %v700 = vrsqrt.pop %v692
        %v701 = vrsqrt.pop %v693
        %v702 = vmul.f32 %v638, %v694
        %v703 = vmul.f32 %v639, %v695
        %v704 = vmul.f32 %v640, %v696
        %v705 = vmul.f32 %v641, %v697
        %v706 = vmul.f32 %v642, %v698
        %v707 = vmul.f32 %v643, %v699
        %v708 = vmul.f32 %v644, %v700
        %v709 = vmul.f32 %v645, %v701
        %v710 = vlaneseq
        %v711 = vshrl.u32 %v710, 7
        %v712 = vsub.s32 0, %v711
        %v713 = vrot.slane %v601, %v712
        %v714 = vmul.f32 %v702, %v713
        %v715 = vmul.f32 %v703, %v713
        %v716 = vmul.f32 %v704, %v713
        %v717 = vmul.f32 %v705, %v713
        %v718 = vmul.f32 %v706, %v713
        %v719 = vmul.f32 %v707, %v713
        %v720 = vmul.f32 %v708, %v713
        %v721 = vmul.f32 %v709, %v713
        %v722 = vlaneseq
        %v723 = vshrl.u32 %v722, 7
        %v724 = vsub.s32 1, %v723
        %v725 = vrot.slane %v601, %v724
        %v726 = vadd.f32 %v714, %v725
        %v727 = vadd.f32 %v715, %v725
        %v728 = vadd.f32 %v716, %v725
        %v729 = vadd.f32 %v717, %v725
        %v730 = vadd.f32 %v718, %v725
        %v731 = vadd.f32 %v719, %v725
        %v732 = vadd.f32 %v720, %v725
        %v733 = vadd.f32 %v721, %v725
        %v734 = vlaneseq
        %v735 = vand.u32 %v734, 127
        %vm736 = vcmp.lt.s32.totalorder %v735, 26
        %v737 = vld [vmem:[%s410] sm:$0xff]
        %v738 = vld [vmem:[%s410 + $0x8] sm:$0xff]
        %v739 = vld [vmem:[%s410 + $0x10] sm:$0xff]
        %v740 = vld [vmem:[%s410 + $0x18] sm:$0xff]
        %s741 = scalar_lea.vmem %s410, 128
        %v742 = vld [vmem:[%s741] sm:$0xff]
        %v743 = vld [vmem:[%s741 + $0x8] sm:$0xff]
        %v744 = vld [vmem:[%s741 + $0x10] sm:$0xff]
        %v745 = vld [vmem:[%s741 + $0x18] sm:$0xff]
        %s746 = scalar_lea.vmem %s410, 256
        %v747 = vld [vmem:[%s746] sm:$0xff]
        %v748 = vld [vmem:[%s746 + $0x8] sm:$0xff]
        %v749 = vld [vmem:[%s746 + $0x10] sm:$0xff]
        %v750 = vld [vmem:[%s746 + $0x18] sm:$0xff]
        %v751 = vlaneseq
        %v752 = vshrl.u32 %v751, 7
        %v753 = vsub.s32 2, %v752
        %v754 = vrot.slane %v601, %v753
        %v756 = vsel %vm604, %v726, 0
        %v759 = vsel %vm604, %v727, 0
        %v762 = vsel %vm604, %v728, 0
        %v765 = vsel %vm604, %v729, 0
        %v768 = vsel %vm604, %v730, 0
        %v771 = vsel %vm604, %v731, 0
        %v774 = vsel %vm604, %v732, 0
        %v777 = vsel %vm604, %v733, 0
        %779 = vmatprep.subr.mxu0 0.0
        %780 = vmatpush1.msra.mxu0 %v737
        %781 = vmatprep.subr.mxu0 0.0
        %782 = vmatpush1.msra.mxu0 %v738
        %783 = vmatprep.subr.mxu0 0.0
        %784 = vmatpush1.msra.mxu0 %v739
        %785 = vmatprep.subr.mxu0 0.0
        %786 = vmatpush1.msra.mxu0 %v740
        %787 = vmatprep.subr.mxu0 0.0
        %788 = vmatpush1.msra.mxu0 0.0
        %789 = vmatprep.subr.mxu0 0.0
        %790 = vmatpush1.msra.mxu0 0.0
        %791 = vmatprep.subr.mxu0 0.0
        %792 = vmatpush1.msra.mxu0 0.0
        %793 = vmatprep.subr.mxu0 0.0
        %794 = vmatpush1.msra.mxu0 0.0
        %795 = vmatprep.subr.mxu0 0.0
        %796 = vmatpush1.msra.mxu0 0.0
        %797 = vmatprep.subr.mxu0 0.0
        %798 = vmatpush1.msra.mxu0 0.0
        %799 = vmatprep.subr.mxu0 0.0
        %800 = vmatpush1.msra.mxu0 0.0
        %801 = vmatprep.subr.mxu0 0.0
        %802 = vmatpush1.msra.mxu0 0.0
        %803 = vmatprep.subr.mxu0 0.0
        %804 = vmatpush1.msra.mxu0 0.0
        %805 = vmatprep.subr.mxu0 0.0
        %806 = vmatpush1.msra.mxu0 0.0
        %807 = vmatprep.subr.mxu0 0.0
        %808 = vmatpush1.msra.mxu0 0.0
        %809 = vmatprep.subr.mxu0 0.0
        %810 = vmatpush1.msra.mxu0 0.0
        %811 = vmatprep.subr.mxu0 0.0
        %812 = vmatpush1.msra.mxu0 0.0
        %813 = vmatprep.subr.mxu0 0.0
        %814 = vmatpush1.msra.mxu0 0.0
        %815 = vmatprep.subr.mxu0 0.0
        %816 = vmatpush1.msra.mxu0 0.0
        %817 = vmatprep.subr.mxu0 0.0
        %818 = vmatpush1.msra.mxu0 0.0
        %819 = vmatprep.subr.mxu0 0.0
        %820 = vmatpush1.msra.mxu0 0.0
        %821 = vmatprep.subr.mxu0 0.0
        %822 = vmatpush1.msra.mxu0 0.0
        %823 = vmatprep.subr.mxu0 0.0
        %824 = vmatpush1.msra.mxu0 0.0
        %825 = vmatprep.subr.mxu0 0.0
        %826 = vmatpush1.msra.mxu0 0.0
        %827 = vmatprep.subr.mxu0 0.0
        %828 = vmatpush1.msra.mxu0 0.0
        %829 = vmatprep.subr.mxu0 0.0
        %830 = vmatpush1.msra.mxu0 0.0
        %831 = vmatprep.subr.mxu0 0.0
        %832 = vmatpush1.msra.mxu0 0.0
        %833 = vmatprep.subr.mxu0 0.0
        %834 = vmatpush1.msra.mxu0 0.0
        %835 = vmatprep.subr.mxu0 0.0
        %836 = vmatpush1.msra.mxu0 0.0
        %837 = vmatprep.subr.mxu0 0.0
        %838 = vmatpush1.msra.mxu0 0.0
        %839 = vmatprep.subr.mxu0 0.0
        %840 = vmatpush1.msra.mxu0 0.0
        %841 = vmatprep.subr.mxu0 0.0
        %842 = vmatpush1.msra.mxu0 0.0
        %843 = vmatprep.mubr.f32.mxu0 0.0
        %844 = vmatmul.mubr.f32.gmra.mrb[0].mxu0 %v756
        %v845 = vpop.f32.mrb[0].mxu0
        %v846 = vadd.f32 %v754, %v845
        %v847 = vpop.f32.mrb[0].mxu0
        %848 = vmatprep.mubr.f32.mxu0 0.0
        %849 = vmatmul.mubr.f32.gmra.mrb[0].mxu0 %v759
        %v850 = vpop.f32.mrb[0].mxu0
        %v851 = vadd.f32 %v754, %v850
        %v852 = vpop.f32.mrb[0].mxu0
        %853 = vmatprep.mubr.f32.mxu0 0.0
        %854 = vmatmul.mubr.f32.gmra.mrb[0].mxu0 %v762
        %v855 = vpop.f32.mrb[0].mxu0
        %v856 = vadd.f32 %v754, %v855
        %v857 = vpop.f32.mrb[0].mxu0
        %858 = vmatprep.mubr.f32.mxu0 0.0
        %859 = vmatmul.mubr.f32.gmra.mrb[0].mxu0 %v765
        %v860 = vpop.f32.mrb[0].mxu0
        %v861 = vadd.f32 %v754, %v860
        %v862 = vpop.f32.mrb[0].mxu0
        %863 = vmatprep.mubr.f32.mxu0 0.0
        %864 = vmatmul.mubr.f32.gmra.mrb[0].mxu0 %v768
        %v865 = vpop.f32.mrb[0].mxu0
        %v866 = vadd.f32 %v754, %v865
        %v867 = vpop.f32.mrb[0].mxu0
        %868 = vmatprep.mubr.f32.mxu0 0.0
        %869 = vmatmul.mubr.f32.gmra.mrb[0].mxu0 %v771
        %v870 = vpop.f32.mrb[0].mxu0
        %v871 = vadd.f32 %v754, %v870
        %v872 = vpop.f32.mrb[0].mxu0
        %873 = vmatprep.mubr.f32.mxu0 0.0
        %874 = vmatmul.mubr.f32.gmra.mrb[0].mxu0 %v774
        %v875 = vpop.f32.mrb[0].mxu0
        %v876 = vadd.f32 %v754, %v875
        %v877 = vpop.f32.mrb[0].mxu0
        %878 = vmatprep.mubr.f32.mxu0 0.0
        %879 = vmatmul.mubr.f32.gmra.mrb[0].mxu0 %v777
        %v880 = vpop.f32.mrb[0].mxu0
        %v881 = vadd.f32 %v754, %v880
        %v882 = vpop.f32.mrb[0].mxu0
        %883 = vdwg.mxu0
        %v884 = vlaneseq
        %v885 = vshrl.u32 %v884, 7
        %v886 = vsub.s32 6, %v885
        %v887 = vrot.slane %v601, %v886
        %888 = vmatprep.subr.mxu0 0.0
        %889 = vmatpush1.msra.mxu0 %v742
        %890 = vmatprep.subr.mxu0 0.0
        %891 = vmatpush1.msra.mxu0 %v743
        %892 = vmatprep.subr.mxu0 0.0
        %893 = vmatpush1.msra.mxu0 %v744
        %894 = vmatprep.subr.mxu0 0.0
        %895 = vmatpush1.msra.mxu0 %v745
        %896 = vmatprep.subr.mxu0 0.0
        %897 = vmatpush1.msra.mxu0 0.0
        %898 = vmatprep.subr.mxu0 0.0
        %899 = vmatpush1.msra.mxu0 0.0
        %900 = vmatprep.subr.mxu0 0.0
        %901 = vmatpush1.msra.mxu0 0.0
        %902 = vmatprep.subr.mxu0 0.0
        %903 = vmatpush1.msra.mxu0 0.0
        %904 = vmatprep.subr.mxu0 0.0
        %905 = vmatpush1.msra.mxu0 0.0
        %906 = vmatprep.subr.mxu0 0.0
        %907 = vmatpush1.msra.mxu0 0.0
        %908 = vmatprep.subr.mxu0 0.0
        %909 = vmatpush1.msra.mxu0 0.0
        %910 = vmatprep.subr.mxu0 0.0
        %911 = vmatpush1.msra.mxu0 0.0
        %912 = vmatprep.subr.mxu0 0.0
        %913 = vmatpush1.msra.mxu0 0.0
        %914 = vmatprep.subr.mxu0 0.0
        %915 = vmatpush1.msra.mxu0 0.0
        %916 = vmatprep.subr.mxu0 0.0
        %917 = vmatpush1.msra.mxu0 0.0
        %918 = vmatprep.subr.mxu0 0.0
        %919 = vmatpush1.msra.mxu0 0.0
        %920 = vmatprep.subr.mxu0 0.0
        %921 = vmatpush1.msra.mxu0 0.0
        %922 = vmatprep.subr.mxu0 0.0
        %923 = vmatpush1.msra.mxu0 0.0
        %924 = vmatprep.subr.mxu0 0.0
        %925 = vmatpush1.msra.mxu0 0.0
        %926 = vmatprep.subr.mxu0 0.0
        %927 = vmatpush1.msra.mxu0 0.0
        %928 = vmatprep.subr.mxu0 0.0
        %929 = vmatpush1.msra.mxu0 0.0
        %930 = vmatprep.subr.mxu0 0.0
        %931 = vmatpush1.msra.mxu0 0.0
        %932 = vmatprep.subr.mxu0 0.0
        %933 = vmatpush1.msra.mxu0 0.0
        %934 = vmatprep.subr.mxu0 0.0
        %935 = vmatpush1.msra.mxu0 0.0
        %936 = vmatprep.subr.mxu0 0.0
        %937 = vmatpush1.msra.mxu0 0.0
        %938 = vmatprep.subr.mxu0 0.0
        %939 = vmatpush1.msra.mxu0 0.0
        %940 = vmatprep.subr.mxu0 0.0
        %941 = vmatpush1.msra.mxu0 0.0
        %942 = vmatprep.subr.mxu0 0.0
        %943 = vmatpush1.msra.mxu0 0.0
        %944 = vmatprep.subr.mxu0 0.0
        %945 = vmatpush1.msra.mxu0 0.0
        %946 = vmatprep.subr.mxu0 0.0
        %947 = vmatpush1.msra.mxu0 0.0
        %948 = vmatprep.subr.mxu0 0.0
        %949 = vmatpush1.msra.mxu0 0.0
        %950 = vmatprep.subr.mxu0 0.0
        %951 = vmatpush1.msra.mxu0 0.0
        %952 = vmatprep.mubr.f32.mxu0 0.0
        %953 = vmatmul.mubr.f32.gmra.mrb[0].mxu0 %v756
        %v954 = vpop.f32.mrb[0].mxu0
        %v955 = vadd.f32 %v887, %v954
        %v956 = vpop.f32.mrb[0].mxu0
        %957 = vmatprep.mubr.f32.mxu0 0.0
        %958 = vmatmul.mubr.f32.gmra.mrb[0].mxu0 %v759
        %v959 = vpop.f32.mrb[0].mxu0
        %v960 = vadd.f32 %v887, %v959
        %v961 = vpop.f32.mrb[0].mxu0
        %962 = vmatprep.mubr.f32.mxu0 0.0
        %963 = vmatmul.mubr.f32.gmra.mrb[0].mxu0 %v762
        %v964 = vpop.f32.mrb[0].mxu0
        %v965 = vadd.f32 %v887, %v964
        %v966 = vpop.f32.mrb[0].mxu0
        %967 = vmatprep.mubr.f32.mxu0 0.0
        %968 = vmatmul.mubr.f32.gmra.mrb[0].mxu0 %v765
        %v969 = vpop.f32.mrb[0].mxu0
        %v970 = vadd.f32 %v887, %v969
        %v971 = vpop.f32.mrb[0].mxu0
        %972 = vmatprep.mubr.f32.mxu0 0.0
        %973 = vmatmul.mubr.f32.gmra.mrb[0].mxu0 %v768
        %v974 = vpop.f32.mrb[0].mxu0
        %v975 = vadd.f32 %v887, %v974
        %v976 = vpop.f32.mrb[0].mxu0
        %977 = vmatprep.mubr.f32.mxu0 0.0
        %978 = vmatmul.mubr.f32.gmra.mrb[0].mxu0 %v771
        %v979 = vpop.f32.mrb[0].mxu0
        %v980 = vadd.f32 %v887, %v979
        %v981 = vpop.f32.mrb[0].mxu0
        %982 = vmatprep.mubr.f32.mxu0 0.0
        %983 = vmatmul.mubr.f32.gmra.mrb[0].mxu0 %v774
        %v984 = vpop.f32.mrb[0].mxu0
        %v985 = vadd.f32 %v887, %v984
        %v986 = vpop.f32.mrb[0].mxu0
        %987 = vmatprep.mubr.f32.mxu0 0.0
        %988 = vmatmul.mubr.f32.gmra.mrb[0].mxu0 %v777
        %v989 = vpop.f32.mrb[0].mxu0
        %v990 = vadd.f32 %v887, %v989
        %v991 = vpop.f32.mrb[0].mxu0
        %992 = vdwg.mxu0
        %v993 = vlaneseq
        %v994 = vshrl.u32 %v993, 7
        %v995 = vsub.s32 2, %v994
        %v996 = vrot.slane %v602, %v995
        %997 = vmatprep.subr.mxu0 0.0
        %998 = vmatpush1.msra.mxu0 %v747
        %999 = vmatprep.subr.mxu0 0.0
        %1000 = vmatpush1.msra.mxu0 %v748
        %1001 = vmatprep.subr.mxu0 0.0
        %1002 = vmatpush1.msra.mxu0 %v749
        %1003 = vmatprep.subr.mxu0 0.0
        %1004 = vmatpush1.msra.mxu0 %v750
        %1005 = vmatprep.subr.mxu0 0.0
        %1006 = vmatpush1.msra.mxu0 0.0
        %1007 = vmatprep.subr.mxu0 0.0
        %1008 = vmatpush1.msra.mxu0 0.0
        %1009 = vmatprep.subr.mxu0 0.0
        %1010 = vmatpush1.msra.mxu0 0.0
        %1011 = vmatprep.subr.mxu0 0.0
        %1012 = vmatpush1.msra.mxu0 0.0
        %1013 = vmatprep.subr.mxu0 0.0
        %1014 = vmatpush1.msra.mxu0 0.0
        %1015 = vmatprep.subr.mxu0 0.0
        %1016 = vmatpush1.msra.mxu0 0.0
        %1017 = vmatprep.subr.mxu0 0.0
        %1018 = vmatpush1.msra.mxu0 0.0
        %1019 = vmatprep.subr.mxu0 0.0
        %1020 = vmatpush1.msra.mxu0 0.0
        %1021 = vmatprep.subr.mxu0 0.0
        %1022 = vmatpush1.msra.mxu0 0.0
        %1023 = vmatprep.subr.mxu0 0.0
        %1024 = vmatpush1.msra.mxu0 0.0
        %1025 = vmatprep.subr.mxu0 0.0
        %1026 = vmatpush1.msra.mxu0 0.0
        %1027 = vmatprep.subr.mxu0 0.0
        %1028 = vmatpush1.msra.mxu0 0.0
        %1029 = vmatprep.subr.mxu0 0.0
        %1030 = vmatpush1.msra.mxu0 0.0
        %1031 = vmatprep.subr.mxu0 0.0
        %1032 = vmatpush1.msra.mxu0 0.0
        %1033 = vmatprep.subr.mxu0 0.0
        %1034 = vmatpush1.msra.mxu0 0.0
        %1035 = vmatprep.subr.mxu0 0.0
        %1036 = vmatpush1.msra.mxu0 0.0
        %1037 = vmatprep.subr.mxu0 0.0
        %1038 = vmatpush1.msra.mxu0 0.0
        %1039 = vmatprep.subr.mxu0 0.0
        %1040 = vmatpush1.msra.mxu0 0.0
        %1041 = vmatprep.subr.mxu0 0.0
        %1042 = vmatpush1.msra.mxu0 0.0
        %1043 = vmatprep.subr.mxu0 0.0
        %1044 = vmatpush1.msra.mxu0 0.0
        %1045 = vmatprep.subr.mxu0 0.0
        %1046 = vmatpush1.msra.mxu0 0.0
        %1047 = vmatprep.subr.mxu0 0.0
        %1048 = vmatpush1.msra.mxu0 0.0
        %1049 = vmatprep.subr.mxu0 0.0
        %1050 = vmatpush1.msra.mxu0 0.0
        %1051 = vmatprep.subr.mxu0 0.0
        %1052 = vmatpush1.msra.mxu0 0.0
        %1053 = vmatprep.subr.mxu0 0.0
        %1054 = vmatpush1.msra.mxu0 0.0
        %1055 = vmatprep.subr.mxu0 0.0
        %1056 = vmatpush1.msra.mxu0 0.0
        %1057 = vmatprep.subr.mxu0 0.0
        %1058 = vmatpush1.msra.mxu0 0.0
        %1059 = vmatprep.subr.mxu0 0.0
        %1060 = vmatpush1.msra.mxu0 0.0
        %1061 = vmatprep.mubr.f32.mxu0 0.0
        %1062 = vmatmul.mubr.f32.gmra.mrb[0].mxu0 %v756
        %v1063 = vpop.f32.mrb[0].mxu0
        %v1064 = vadd.f32 %v996, %v1063
        %v1065 = vpop.f32.mrb[0].mxu0
        %1066 = vmatprep.mubr.f32.mxu0 0.0
        %1067 = vmatmul.mubr.f32.gmra.mrb[0].mxu0 %v759
        %v1068 = vpop.f32.mrb[0].mxu0
        %v1069 = vadd.f32 %v996, %v1068
        %v1070 = vpop.f32.mrb[0].mxu0
        %1071 = vmatprep.mubr.f32.mxu0 0.0
        %1072 = vmatmul.mubr.f32.gmra.mrb[0].mxu0 %v762
        %v1073 = vpop.f32.mrb[0].mxu0
        %v1074 = vadd.f32 %v996, %v1073
        %v1075 = vpop.f32.mrb[0].mxu0
        %1076 = vmatprep.mubr.f32.mxu0 0.0
        %1077 = vmatmul.mubr.f32.gmra.mrb[0].mxu0 %v765
        %v1078 = vpop.f32.mrb[0].mxu0
        %v1079 = vadd.f32 %v996, %v1078
        %v1080 = vpop.f32.mrb[0].mxu0
        %1081 = vmatprep.mubr.f32.mxu0 0.0
        %1082 = vmatmul.mubr.f32.gmra.mrb[0].mxu0 %v768
        %v1083 = vpop.f32.mrb[0].mxu0
        %v1084 = vadd.f32 %v996, %v1083
        %v1085 = vpop.f32.mrb[0].mxu0
        %1086 = vmatprep.mubr.f32.mxu0 0.0
        %1087 = vmatmul.mubr.f32.gmra.mrb[0].mxu0 %v771
        %v1088 = vpop.f32.mrb[0].mxu0
        %v1089 = vadd.f32 %v996, %v1088
        %v1090 = vpop.f32.mrb[0].mxu0
        %1091 = vmatprep.mubr.f32.mxu0 0.0
        %1092 = vmatmul.mubr.f32.gmra.mrb[0].mxu0 %v774
        %v1093 = vpop.f32.mrb[0].mxu0
        %v1094 = vadd.f32 %v996, %v1093
        %v1095 = vpop.f32.mrb[0].mxu0
        %1096 = vmatprep.mubr.f32.mxu0 0.0
        %1097 = vmatmul.mubr.f32.gmra.mrb[0].mxu0 %v777
        %v1098 = vpop.f32.mrb[0].mxu0
        %v1099 = vadd.f32 %v996, %v1098
        %v1100 = vpop.f32.mrb[0].mxu0
        %1101 = vdwg.mxu0
        %vm1102 = vcmask 64512
        %v1104 = vsel %vm1102, %v846, 0
        %v1107 = vsel %vm1102, %v851, 0
        %v1110 = vsel %vm1102, %v856, 0
        %v1113 = vsel %vm1102, %v861, 0
        %v1116 = vsel %vm1102, %v955, 0
        %v1119 = vsel %vm1102, %v960, 0
        %v1122 = vsel %vm1102, %v965, 0
        %v1125 = vsel %vm1102, %v970, 0
        %1127 = vmatprep.subr.mxu0 0.0
        %1128 = vmatpush1.xpose.msra.mxu0 %v1116
        %1129 = vmatprep.subr.mxu0 0.0
        %1130 = vmatpush1.xpose.msra.mxu0 %v1119
        %1131 = vmatprep.subr.mxu0 0.0
        %1132 = vmatpush1.xpose.msra.mxu0 %v1122
        %1133 = vmatprep.subr.mxu0 0.0
        %1134 = vmatpush1.xpose.msra.mxu0 %v1125
        %1135 = vmatprep.subr.mxu0 0.0
        %1136 = vmatpush1.xpose.msra.mxu0 0.0
        %1137 = vmatprep.subr.mxu0 0.0
        %1138 = vmatpush1.xpose.msra.mxu0 0.0
        %1139 = vmatprep.subr.mxu0 0.0
        %1140 = vmatpush1.xpose.msra.mxu0 0.0
        %1141 = vmatprep.subr.mxu0 0.0
        %1142 = vmatpush1.xpose.msra.mxu0 0.0
        %1143 = vmatprep.subr.mxu0 0.0
        %1144 = vmatpush1.xpose.msra.mxu0 0.0
        %1145 = vmatprep.subr.mxu0 0.0
        %1146 = vmatpush1.xpose.msra.mxu0 0.0
        %1147 = vmatprep.subr.mxu0 0.0
        %1148 = vmatpush1.xpose.msra.mxu0 0.0
        %1149 = vmatprep.subr.mxu0 0.0
        %1150 = vmatpush1.xpose.msra.mxu0 0.0
        %1151 = vmatprep.subr.mxu0 0.0
        %1152 = vmatpush1.xpose.msra.mxu0 0.0
        %1153 = vmatprep.subr.mxu0 0.0
        %1154 = vmatpush1.xpose.msra.mxu0 0.0
        %1155 = vmatprep.subr.mxu0 0.0
        %1156 = vmatpush1.xpose.msra.mxu0 0.0
        %1157 = vmatprep.subr.mxu0 0.0
        %1158 = vmatpush1.xpose.msra.mxu0 0.0
        %1159 = vmatprep.subr.mxu0 0.0
        %1160 = vmatpush1.xpose.msra.mxu0 0.0
        %1161 = vmatprep.subr.mxu0 0.0
        %1162 = vmatpush1.xpose.msra.mxu0 0.0
        %1163 = vmatprep.subr.mxu0 0.0
        %1164 = vmatpush1.xpose.msra.mxu0 0.0
        %1165 = vmatprep.subr.mxu0 0.0
        %1166 = vmatpush1.xpose.msra.mxu0 0.0
        %1167 = vmatprep.subr.mxu0 0.0
        %1168 = vmatpush1.xpose.msra.mxu0 0.0
        %1169 = vmatprep.subr.mxu0 0.0
        %1170 = vmatpush1.xpose.msra.mxu0 0.0
        %1171 = vmatprep.subr.mxu0 0.0
        %1172 = vmatpush1.xpose.msra.mxu0 0.0
        %1173 = vmatprep.subr.mxu0 0.0
        %1174 = vmatpush1.xpose.msra.mxu0 0.0
        %1175 = vmatprep.subr.mxu0 0.0
        %1176 = vmatpush1.xpose.msra.mxu0 0.0
        %1177 = vmatprep.subr.mxu0 0.0
        %1178 = vmatpush1.xpose.msra.mxu0 0.0
        %1179 = vmatprep.subr.mxu0 0.0
        %1180 = vmatpush1.xpose.msra.mxu0 0.0
        %1181 = vmatprep.subr.mxu0 0.0
        %1182 = vmatpush1.xpose.msra.mxu0 0.0
        %1183 = vmatprep.subr.mxu0 0.0
        %1184 = vmatpush1.xpose.msra.mxu0 0.0
        %1185 = vmatprep.subr.mxu0 0.0
        %1186 = vmatpush1.xpose.msra.mxu0 0.0
        %1187 = vmatprep.subr.mxu0 0.0
        %1188 = vmatpush1.xpose.msra.mxu0 0.0
        %1189 = vmatprep.subr.mxu0 0.0
        %1190 = vmatpush1.xpose.msra.mxu0 0.0
        %1191 = vmatprep.mubr.f32.mxu0 0.0
        %1192 = vmatmul.mubr.f32.gmra.mrb[0].mxu0 %v1104
        %v1193 = vpop.f32.mrb[0].mxu0
        %v1194 = vadd.f32 0.0, %v1193
        %v1195 = vpop.f32.mrb[0].mxu0
        %1196 = vmatprep.mubr.f32.mxu0 0.0
        %1197 = vmatmul.mubr.f32.gmra.mrb[0].mxu0 %v1107
        %v1198 = vpop.f32.mrb[0].mxu0
        %v1199 = vadd.f32 0.0, %v1198
        %v1200 = vpop.f32.mrb[0].mxu0
        %1201 = vmatprep.mubr.f32.mxu0 0.0
        %1202 = vmatmul.mubr.f32.gmra.mrb[0].mxu0 %v1110
        %v1203 = vpop.f32.mrb[0].mxu0
        %v1204 = vadd.f32 0.0, %v1203
        %v1205 = vpop.f32.mrb[0].mxu0
        %1206 = vmatprep.mubr.f32.mxu0 0.0
        %1207 = vmatmul.mubr.f32.gmra.mrb[0].mxu0 %v1113
        %v1208 = vpop.f32.mrb[0].mxu0
        %v1209 = vadd.f32 0.0, %v1208
        %v1210 = vpop.f32.mrb[0].mxu0
        %1211 = vdwg.mxu0
        %v1213 = vsel %vm1102, %v866, 0
        %v1216 = vsel %vm1102, %v871, 0
        %v1219 = vsel %vm1102, %v876, 0
        %v1222 = vsel %vm1102, %v881, 0
        %v1225 = vsel %vm1102, %v975, 0
        %v1228 = vsel %vm1102, %v980, 0
        %v1231 = vsel %vm1102, %v985, 0
        %v1234 = vsel %vm1102, %v990, 0
        %1236 = vmatprep.subr.mxu0 0.0
        %1237 = vmatpush1.xpose.msra.mxu0 %v1225
        %1238 = vmatprep.subr.mxu0 0.0
        %1239 = vmatpush1.xpose.msra.mxu0 %v1228
        %1240 = vmatprep.subr.mxu0 0.0
        %1241 = vmatpush1.xpose.msra.mxu0 %v1231
        %1242 = vmatprep.subr.mxu0 0.0
        %1243 = vmatpush1.xpose.msra.mxu0 %v1234
        %1244 = vmatprep.subr.mxu0 0.0
        %1245 = vmatpush1.xpose.msra.mxu0 0.0
        %1246 = vmatprep.subr.mxu0 0.0
        %1247 = vmatpush1.xpose.msra.mxu0 0.0
        %1248 = vmatprep.subr.mxu0 0.0
        %1249 = vmatpush1.xpose.msra.mxu0 0.0
        %1250 = vmatprep.subr.mxu0 0.0
        %1251 = vmatpush1.xpose.msra.mxu0 0.0
        %1252 = vmatprep.subr.mxu0 0.0
        %1253 = vmatpush1.xpose.msra.mxu0 0.0
        %1254 = vmatprep.subr.mxu0 0.0
        %1255 = vmatpush1.xpose.msra.mxu0 0.0
        %1256 = vmatprep.subr.mxu0 0.0
        %1257 = vmatpush1.xpose.msra.mxu0 0.0
        %1258 = vmatprep.subr.mxu0 0.0
        %1259 = vmatpush1.xpose.msra.mxu0 0.0
        %1260 = vmatprep.subr.mxu0 0.0
        %1261 = vmatpush1.xpose.msra.mxu0 0.0
        %1262 = vmatprep.subr.mxu0 0.0
        %1263 = vmatpush1.xpose.msra.mxu0 0.0
        %1264 = vmatprep.subr.mxu0 0.0
        %1265 = vmatpush1.xpose.msra.mxu0 0.0
        %1266 = vmatprep.subr.mxu0 0.0
        %1267 = vmatpush1.xpose.msra.mxu0 0.0
        %1268 = vmatprep.subr.mxu0 0.0
        %1269 = vmatpush1.xpose.msra.mxu0 0.0
        %1270 = vmatprep.subr.mxu0 0.0
        %1271 = vmatpush1.xpose.msra.mxu0 0.0
        %1272 = vmatprep.subr.mxu0 0.0
        %1273 = vmatpush1.xpose.msra.mxu0 0.0
        %1274 = vmatprep.subr.mxu0 0.0
        %1275 = vmatpush1.xpose.msra.mxu0 0.0
        %1276 = vmatprep.subr.mxu0 0.0
        %1277 = vmatpush1.xpose.msra.mxu0 0.0
        %1278 = vmatprep.subr.mxu0 0.0
        %1279 = vmatpush1.xpose.msra.mxu0 0.0
        %1280 = vmatprep.subr.mxu0 0.0
        %1281 = vmatpush1.xpose.msra.mxu0 0.0
        %1282 = vmatprep.subr.mxu0 0.0
        %1283 = vmatpush1.xpose.msra.mxu0 0.0
        %1284 = vmatprep.subr.mxu0 0.0
        %1285 = vmatpush1.xpose.msra.mxu0 0.0
        %1286 = vmatprep.subr.mxu0 0.0
        %1287 = vmatpush1.xpose.msra.mxu0 0.0
        %1288 = vmatprep.subr.mxu0 0.0
        %1289 = vmatpush1.xpose.msra.mxu0 0.0
        %1290 = vmatprep.subr.mxu0 0.0
        %1291 = vmatpush1.xpose.msra.mxu0 0.0
        %1292 = vmatprep.subr.mxu0 0.0
        %1293 = vmatpush1.xpose.msra.mxu0 0.0
        %1294 = vmatprep.subr.mxu0 0.0
        %1295 = vmatpush1.xpose.msra.mxu0 0.0
        %1296 = vmatprep.subr.mxu0 0.0
        %1297 = vmatpush1.xpose.msra.mxu0 0.0
        %1298 = vmatprep.subr.mxu0 0.0
        %1299 = vmatpush1.xpose.msra.mxu0 0.0
        %1300 = vmatprep.mubr.f32.mxu0 0.0
        %1301 = vmatmul.mubr.f32.gmra.mrb[0].mxu0 %v1213
        %v1302 = vpop.f32.mrb[0].mxu0
        %v1303 = vadd.f32 0.0, %v1302
        %v1304 = vpop.f32.mrb[0].mxu0
        %1305 = vmatprep.mubr.f32.mxu0 0.0
        %1306 = vmatmul.mubr.f32.gmra.mrb[0].mxu0 %v1216
        %v1307 = vpop.f32.mrb[0].mxu0
        %v1308 = vadd.f32 0.0, %v1307
        %v1309 = vpop.f32.mrb[0].mxu0
        %1310 = vmatprep.mubr.f32.mxu0 0.0
        %1311 = vmatmul.mubr.f32.gmra.mrb[0].mxu0 %v1219
        %v1312 = vpop.f32.mrb[0].mxu0
        %v1313 = vadd.f32 0.0, %v1312
        %v1314 = vpop.f32.mrb[0].mxu0
        %1315 = vmatprep.mubr.f32.mxu0 0.0
        %1316 = vmatmul.mubr.f32.gmra.mrb[0].mxu0 %v1222
        %v1317 = vpop.f32.mrb[0].mxu0
        %v1318 = vadd.f32 0.0, %v1317
        %v1319 = vpop.f32.mrb[0].mxu0
        %1320 = vdwg.mxu0
        %v1321 = vmul.f32 %v1194, 0.35355338
        %v1322 = vmul.f32 %v1199, 0.35355338
        %v1323 = vmul.f32 %v1204, 0.35355338
        %v1324 = vmul.f32 %v1209, 0.35355338
        %v1325 = vmul.f32 %v1303, 0.35355338
        %v1326 = vmul.f32 %v1308, 0.35355338
        %v1327 = vmul.f32 %v1313, 0.35355338
        %v1328 = vmul.f32 %v1318, 0.35355338
        %v1329 = vsel %vm736, 1, 0
        %vm1330 = vcmp.eq.s32.totalorder %v1329, 1
        %v1331 = vsel %vm1330, %v1321, -1e+30
        %v1332 = vsel %vm1330, %v1322, -1e+30
        %v1333 = vsel %vm1330, %v1323, -1e+30
        %v1334 = vsel %vm1330, %v1324, -1e+30
        %v1335 = vsel %vm1330, %v1325, -1e+30
        %v1336 = vsel %vm1330, %v1326, -1e+30
        %v1337 = vsel %vm1330, %v1327, -1e+30
        %v1338 = vsel %vm1330, %v1328, -1e+30
        %v1339 = vsel %vm604, %v1331, -inf
        %1340 = vmax.xlane.f32.xlu0 %v1339
        %v1341 = vpop.xlane.xlu0 %1340
        %v1342 = vsel %vm604, %v1332, -inf
        %1343 = vmax.xlane.f32.xlu0 %v1342
        %v1344 = vpop.xlane.xlu0 %1343
        %v1345 = vsel %vm604, %v1333, -inf
        %1346 = vmax.xlane.f32.xlu0 %v1345
        %v1347 = vpop.xlane.xlu0 %1346
        %v1348 = vsel %vm604, %v1334, -inf
        %1349 = vmax.xlane.f32.xlu0 %v1348
        %v1350 = vpop.xlane.xlu0 %1349
        %v1351 = vsel %vm604, %v1335, -inf
        %1352 = vmax.xlane.f32.xlu0 %v1351
        %v1353 = vpop.xlane.xlu0 %1352
        %v1354 = vsel %vm604, %v1336, -inf
        %1355 = vmax.xlane.f32.xlu0 %v1354
        %v1356 = vpop.xlane.xlu0 %1355
        %v1357 = vsel %vm604, %v1337, -inf
        %1358 = vmax.xlane.f32.xlu0 %v1357
        %v1359 = vpop.xlane.xlu0 %1358
        %v1360 = vsel %vm604, %v1338, -inf
        %1361 = vmax.xlane.f32.xlu0 %v1360
        %v1362 = vpop.xlane.xlu0 %1361
        %v1363 = vsub.f32 %v1331, %v1341
        %v1364 = vsub.f32 %v1332, %v1344
        %v1365 = vsub.f32 %v1333, %v1347
        %v1366 = vsub.f32 %v1334, %v1350
        %v1367 = vsub.f32 %v1335, %v1353
        %v1368 = vsub.f32 %v1336, %v1356
        %v1369 = vsub.f32 %v1337, %v1359
        %v1370 = vsub.f32 %v1338, %v1362
        %v1371 = vmul.f32 %v1363, 1.442695
        %v1372 = vpow.pop %v1371
        %v1373 = vmul.f32 %v1364, 1.442695
        %v1374 = vpow.pop %v1373
        %v1375 = vmul.f32 %v1365, 1.442695
        %v1376 = vpow.pop %v1375
        %v1377 = vmul.f32 %v1366, 1.442695
        %v1378 = vpow.pop %v1377
        %v1379 = vmul.f32 %v1367, 1.442695
        %v1380 = vpow.pop %v1379
        %v1381 = vmul.f32 %v1368, 1.442695
        %v1382 = vpow.pop %v1381
        %v1383 = vmul.f32 %v1369, 1.442695
        %v1384 = vpow.pop %v1383
        %v1385 = vmul.f32 %v1370, 1.442695
        %v1386 = vpow.pop %v1385
        %v1387 = vsel %vm604, %v1372, 0.0
        %1388 = vadd.xlane.f32.xlu0 %v1387
        %v1389 = vpop.xlane.xlu0 %1388
        %v1390 = vsel %vm604, %v1374, 0.0
        %1391 = vadd.xlane.f32.xlu0 %v1390
        %v1392 = vpop.xlane.xlu0 %1391
        %v1393 = vsel %vm604, %v1376, 0.0
        %1394 = vadd.xlane.f32.xlu0 %v1393
        %v1395 = vpop.xlane.xlu0 %1394
        %v1396 = vsel %vm604, %v1378, 0.0
        %1397 = vadd.xlane.f32.xlu0 %v1396
        %v1398 = vpop.xlane.xlu0 %1397
        %v1399 = vsel %vm604, %v1380, 0.0
        %1400 = vadd.xlane.f32.xlu0 %v1399
        %v1401 = vpop.xlane.xlu0 %1400
        %v1402 = vsel %vm604, %v1382, 0.0
        %1403 = vadd.xlane.f32.xlu0 %v1402
        %v1404 = vpop.xlane.xlu0 %1403
        %v1405 = vsel %vm604, %v1384, 0.0
        %1406 = vadd.xlane.f32.xlu0 %v1405
        %v1407 = vpop.xlane.xlu0 %1406
        %v1408 = vsel %vm604, %v1386, 0.0
        %1409 = vadd.xlane.f32.xlu0 %v1408
        %v1410 = vpop.xlane.xlu0 %1409
        %v1411 = vrcp.pop %v1389
        %v1412 = vmul.f32 %v1372, %v1411
        %v1413 = vrcp.pop %v1392
        %v1414 = vmul.f32 %v1374, %v1413
        %v1415 = vrcp.pop %v1395
        %v1416 = vmul.f32 %v1376, %v1415
        %v1417 = vrcp.pop %v1398
        %v1418 = vmul.f32 %v1378, %v1417
        %v1419 = vrcp.pop %v1401
        %v1420 = vmul.f32 %v1380, %v1419
        %v1421 = vrcp.pop %v1404
        %v1422 = vmul.f32 %v1382, %v1421
        %v1423 = vrcp.pop %v1407
        %v1424 = vmul.f32 %v1384, %v1423
        %v1425 = vrcp.pop %v1410
        %v1426 = vmul.f32 %v1386, %v1425
        %v1428 = vsel %vm604, %v1412, 0
        %v1431 = vsel %vm604, %v1414, 0
        %v1434 = vsel %vm604, %v1416, 0
        %v1437 = vsel %vm604, %v1418, 0
        %1439 = vmatprep.subr.mxu0 0.0
        %1440 = vmatpush1.msra.mxu0 %v1064
        %1441 = vmatprep.subr.mxu0 0.0
        %1442 = vmatpush1.msra.mxu0 %v1069
        %1443 = vmatprep.subr.mxu0 0.0
        %1444 = vmatpush1.msra.mxu0 %v1074
        %1445 = vmatprep.subr.mxu0 0.0
        %1446 = vmatpush1.msra.mxu0 %v1079
        %1447 = vmatprep.subr.mxu0 0.0
        %1448 = vmatpush1.msra.mxu0 0.0
        %1449 = vmatprep.subr.mxu0 0.0
        %1450 = vmatpush1.msra.mxu0 0.0
        %1451 = vmatprep.subr.mxu0 0.0
        %1452 = vmatpush1.msra.mxu0 0.0
        %1453 = vmatprep.subr.mxu0 0.0
        %1454 = vmatpush1.msra.mxu0 0.0
        %1455 = vmatprep.subr.mxu0 0.0
        %1456 = vmatpush1.msra.mxu0 0.0
        %1457 = vmatprep.subr.mxu0 0.0
        %1458 = vmatpush1.msra.mxu0 0.0
        %1459 = vmatprep.subr.mxu0 0.0
        %1460 = vmatpush1.msra.mxu0 0.0
        %1461 = vmatprep.subr.mxu0 0.0
        %1462 = vmatpush1.msra.mxu0 0.0
        %1463 = vmatprep.subr.mxu0 0.0
        %1464 = vmatpush1.msra.mxu0 0.0
        %1465 = vmatprep.subr.mxu0 0.0
        %1466 = vmatpush1.msra.mxu0 0.0
        %1467 = vmatprep.subr.mxu0 0.0
        %1468 = vmatpush1.msra.mxu0 0.0
        %1469 = vmatprep.subr.mxu0 0.0
        %1470 = vmatpush1.msra.mxu0 0.0
        %1471 = vmatprep.subr.mxu0 0.0
        %1472 = vmatpush1.msra.mxu0 0.0
        %1473 = vmatprep.subr.mxu0 0.0
        %1474 = vmatpush1.msra.mxu0 0.0
        %1475 = vmatprep.subr.mxu0 0.0
        %1476 = vmatpush1.msra.mxu0 0.0
        %1477 = vmatprep.subr.mxu0 0.0
        %1478 = vmatpush1.msra.mxu0 0.0
        %1479 = vmatprep.subr.mxu0 0.0
        %1480 = vmatpush1.msra.mxu0 0.0
        %1481 = vmatprep.subr.mxu0 0.0
        %1482 = vmatpush1.msra.mxu0 0.0
        %1483 = vmatprep.subr.mxu0 0.0
        %1484 = vmatpush1.msra.mxu0 0.0
        %1485 = vmatprep.subr.mxu0 0.0
        %1486 = vmatpush1.msra.mxu0 0.0
        %1487 = vmatprep.subr.mxu0 0.0
        %1488 = vmatpush1.msra.mxu0 0.0
        %1489 = vmatprep.subr.mxu0 0.0
        %1490 = vmatpush1.msra.mxu0 0.0
        %1491 = vmatprep.subr.mxu0 0.0
        %1492 = vmatpush1.msra.mxu0 0.0
        %1493 = vmatprep.subr.mxu0 0.0
        %1494 = vmatpush1.msra.mxu0 0.0
        %1495 = vmatprep.subr.mxu0 0.0
        %1496 = vmatpush1.msra.mxu0 0.0
        %1497 = vmatprep.subr.mxu0 0.0
        %1498 = vmatpush1.msra.mxu0 0.0
        %1499 = vmatprep.subr.mxu0 0.0
        %1500 = vmatpush1.msra.mxu0 0.0
        %1501 = vmatprep.subr.mxu0 0.0
        %1502 = vmatpush1.msra.mxu0 0.0
        %1503 = vmatprep.mubr.f32.mxu0 0.0
        %1504 = vmatmul.mubr.f32.gmra.mrb[0].mxu0 %v1428
        %v1505 = vpop.f32.mrb[0].mxu0
        %v1506 = vadd.f32 0.0, %v1505
        %v1507 = vpop.f32.mrb[0].mxu0
        %1508 = vmatprep.mubr.f32.mxu0 0.0
        %1509 = vmatmul.mubr.f32.gmra.mrb[0].mxu0 %v1431
        %v1510 = vpop.f32.mrb[0].mxu0
        %v1511 = vadd.f32 0.0, %v1510
        %v1512 = vpop.f32.mrb[0].mxu0
        %1513 = vmatprep.mubr.f32.mxu0 0.0
        %1514 = vmatmul.mubr.f32.gmra.mrb[0].mxu0 %v1434
        %v1515 = vpop.f32.mrb[0].mxu0
        %v1516 = vadd.f32 0.0, %v1515
        %v1517 = vpop.f32.mrb[0].mxu0
        %1518 = vmatprep.mubr.f32.mxu0 0.0
        %1519 = vmatmul.mubr.f32.gmra.mrb[0].mxu0 %v1437
        %v1520 = vpop.f32.mrb[0].mxu0
        %v1521 = vadd.f32 0.0, %v1520
        %v1522 = vpop.f32.mrb[0].mxu0
        %1523 = vdwg.mxu0
        %v1525 = vsel %vm604, %v1420, 0
        %v1528 = vsel %vm604, %v1422, 0
        %v1531 = vsel %vm604, %v1424, 0
        %v1534 = vsel %vm604, %v1426, 0
        %1536 = vmatprep.subr.mxu0 0.0
        %1537 = vmatpush1.msra.mxu0 %v1084
        %1538 = vmatprep.subr.mxu0 0.0
        %1539 = vmatpush1.msra.mxu0 %v1089
        %1540 = vmatprep.subr.mxu0 0.0
        %1541 = vmatpush1.msra.mxu0 %v1094
        %1542 = vmatprep.subr.mxu0 0.0
        %1543 = vmatpush1.msra.mxu0 %v1099
        %1544 = vmatprep.subr.mxu0 0.0
        %1545 = vmatpush1.msra.mxu0 0.0
        %1546 = vmatprep.subr.mxu0 0.0
        %1547 = vmatpush1.msra.mxu0 0.0
        %1548 = vmatprep.subr.mxu0 0.0
        %1549 = vmatpush1.msra.mxu0 0.0
        %1550 = vmatprep.subr.mxu0 0.0
        %1551 = vmatpush1.msra.mxu0 0.0
        %1552 = vmatprep.subr.mxu0 0.0
        %1553 = vmatpush1.msra.mxu0 0.0
        %1554 = vmatprep.subr.mxu0 0.0
        %1555 = vmatpush1.msra.mxu0 0.0
        %1556 = vmatprep.subr.mxu0 0.0
        %1557 = vmatpush1.msra.mxu0 0.0
        %1558 = vmatprep.subr.mxu0 0.0
        %1559 = vmatpush1.msra.mxu0 0.0
        %1560 = vmatprep.subr.mxu0 0.0
        %1561 = vmatpush1.msra.mxu0 0.0
        %1562 = vmatprep.subr.mxu0 0.0
        %1563 = vmatpush1.msra.mxu0 0.0
        %1564 = vmatprep.subr.mxu0 0.0
        %1565 = vmatpush1.msra.mxu0 0.0
        %1566 = vmatprep.subr.mxu0 0.0
        %1567 = vmatpush1.msra.mxu0 0.0
        %1568 = vmatprep.subr.mxu0 0.0
        %1569 = vmatpush1.msra.mxu0 0.0
        %1570 = vmatprep.subr.mxu0 0.0
        %1571 = vmatpush1.msra.mxu0 0.0
        %1572 = vmatprep.subr.mxu0 0.0
        %1573 = vmatpush1.msra.mxu0 0.0
        %1574 = vmatprep.subr.mxu0 0.0
        %1575 = vmatpush1.msra.mxu0 0.0
        %1576 = vmatprep.subr.mxu0 0.0
        %1577 = vmatpush1.msra.mxu0 0.0
        %1578 = vmatprep.subr.mxu0 0.0
        %1579 = vmatpush1.msra.mxu0 0.0
        %1580 = vmatprep.subr.mxu0 0.0
        %1581 = vmatpush1.msra.mxu0 0.0
        %1582 = vmatprep.subr.mxu0 0.0
        %1583 = vmatpush1.msra.mxu0 0.0
        %1584 = vmatprep.subr.mxu0 0.0
        %1585 = vmatpush1.msra.mxu0 0.0
        %1586 = vmatprep.subr.mxu0 0.0
        %1587 = vmatpush1.msra.mxu0 0.0
        %1588 = vmatprep.subr.mxu0 0.0
        %1589 = vmatpush1.msra.mxu0 0.0
        %1590 = vmatprep.subr.mxu0 0.0
        %1591 = vmatpush1.msra.mxu0 0.0
        %1592 = vmatprep.subr.mxu0 0.0
        %1593 = vmatpush1.msra.mxu0 0.0
        %1594 = vmatprep.subr.mxu0 0.0
        %1595 = vmatpush1.msra.mxu0 0.0
        %1596 = vmatprep.subr.mxu0 0.0
        %1597 = vmatpush1.msra.mxu0 0.0
        %1598 = vmatprep.subr.mxu0 0.0
        %1599 = vmatpush1.msra.mxu0 0.0
        %1600 = vmatprep.mubr.f32.mxu0 0.0
        %1601 = vmatmul.mubr.f32.gmra.mrb[0].mxu0 %v1525
        %v1602 = vpop.f32.mrb[0].mxu0
        %v1603 = vadd.f32 0.0, %v1602
        %v1604 = vpop.f32.mrb[0].mxu0
        %1605 = vmatprep.mubr.f32.mxu0 0.0
        %1606 = vmatmul.mubr.f32.gmra.mrb[0].mxu0 %v1528
        %v1607 = vpop.f32.mrb[0].mxu0
        %v1608 = vadd.f32 0.0, %v1607
        %v1609 = vpop.f32.mrb[0].mxu0
        %1610 = vmatprep.mubr.f32.mxu0 0.0
        %1611 = vmatmul.mubr.f32.gmra.mrb[0].mxu0 %v1531
        %v1612 = vpop.f32.mrb[0].mxu0
        %v1613 = vadd.f32 0.0, %v1612
        %v1614 = vpop.f32.mrb[0].mxu0
        %1615 = vmatprep.mubr.f32.mxu0 0.0
        %1616 = vmatmul.mubr.f32.gmra.mrb[0].mxu0 %v1534
        %v1617 = vpop.f32.mrb[0].mxu0
        %v1618 = vadd.f32 0.0, %v1617
        %v1619 = vpop.f32.mrb[0].mxu0
        %1620 = vdwg.mxu0
        %v1621 = vld [vmem:[%s415] sm:$0xff]
        %s1622 = scalar_lea.vmem %s410, 32
        %v1623 = vld [vmem:[%s1622] sm:$0xff]
        %v1624 = vld [vmem:[%s1622 + $0x8] sm:$0xff]
        %v1625 = vld [vmem:[%s1622 + $0x10] sm:$0xff]
        %v1626 = vld [vmem:[%s1622 + $0x18] sm:$0xff]
        %s1627 = scalar_lea.vmem %s410, 160
        %v1628 = vld [vmem:[%s1627] sm:$0xff]
        %v1629 = vld [vmem:[%s1627 + $0x8] sm:$0xff]
        %v1630 = vld [vmem:[%s1627 + $0x10] sm:$0xff]
        %v1631 = vld [vmem:[%s1627 + $0x18] sm:$0xff]
        %s1632 = scalar_lea.vmem %s410, 288
        %v1633 = vld [vmem:[%s1632] sm:$0xff]
        %v1634 = vld [vmem:[%s1632 + $0x8] sm:$0xff]
        %v1635 = vld [vmem:[%s1632 + $0x10] sm:$0xff]
        %v1636 = vld [vmem:[%s1632 + $0x18] sm:$0xff]
        %v1637 = vlaneseq
        %v1638 = vshrl.u32 %v1637, 7
        %v1639 = vsub.s32 3, %v1638
        %v1640 = vrot.slane %v601, %v1639
        %1641 = vmatprep.subr.mxu0 0.0
        %1642 = vmatpush1.msra.mxu0 %v1623
        %1643 = vmatprep.subr.mxu0 0.0
        %1644 = vmatpush1.msra.mxu0 %v1624
        %1645 = vmatprep.subr.mxu0 0.0
        %1646 = vmatpush1.msra.mxu0 %v1625
        %1647 = vmatprep.subr.mxu0 0.0
        %1648 = vmatpush1.msra.mxu0 %v1626
        %1649 = vmatprep.subr.mxu0 0.0
        %1650 = vmatpush1.msra.mxu0 0.0
        %1651 = vmatprep.subr.mxu0 0.0
        %1652 = vmatpush1.msra.mxu0 0.0
        %1653 = vmatprep.subr.mxu0 0.0
        %1654 = vmatpush1.msra.mxu0 0.0
        %1655 = vmatprep.subr.mxu0 0.0
        %1656 = vmatpush1.msra.mxu0 0.0
        %1657 = vmatprep.subr.mxu0 0.0
        %1658 = vmatpush1.msra.mxu0 0.0
        %1659 = vmatprep.subr.mxu0 0.0
        %1660 = vmatpush1.msra.mxu0 0.0
        %1661 = vmatprep.subr.mxu0 0.0
        %1662 = vmatpush1.msra.mxu0 0.0
        %1663 = vmatprep.subr.mxu0 0.0
        %1664 = vmatpush1.msra.mxu0 0.0
        %1665 = vmatprep.subr.mxu0 0.0
        %1666 = vmatpush1.msra.mxu0 0.0
        %1667 = vmatprep.subr.mxu0 0.0
        %1668 = vmatpush1.msra.mxu0 0.0
        %1669 = vmatprep.subr.mxu0 0.0
        %1670 = vmatpush1.msra.mxu0 0.0
        %1671 = vmatprep.subr.mxu0 0.0
        %1672 = vmatpush1.msra.mxu0 0.0
        %1673 = vmatprep.subr.mxu0 0.0
        %1674 = vmatpush1.msra.mxu0 0.0
        %1675 = vmatprep.subr.mxu0 0.0
        %1676 = vmatpush1.msra.mxu0 0.0
        %1677 = vmatprep.subr.mxu0 0.0
        %1678 = vmatpush1.msra.mxu0 0.0
        %1679 = vmatprep.subr.mxu0 0.0
        %1680 = vmatpush1.msra.mxu0 0.0
        %1681 = vmatprep.subr.mxu0 0.0
        %1682 = vmatpush1.msra.mxu0 0.0
        %1683 = vmatprep.subr.mxu0 0.0
        %1684 = vmatpush1.msra.mxu0 0.0
        %1685 = vmatprep.subr.mxu0 0.0
        %1686 = vmatpush1.msra.mxu0 0.0
        %1687 = vmatprep.subr.mxu0 0.0
        %1688 = vmatpush1.msra.mxu0 0.0
        %1689 = vmatprep.subr.mxu0 0.0
        %1690 = vmatpush1.msra.mxu0 0.0
        %1691 = vmatprep.subr.mxu0 0.0
        %1692 = vmatpush1.msra.mxu0 0.0
        %1693 = vmatprep.subr.mxu0 0.0
        %1694 = vmatpush1.msra.mxu0 0.0
        %1695 = vmatprep.subr.mxu0 0.0
        %1696 = vmatpush1.msra.mxu0 0.0
        %1697 = vmatprep.subr.mxu0 0.0
        %1698 = vmatpush1.msra.mxu0 0.0
        %1699 = vmatprep.subr.mxu0 0.0
        %1700 = vmatpush1.msra.mxu0 0.0
        %1701 = vmatprep.subr.mxu0 0.0
        %1702 = vmatpush1.msra.mxu0 0.0
        %1703 = vmatprep.subr.mxu0 0.0
        %1704 = vmatpush1.msra.mxu0 0.0
        %1705 = vmatprep.mubr.f32.mxu0 0.0
        %1706 = vmatmul.mubr.f32.gmra.mrb[0].mxu0 %v756
        %v1707 = vpop.f32.mrb[0].mxu0
        %v1708 = vadd.f32 %v1640, %v1707
        %v1709 = vpop.f32.mrb[0].mxu0
        %1710 = vmatprep.mubr.f32.mxu0 0.0
        %1711 = vmatmul.mubr.f32.gmra.mrb[0].mxu0 %v759
        %v1712 = vpop.f32.mrb[0].mxu0
        %v1713 = vadd.f32 %v1640, %v1712
        %v1714 = vpop.f32.mrb[0].mxu0
        %1715 = vmatprep.mubr.f32.mxu0 0.0
        %1716 = vmatmul.mubr.f32.gmra.mrb[0].mxu0 %v762
        %v1717 = vpop.f32.mrb[0].mxu0
        %v1718 = vadd.f32 %v1640, %v1717
        %v1719 = vpop.f32.mrb[0].mxu0
        %1720 = vmatprep.mubr.f32.mxu0 0.0
        %1721 = vmatmul.mubr.f32.gmra.mrb[0].mxu0 %v765
        %v1722 = vpop.f32.mrb[0].mxu0
        %v1723 = vadd.f32 %v1640, %v1722
        %v1724 = vpop.f32.mrb[0].mxu0
        %1725 = vmatprep.mubr.f32.mxu0 0.0
        %1726 = vmatmul.mubr.f32.gmra.mrb[0].mxu0 %v768
        %v1727 = vpop.f32.mrb[0].mxu0
        %v1728 = vadd.f32 %v1640, %v1727
        %v1729 = vpop.f32.mrb[0].mxu0
        %1730 = vmatprep.mubr.f32.mxu0 0.0
        %1731 = vmatmul.mubr.f32.gmra.mrb[0].mxu0 %v771
        %v1732 = vpop.f32.mrb[0].mxu0
        %v1733 = vadd.f32 %v1640, %v1732
        %v1734 = vpop.f32.mrb[0].mxu0
        %1735 = vmatprep.mubr.f32.mxu0 0.0
        %1736 = vmatmul.mubr.f32.gmra.mrb[0].mxu0 %v774
        %v1737 = vpop.f32.mrb[0].mxu0
        %v1738 = vadd.f32 %v1640, %v1737
        %v1739 = vpop.f32.mrb[0].mxu0
        %1740 = vmatprep.mubr.f32.mxu0 0.0
        %1741 = vmatmul.mubr.f32.gmra.mrb[0].mxu0 %v777
        %v1742 = vpop.f32.mrb[0].mxu0
        %v1743 = vadd.f32 %v1640, %v1742
        %v1744 = vpop.f32.mrb[0].mxu0
        %1745 = vdwg.mxu0
        %v1746 = vlaneseq
        %v1747 = vshrl.u32 %v1746, 7
        %v1748 = vsub.s32 7, %v1747
        %v1749 = vrot.slane %v601, %v1748
        %1750 = vmatprep.subr.mxu0 0.0
        %1751 = vmatpush1.msra.mxu0 %v1628
        %1752 = vmatprep.subr.mxu0 0.0
        %1753 = vmatpush1.msra.mxu0 %v1629
        %1754 = vmatprep.subr.mxu0 0.0
        %1755 = vmatpush1.msra.mxu0 %v1630
        %1756 = vmatprep.subr.mxu0 0.0
        %1757 = vmatpush1.msra.mxu0 %v1631
        %1758 = vmatprep.subr.mxu0 0.0
        %1759 = vmatpush1.msra.mxu0 0.0
        %1760 = vmatprep.subr.mxu0 0.0
        %1761 = vmatpush1.msra.mxu0 0.0
        %1762 = vmatprep.subr.mxu0 0.0
        %1763 = vmatpush1.msra.mxu0 0.0
        %1764 = vmatprep.subr.mxu0 0.0
        %1765 = vmatpush1.msra.mxu0 0.0
        %1766 = vmatprep.subr.mxu0 0.0
        %1767 = vmatpush1.msra.mxu0 0.0
        %1768 = vmatprep.subr.mxu0 0.0
        %1769 = vmatpush1.msra.mxu0 0.0
        %1770 = vmatprep.subr.mxu0 0.0
        %1771 = vmatpush1.msra.mxu0 0.0
        %1772 = vmatprep.subr.mxu0 0.0
        %1773 = vmatpush1.msra.mxu0 0.0
        %1774 = vmatprep.subr.mxu0 0.0
        %1775 = vmatpush1.msra.mxu0 0.0
        %1776 = vmatprep.subr.mxu0 0.0
        %1777 = vmatpush1.msra.mxu0 0.0
        %1778 = vmatprep.subr.mxu0 0.0
        %1779 = vmatpush1.msra.mxu0 0.0
        %1780 = vmatprep.subr.mxu0 0.0
        %1781 = vmatpush1.msra.mxu0 0.0
        %1782 = vmatprep.subr.mxu0 0.0
        %1783 = vmatpush1.msra.mxu0 0.0
        %1784 = vmatprep.subr.mxu0 0.0
        %1785 = vmatpush1.msra.mxu0 0.0
        %1786 = vmatprep.subr.mxu0 0.0
        %1787 = vmatpush1.msra.mxu0 0.0
        %1788 = vmatprep.subr.mxu0 0.0
        %1789 = vmatpush1.msra.mxu0 0.0
        %1790 = vmatprep.subr.mxu0 0.0
        %1791 = vmatpush1.msra.mxu0 0.0
        %1792 = vmatprep.subr.mxu0 0.0
        %1793 = vmatpush1.msra.mxu0 0.0
        %1794 = vmatprep.subr.mxu0 0.0
        %1795 = vmatpush1.msra.mxu0 0.0
        %1796 = vmatprep.subr.mxu0 0.0
        %1797 = vmatpush1.msra.mxu0 0.0
        %1798 = vmatprep.subr.mxu0 0.0
        %1799 = vmatpush1.msra.mxu0 0.0
        %1800 = vmatprep.subr.mxu0 0.0
        %1801 = vmatpush1.msra.mxu0 0.0
        %1802 = vmatprep.subr.mxu0 0.0
        %1803 = vmatpush1.msra.mxu0 0.0
        %1804 = vmatprep.subr.mxu0 0.0
        %1805 = vmatpush1.msra.mxu0 0.0
        %1806 = vmatprep.subr.mxu0 0.0
        %1807 = vmatpush1.msra.mxu0 0.0
        %1808 = vmatprep.subr.mxu0 0.0
        %1809 = vmatpush1.msra.mxu0 0.0
        %1810 = vmatprep.subr.mxu0 0.0
        %1811 = vmatpush1.msra.mxu0 0.0
        %1812 = vmatprep.subr.mxu0 0.0
        %1813 = vmatpush1.msra.mxu0 0.0
        %1814 = vmatprep.mubr.f32.mxu0 0.0
        %1815 = vmatmul.mubr.f32.gmra.mrb[0].mxu0 %v756
        %v1816 = vpop.f32.mrb[0].mxu0
        %v1817 = vadd.f32 %v1749, %v1816
        %v1818 = vpop.f32.mrb[0].mxu0
        %1819 = vmatprep.mubr.f32.mxu0 0.0
        %1820 = vmatmul.mubr.f32.gmra.mrb[0].mxu0 %v759
        %v1821 = vpop.f32.mrb[0].mxu0
        %v1822 = vadd.f32 %v1749, %v1821
        %v1823 = vpop.f32.mrb[0].mxu0
        %1824 = vmatprep.mubr.f32.mxu0 0.0
        %1825 = vmatmul.mubr.f32.gmra.mrb[0].mxu0 %v762
        %v1826 = vpop.f32.mrb[0].mxu0
        %v1827 = vadd.f32 %v1749, %v1826
        %v1828 = vpop.f32.mrb[0].mxu0
        %1829 = vmatprep.mubr.f32.mxu0 0.0
        %1830 = vmatmul.mubr.f32.gmra.mrb[0].mxu0 %v765
        %v1831 = vpop.f32.mrb[0].mxu0
        %v1832 = vadd.f32 %v1749, %v1831
        %v1833 = vpop.f32.mrb[0].mxu0
        %1834 = vmatprep.mubr.f32.mxu0 0.0
        %1835 = vmatmul.mubr.f32.gmra.mrb[0].mxu0 %v768
        %v1836 = vpop.f32.mrb[0].mxu0
        %v1837 = vadd.f32 %v1749, %v1836
        %v1838 = vpop.f32.mrb[0].mxu0
        %1839 = vmatprep.mubr.f32.mxu0 0.0
        %1840 = vmatmul.mubr.f32.gmra.mrb[0].mxu0 %v771
        %v1841 = vpop.f32.mrb[0].mxu0
        %v1842 = vadd.f32 %v1749, %v1841
        %v1843 = vpop.f32.mrb[0].mxu0
        %1844 = vmatprep.mubr.f32.mxu0 0.0
        %1845 = vmatmul.mubr.f32.gmra.mrb[0].mxu0 %v774
        %v1846 = vpop.f32.mrb[0].mxu0
        %v1847 = vadd.f32 %v1749, %v1846
        %v1848 = vpop.f32.mrb[0].mxu0
        %1849 = vmatprep.mubr.f32.mxu0 0.0
        %1850 = vmatmul.mubr.f32.gmra.mrb[0].mxu0 %v777
        %v1851 = vpop.f32.mrb[0].mxu0
        %v1852 = vadd.f32 %v1749, %v1851
        %v1853 = vpop.f32.mrb[0].mxu0
        %1854 = vdwg.mxu0
        %v1855 = vlaneseq
        %v1856 = vshrl.u32 %v1855, 7
        %v1857 = vsub.s32 3, %v1856
        %v1858 = vrot.slane %v602, %v1857
        %1859 = vmatprep.subr.mxu0 0.0
        %1860 = vmatpush1.msra.mxu0 %v1633
        %1861 = vmatprep.subr.mxu0 0.0
        %1862 = vmatpush1.msra.mxu0 %v1634
        %1863 = vmatprep.subr.mxu0 0.0
        %1864 = vmatpush1.msra.mxu0 %v1635
        %1865 = vmatprep.subr.mxu0 0.0
        %1866 = vmatpush1.msra.mxu0 %v1636
        %1867 = vmatprep.subr.mxu0 0.0
        %1868 = vmatpush1.msra.mxu0 0.0
        %1869 = vmatprep.subr.mxu0 0.0
        %1870 = vmatpush1.msra.mxu0 0.0
        %1871 = vmatprep.subr.mxu0 0.0
        %1872 = vmatpush1.msra.mxu0 0.0
        %1873 = vmatprep.subr.mxu0 0.0
        %1874 = vmatpush1.msra.mxu0 0.0
        %1875 = vmatprep.subr.mxu0 0.0
        %1876 = vmatpush1.msra.mxu0 0.0
        %1877 = vmatprep.subr.mxu0 0.0
        %1878 = vmatpush1.msra.mxu0 0.0
        %1879 = vmatprep.subr.mxu0 0.0
        %1880 = vmatpush1.msra.mxu0 0.0
        %1881 = vmatprep.subr.mxu0 0.0
        %1882 = vmatpush1.msra.mxu0 0.0
        %1883 = vmatprep.subr.mxu0 0.0
        %1884 = vmatpush1.msra.mxu0 0.0
        %1885 = vmatprep.subr.mxu0 0.0
        %1886 = vmatpush1.msra.mxu0 0.0
        %1887 = vmatprep.subr.mxu0 0.0
        %1888 = vmatpush1.msra.mxu0 0.0
        %1889 = vmatprep.subr.mxu0 0.0
        %1890 = vmatpush1.msra.mxu0 0.0
        %1891 = vmatprep.subr.mxu0 0.0
        %1892 = vmatpush1.msra.mxu0 0.0
        %1893 = vmatprep.subr.mxu0 0.0
        %1894 = vmatpush1.msra.mxu0 0.0
        %1895 = vmatprep.subr.mxu0 0.0
        %1896 = vmatpush1.msra.mxu0 0.0
        %1897 = vmatprep.subr.mxu0 0.0
        %1898 = vmatpush1.msra.mxu0 0.0
        %1899 = vmatprep.subr.mxu0 0.0
        %1900 = vmatpush1.msra.mxu0 0.0
        %1901 = vmatprep.subr.mxu0 0.0
        %1902 = vmatpush1.msra.mxu0 0.0
        %1903 = vmatprep.subr.mxu0 0.0
        %1904 = vmatpush1.msra.mxu0 0.0
        %1905 = vmatprep.subr.mxu0 0.0
        %1906 = vmatpush1.msra.mxu0 0.0
        %1907 = vmatprep.subr.mxu0 0.0
        %1908 = vmatpush1.msra.mxu0 0.0
        %1909 = vmatprep.subr.mxu0 0.0
        %1910 = vmatpush1.msra.mxu0 0.0
        %1911 = vmatprep.subr.mxu0 0.0
        %1912 = vmatpush1.msra.mxu0 0.0
        %1913 = vmatprep.subr.mxu0 0.0
        %1914 = vmatpush1.msra.mxu0 0.0
        %1915 = vmatprep.subr.mxu0 0.0
        %1916 = vmatpush1.msra.mxu0 0.0
        %1917 = vmatprep.subr.mxu0 0.0
        %1918 = vmatpush1.msra.mxu0 0.0
        %1919 = vmatprep.subr.mxu0 0.0
        %1920 = vmatpush1.msra.mxu0 0.0
        %1921 = vmatprep.subr.mxu0 0.0
        %1922 = vmatpush1.msra.mxu0 0.0
        %1923 = vmatprep.mubr.f32.mxu0 0.0
        %1924 = vmatmul.mubr.f32.gmra.mrb[0].mxu0 %v756
        %v1925 = vpop.f32.mrb[0].mxu0
        %v1926 = vadd.f32 %v1858, %v1925
        %v1927 = vpop.f32.mrb[0].mxu0
        %1928 = vmatprep.mubr.f32.mxu0 0.0
        %1929 = vmatmul.mubr.f32.gmra.mrb[0].mxu0 %v759
        %v1930 = vpop.f32.mrb[0].mxu0
        %v1931 = vadd.f32 %v1858, %v1930
        %v1932 = vpop.f32.mrb[0].mxu0
        %1933 = vmatprep.mubr.f32.mxu0 0.0
        %1934 = vmatmul.mubr.f32.gmra.mrb[0].mxu0 %v762
        %v1935 = vpop.f32.mrb[0].mxu0
        %v1936 = vadd.f32 %v1858, %v1935
        %v1937 = vpop.f32.mrb[0].mxu0
        %1938 = vmatprep.mubr.f32.mxu0 0.0
        %1939 = vmatmul.mubr.f32.gmra.mrb[0].mxu0 %v765
        %v1940 = vpop.f32.mrb[0].mxu0
        %v1941 = vadd.f32 %v1858, %v1940
        %v1942 = vpop.f32.mrb[0].mxu0
        %1943 = vmatprep.mubr.f32.mxu0 0.0
        %1944 = vmatmul.mubr.f32.gmra.mrb[0].mxu0 %v768
        %v1945 = vpop.f32.mrb[0].mxu0
        %v1946 = vadd.f32 %v1858, %v1945
        %v1947 = vpop.f32.mrb[0].mxu0
        %1948 = vmatprep.mubr.f32.mxu0 0.0
        %1949 = vmatmul.mubr.f32.gmra.mrb[0].mxu0 %v771
        %v1950 = vpop.f32.mrb[0].mxu0
        %v1951 = vadd.f32 %v1858, %v1950
        %v1952 = vpop.f32.mrb[0].mxu0
        %1953 = vmatprep.mubr.f32.mxu0 0.0
        %1954 = vmatmul.mubr.f32.gmra.mrb[0].mxu0 %v774
        %v1955 = vpop.f32.mrb[0].mxu0
        %v1956 = vadd.f32 %v1858, %v1955
        %v1957 = vpop.f32.mrb[0].mxu0
        %1958 = vmatprep.mubr.f32.mxu0 0.0
        %1959 = vmatmul.mubr.f32.gmra.mrb[0].mxu0 %v777
        %v1960 = vpop.f32.mrb[0].mxu0
        %v1961 = vadd.f32 %v1858, %v1960
        %v1962 = vpop.f32.mrb[0].mxu0
        %1963 = vdwg.mxu0
        %v1965 = vsel %vm1102, %v1708, 0
        %v1968 = vsel %vm1102, %v1713, 0
        %v1971 = vsel %vm1102, %v1718, 0
        %v1974 = vsel %vm1102, %v1723, 0
        %v1977 = vsel %vm1102, %v1817, 0
        %v1980 = vsel %vm1102, %v1822, 0
        %v1983 = vsel %vm1102, %v1827, 0
        %v1986 = vsel %vm1102, %v1832, 0
        %1988 = vmatprep.subr.mxu0 0.0
        %1989 = vmatpush1.xpose.msra.mxu0 %v1977
        %1990 = vmatprep.subr.mxu0 0.0
        %1991 = vmatpush1.xpose.msra.mxu0 %v1980
        %1992 = vmatprep.subr.mxu0 0.0
        %1993 = vmatpush1.xpose.msra.mxu0 %v1983
        %1994 = vmatprep.subr.mxu0 0.0
        %1995 = vmatpush1.xpose.msra.mxu0 %v1986
        %1996 = vmatprep.subr.mxu0 0.0
        %1997 = vmatpush1.xpose.msra.mxu0 0.0
        %1998 = vmatprep.subr.mxu0 0.0
        %1999 = vmatpush1.xpose.msra.mxu0 0.0
        %2000 = vmatprep.subr.mxu0 0.0
        %2001 = vmatpush1.xpose.msra.mxu0 0.0
        %2002 = vmatprep.subr.mxu0 0.0
        %2003 = vmatpush1.xpose.msra.mxu0 0.0
        %2004 = vmatprep.subr.mxu0 0.0
        %2005 = vmatpush1.xpose.msra.mxu0 0.0
        %2006 = vmatprep.subr.mxu0 0.0
        %2007 = vmatpush1.xpose.msra.mxu0 0.0
        %2008 = vmatprep.subr.mxu0 0.0
        %2009 = vmatpush1.xpose.msra.mxu0 0.0
        %2010 = vmatprep.subr.mxu0 0.0
        %2011 = vmatpush1.xpose.msra.mxu0 0.0
        %2012 = vmatprep.subr.mxu0 0.0
        %2013 = vmatpush1.xpose.msra.mxu0 0.0
        %2014 = vmatprep.subr.mxu0 0.0
        %2015 = vmatpush1.xpose.msra.mxu0 0.0
        %2016 = vmatprep.subr.mxu0 0.0
        %2017 = vmatpush1.xpose.msra.mxu0 0.0
        %2018 = vmatprep.subr.mxu0 0.0
        %2019 = vmatpush1.xpose.msra.mxu0 0.0
        %2020 = vmatprep.subr.mxu0 0.0
        %2021 = vmatpush1.xpose.msra.mxu0 0.0
        %2022 = vmatprep.subr.mxu0 0.0
        %2023 = vmatpush1.xpose.msra.mxu0 0.0
        %2024 = vmatprep.subr.mxu0 0.0
        %2025 = vmatpush1.xpose.msra.mxu0 0.0
        %2026 = vmatprep.subr.mxu0 0.0
        %2027 = vmatpush1.xpose.msra.mxu0 0.0
        %2028 = vmatprep.subr.mxu0 0.0
        %2029 = vmatpush1.xpose.msra.mxu0 0.0
        %2030 = vmatprep.subr.mxu0 0.0
        %2031 = vmatpush1.xpose.msra.mxu0 0.0
        %2032 = vmatprep.subr.mxu0 0.0
        %2033 = vmatpush1.xpose.msra.mxu0 0.0
        %2034 = vmatprep.subr.mxu0 0.0
        %2035 = vmatpush1.xpose.msra.mxu0 0.0
        %2036 = vmatprep.subr.mxu0 0.0
        %2037 = vmatpush1.xpose.msra.mxu0 0.0
        %2038 = vmatprep.subr.mxu0 0.0
        %2039 = vmatpush1.xpose.msra.mxu0 0.0
        %2040 = vmatprep.subr.mxu0 0.0
        %2041 = vmatpush1.xpose.msra.mxu0 0.0
        %2042 = vmatprep.subr.mxu0 0.0
        %2043 = vmatpush1.xpose.msra.mxu0 0.0
        %2044 = vmatprep.subr.mxu0 0.0
        %2045 = vmatpush1.xpose.msra.mxu0 0.0
        %2046 = vmatprep.subr.mxu0 0.0
        %2047 = vmatpush1.xpose.msra.mxu0 0.0
        %2048 = vmatprep.subr.mxu0 0.0
        %2049 = vmatpush1.xpose.msra.mxu0 0.0
        %2050 = vmatprep.subr.mxu0 0.0
        %2051 = vmatpush1.xpose.msra.mxu0 0.0
        %2052 = vmatprep.mubr.f32.mxu0 0.0
        %2053 = vmatmul.mubr.f32.gmra.mrb[0].mxu0 %v1965
        %v2054 = vpop.f32.mrb[0].mxu0
        %v2055 = vadd.f32 0.0, %v2054
        %v2056 = vpop.f32.mrb[0].mxu0
        %2057 = vmatprep.mubr.f32.mxu0 0.0
        %2058 = vmatmul.mubr.f32.gmra.mrb[0].mxu0 %v1968
        %v2059 = vpop.f32.mrb[0].mxu0
        %v2060 = vadd.f32 0.0, %v2059
        %v2061 = vpop.f32.mrb[0].mxu0
        %2062 = vmatprep.mubr.f32.mxu0 0.0
        %2063 = vmatmul.mubr.f32.gmra.mrb[0].mxu0 %v1971
        %v2064 = vpop.f32.mrb[0].mxu0
        %v2065 = vadd.f32 0.0, %v2064
        %v2066 = vpop.f32.mrb[0].mxu0
        %2067 = vmatprep.mubr.f32.mxu0 0.0
        %2068 = vmatmul.mubr.f32.gmra.mrb[0].mxu0 %v1974
        %v2069 = vpop.f32.mrb[0].mxu0
        %v2070 = vadd.f32 0.0, %v2069
        %v2071 = vpop.f32.mrb[0].mxu0
        %2072 = vdwg.mxu0
        %v2074 = vsel %vm1102, %v1728, 0
        %v2077 = vsel %vm1102, %v1733, 0
        %v2080 = vsel %vm1102, %v1738, 0
        %v2083 = vsel %vm1102, %v1743, 0
        %v2086 = vsel %vm1102, %v1837, 0
        %v2089 = vsel %vm1102, %v1842, 0
        %v2092 = vsel %vm1102, %v1847, 0
        %v2095 = vsel %vm1102, %v1852, 0
        %2097 = vmatprep.subr.mxu0 0.0
        %2098 = vmatpush1.xpose.msra.mxu0 %v2086
        %2099 = vmatprep.subr.mxu0 0.0
        %2100 = vmatpush1.xpose.msra.mxu0 %v2089
        %2101 = vmatprep.subr.mxu0 0.0
        %2102 = vmatpush1.xpose.msra.mxu0 %v2092
        %2103 = vmatprep.subr.mxu0 0.0
        %2104 = vmatpush1.xpose.msra.mxu0 %v2095
        %2105 = vmatprep.subr.mxu0 0.0
        %2106 = vmatpush1.xpose.msra.mxu0 0.0
        %2107 = vmatprep.subr.mxu0 0.0
        %2108 = vmatpush1.xpose.msra.mxu0 0.0
        %2109 = vmatprep.subr.mxu0 0.0
        %2110 = vmatpush1.xpose.msra.mxu0 0.0
        %2111 = vmatprep.subr.mxu0 0.0
        %2112 = vmatpush1.xpose.msra.mxu0 0.0
        %2113 = vmatprep.subr.mxu0 0.0
        %2114 = vmatpush1.xpose.msra.mxu0 0.0
        %2115 = vmatprep.subr.mxu0 0.0
        %2116 = vmatpush1.xpose.msra.mxu0 0.0
        %2117 = vmatprep.subr.mxu0 0.0
        %2118 = vmatpush1.xpose.msra.mxu0 0.0
        %2119 = vmatprep.subr.mxu0 0.0
        %2120 = vmatpush1.xpose.msra.mxu0 0.0
        %2121 = vmatprep.subr.mxu0 0.0
        %2122 = vmatpush1.xpose.msra.mxu0 0.0
        %2123 = vmatprep.subr.mxu0 0.0
        %2124 = vmatpush1.xpose.msra.mxu0 0.0
        %2125 = vmatprep.subr.mxu0 0.0
        %2126 = vmatpush1.xpose.msra.mxu0 0.0
        %2127 = vmatprep.subr.mxu0 0.0
        %2128 = vmatpush1.xpose.msra.mxu0 0.0
        %2129 = vmatprep.subr.mxu0 0.0
        %2130 = vmatpush1.xpose.msra.mxu0 0.0
        %2131 = vmatprep.subr.mxu0 0.0
        %2132 = vmatpush1.xpose.msra.mxu0 0.0
        %2133 = vmatprep.subr.mxu0 0.0
        %2134 = vmatpush1.xpose.msra.mxu0 0.0
        %2135 = vmatprep.subr.mxu0 0.0
        %2136 = vmatpush1.xpose.msra.mxu0 0.0
        %2137 = vmatprep.subr.mxu0 0.0
        %2138 = vmatpush1.xpose.msra.mxu0 0.0
        %2139 = vmatprep.subr.mxu0 0.0
        %2140 = vmatpush1.xpose.msra.mxu0 0.0
        %2141 = vmatprep.subr.mxu0 0.0
        %2142 = vmatpush1.xpose.msra.mxu0 0.0
        %2143 = vmatprep.subr.mxu0 0.0
        %2144 = vmatpush1.xpose.msra.mxu0 0.0
        %2145 = vmatprep.subr.mxu0 0.0
        %2146 = vmatpush1.xpose.msra.mxu0 0.0
        %2147 = vmatprep.subr.mxu0 0.0
        %2148 = vmatpush1.xpose.msra.mxu0 0.0
        %2149 = vmatprep.subr.mxu0 0.0
        %2150 = vmatpush1.xpose.msra.mxu0 0.0
        %2151 = vmatprep.subr.mxu0 0.0
        %2152 = vmatpush1.xpose.msra.mxu0 0.0
        %2153 = vmatprep.subr.mxu0 0.0
        %2154 = vmatpush1.xpose.msra.mxu0 0.0
        %2155 = vmatprep.subr.mxu0 0.0
        %2156 = vmatpush1.xpose.msra.mxu0 0.0
        %2157 = vmatprep.subr.mxu0 0.0
        %2158 = vmatpush1.xpose.msra.mxu0 0.0
        %2159 = vmatprep.subr.mxu0 0.0
        %2160 = vmatpush1.xpose.msra.mxu0 0.0
        %2161 = vmatprep.mubr.f32.mxu0 0.0
        %2162 = vmatmul.mubr.f32.gmra.mrb[0].mxu0 %v2074
        %v2163 = vpop.f32.mrb[0].mxu0
        %v2164 = vadd.f32 0.0, %v2163
        %v2165 = vpop.f32.mrb[0].mxu0
        %2166 = vmatprep.mubr.f32.mxu0 0.0
        %2167 = vmatmul.mubr.f32.gmra.mrb[0].mxu0 %v2077
        %v2168 = vpop.f32.mrb[0].mxu0
        %v2169 = vadd.f32 0.0, %v2168
        %v2170 = vpop.f32.mrb[0].mxu0
        %2171 = vmatprep.mubr.f32.mxu0 0.0
        %2172 = vmatmul.mubr.f32.gmra.mrb[0].mxu0 %v2080
        %v2173 = vpop.f32.mrb[0].mxu0
        %v2174 = vadd.f32 0.0, %v2173
        %v2175 = vpop.f32.mrb[0].mxu0
        %2176 = vmatprep.mubr.f32.mxu0 0.0
        %2177 = vmatmul.mubr.f32.gmra.mrb[0].mxu0 %v2083
        %v2178 = vpop.f32.mrb[0].mxu0
        %v2179 = vadd.f32 0.0, %v2178
        %v2180 = vpop.f32.mrb[0].mxu0
        %2181 = vdwg.mxu0
        %v2182 = vmul.f32 %v2055, 0.35355338
        %v2183 = vmul.f32 %v2060, 0.35355338
        %v2184 = vmul.f32 %v2065, 0.35355338
        %v2185 = vmul.f32 %v2070, 0.35355338
        %v2186 = vmul.f32 %v2164, 0.35355338
        %v2187 = vmul.f32 %v2169, 0.35355338
        %v2188 = vmul.f32 %v2174, 0.35355338
        %v2189 = vmul.f32 %v2179, 0.35355338
        %v2190 = vsel %vm1330, %v2182, -1e+30
        %v2191 = vsel %vm1330, %v2183, -1e+30
        %v2192 = vsel %vm1330, %v2184, -1e+30
        %v2193 = vsel %vm1330, %v2185, -1e+30
        %v2194 = vsel %vm1330, %v2186, -1e+30
        %v2195 = vsel %vm1330, %v2187, -1e+30
        %v2196 = vsel %vm1330, %v2188, -1e+30
        %v2197 = vsel %vm1330, %v2189, -1e+30
        %v2198 = vsel %vm604, %v2190, -inf
        %2199 = vmax.xlane.f32.xlu0 %v2198
        %v2200 = vpop.xlane.xlu0 %2199
        %v2201 = vsel %vm604, %v2191, -inf
        %2202 = vmax.xlane.f32.xlu0 %v2201
        %v2203 = vpop.xlane.xlu0 %2202
        %v2204 = vsel %vm604, %v2192, -inf
        %2205 = vmax.xlane.f32.xlu0 %v2204
        %v2206 = vpop.xlane.xlu0 %2205
        %v2207 = vsel %vm604, %v2193, -inf
        %2208 = vmax.xlane.f32.xlu0 %v2207
        %v2209 = vpop.xlane.xlu0 %2208
        %v2210 = vsel %vm604, %v2194, -inf
        %2211 = vmax.xlane.f32.xlu0 %v2210
        %v2212 = vpop.xlane.xlu0 %2211
        %v2213 = vsel %vm604, %v2195, -inf
        %2214 = vmax.xlane.f32.xlu0 %v2213
        %v2215 = vpop.xlane.xlu0 %2214
        %v2216 = vsel %vm604, %v2196, -inf
        %2217 = vmax.xlane.f32.xlu0 %v2216
        %v2218 = vpop.xlane.xlu0 %2217
        %v2219 = vsel %vm604, %v2197, -inf
        %2220 = vmax.xlane.f32.xlu0 %v2219
        %v2221 = vpop.xlane.xlu0 %2220
        %v2222 = vsub.f32 %v2190, %v2200
        %v2223 = vsub.f32 %v2191, %v2203
        %v2224 = vsub.f32 %v2192, %v2206
        %v2225 = vsub.f32 %v2193, %v2209
        %v2226 = vsub.f32 %v2194, %v2212
        %v2227 = vsub.f32 %v2195, %v2215
        %v2228 = vsub.f32 %v2196, %v2218
        %v2229 = vsub.f32 %v2197, %v2221
        %v2230 = vmul.f32 %v2222, 1.442695
        %v2231 = vpow.pop %v2230
        %v2232 = vmul.f32 %v2223, 1.442695
        %v2233 = vpow.pop %v2232
        %v2234 = vmul.f32 %v2224, 1.442695
        %v2235 = vpow.pop %v2234
        %v2236 = vmul.f32 %v2225, 1.442695
        %v2237 = vpow.pop %v2236
        %v2238 = vmul.f32 %v2226, 1.442695
        %v2239 = vpow.pop %v2238
        %v2240 = vmul.f32 %v2227, 1.442695
        %v2241 = vpow.pop %v2240
        %v2242 = vmul.f32 %v2228, 1.442695
        %v2243 = vpow.pop %v2242
        %v2244 = vmul.f32 %v2229, 1.442695
        %v2245 = vpow.pop %v2244
        %v2246 = vsel %vm604, %v2231, 0.0
        %2247 = vadd.xlane.f32.xlu0 %v2246
        %v2248 = vpop.xlane.xlu0 %2247
        %v2249 = vsel %vm604, %v2233, 0.0
        %2250 = vadd.xlane.f32.xlu0 %v2249
        %v2251 = vpop.xlane.xlu0 %2250
        %v2252 = vsel %vm604, %v2235, 0.0
        %2253 = vadd.xlane.f32.xlu0 %v2252
        %v2254 = vpop.xlane.xlu0 %2253
        %v2255 = vsel %vm604, %v2237, 0.0
        %2256 = vadd.xlane.f32.xlu0 %v2255
        %v2257 = vpop.xlane.xlu0 %2256
        %v2258 = vsel %vm604, %v2239, 0.0
        %2259 = vadd.xlane.f32.xlu0 %v2258
        %v2260 = vpop.xlane.xlu0 %2259
        %v2261 = vsel %vm604, %v2241, 0.0
        %2262 = vadd.xlane.f32.xlu0 %v2261
        %v2263 = vpop.xlane.xlu0 %2262
        %v2264 = vsel %vm604, %v2243, 0.0
        %2265 = vadd.xlane.f32.xlu0 %v2264
        %v2266 = vpop.xlane.xlu0 %2265
        %v2267 = vsel %vm604, %v2245, 0.0
        %2268 = vadd.xlane.f32.xlu0 %v2267
        %v2269 = vpop.xlane.xlu0 %2268
        %v2270 = vrcp.pop %v2248
        %v2271 = vmul.f32 %v2231, %v2270
        %v2272 = vrcp.pop %v2251
        %v2273 = vmul.f32 %v2233, %v2272
        %v2274 = vrcp.pop %v2254
        %v2275 = vmul.f32 %v2235, %v2274
        %v2276 = vrcp.pop %v2257
        %v2277 = vmul.f32 %v2237, %v2276
        %v2278 = vrcp.pop %v2260
        %v2279 = vmul.f32 %v2239, %v2278
        %v2280 = vrcp.pop %v2263
        %v2281 = vmul.f32 %v2241, %v2280
        %v2282 = vrcp.pop %v2266
        %v2283 = vmul.f32 %v2243, %v2282
        %v2284 = vrcp.pop %v2269
        %v2285 = vmul.f32 %v2245, %v2284
        %v2287 = vsel %vm604, %v2271, 0
        %v2290 = vsel %vm604, %v2273, 0
        %v2293 = vsel %vm604, %v2275, 0
        %v2296 = vsel %vm604, %v2277, 0
        %2298 = vmatprep.subr.mxu0 0.0
        %2299 = vmatpush1.msra.mxu0 %v1926
        %2300 = vmatprep.subr.mxu0 0.0
        %2301 = vmatpush1.msra.mxu0 %v1931
        %2302 = vmatprep.subr.mxu0 0.0
        %2303 = vmatpush1.msra.mxu0 %v1936
        %2304 = vmatprep.subr.mxu0 0.0
        %2305 = vmatpush1.msra.mxu0 %v1941
        %2306 = vmatprep.subr.mxu0 0.0
        %2307 = vmatpush1.msra.mxu0 0.0
        %2308 = vmatprep.subr.mxu0 0.0
        %2309 = vmatpush1.msra.mxu0 0.0
        %2310 = vmatprep.subr.mxu0 0.0
        %2311 = vmatpush1.msra.mxu0 0.0
        %2312 = vmatprep.subr.mxu0 0.0
        %2313 = vmatpush1.msra.mxu0 0.0
        %2314 = vmatprep.subr.mxu0 0.0
        %2315 = vmatpush1.msra.mxu0 0.0
        %2316 = vmatprep.subr.mxu0 0.0
        %2317 = vmatpush1.msra.mxu0 0.0
        %2318 = vmatprep.subr.mxu0 0.0
        %2319 = vmatpush1.msra.mxu0 0.0
        %2320 = vmatprep.subr.mxu0 0.0
        %2321 = vmatpush1.msra.mxu0 0.0
        %2322 = vmatprep.subr.mxu0 0.0
        %2323 = vmatpush1.msra.mxu0 0.0
        %2324 = vmatprep.subr.mxu0 0.0
        %2325 = vmatpush1.msra.mxu0 0.0
        %2326 = vmatprep.subr.mxu0 0.0
        %2327 = vmatpush1.msra.mxu0 0.0
        %2328 = vmatprep.subr.mxu0 0.0
        %2329 = vmatpush1.msra.mxu0 0.0
        %2330 = vmatprep.subr.mxu0 0.0
        %2331 = vmatpush1.msra.mxu0 0.0
        %2332 = vmatprep.subr.mxu0 0.0
        %2333 = vmatpush1.msra.mxu0 0.0
        %2334 = vmatprep.subr.mxu0 0.0
        %2335 = vmatpush1.msra.mxu0 0.0
        %2336 = vmatprep.subr.mxu0 0.0
        %2337 = vmatpush1.msra.mxu0 0.0
        %2338 = vmatprep.subr.mxu0 0.0
        %2339 = vmatpush1.msra.mxu0 0.0
        %2340 = vmatprep.subr.mxu0 0.0
        %2341 = vmatpush1.msra.mxu0 0.0
        %2342 = vmatprep.subr.mxu0 0.0
        %2343 = vmatpush1.msra.mxu0 0.0
        %2344 = vmatprep.subr.mxu0 0.0
        %2345 = vmatpush1.msra.mxu0 0.0
        %2346 = vmatprep.subr.mxu0 0.0
        %2347 = vmatpush1.msra.mxu0 0.0
        %2348 = vmatprep.subr.mxu0 0.0
        %2349 = vmatpush1.msra.mxu0 0.0
        %2350 = vmatprep.subr.mxu0 0.0
        %2351 = vmatpush1.msra.mxu0 0.0
        %2352 = vmatprep.subr.mxu0 0.0
        %2353 = vmatpush1.msra.mxu0 0.0
        %2354 = vmatprep.subr.mxu0 0.0
        %2355 = vmatpush1.msra.mxu0 0.0
        %2356 = vmatprep.subr.mxu0 0.0
        %2357 = vmatpush1.msra.mxu0 0.0
        %2358 = vmatprep.subr.mxu0 0.0
        %2359 = vmatpush1.msra.mxu0 0.0
        %2360 = vmatprep.subr.mxu0 0.0
        %2361 = vmatpush1.msra.mxu0 0.0
        %2362 = vmatprep.mubr.f32.mxu0 0.0
        %2363 = vmatmul.mubr.f32.gmra.mrb[0].mxu0 %v2287
        %v2364 = vpop.f32.mrb[0].mxu0
        %v2365 = vadd.f32 0.0, %v2364
        %v2366 = vpop.f32.mrb[0].mxu0
        %2367 = vmatprep.mubr.f32.mxu0 0.0
        %2368 = vmatmul.mubr.f32.gmra.mrb[0].mxu0 %v2290
        %v2369 = vpop.f32.mrb[0].mxu0
        %v2370 = vadd.f32 0.0, %v2369
        %v2371 = vpop.f32.mrb[0].mxu0
        %2372 = vmatprep.mubr.f32.mxu0 0.0
        %2373 = vmatmul.mubr.f32.gmra.mrb[0].mxu0 %v2293
        %v2374 = vpop.f32.mrb[0].mxu0
        %v2375 = vadd.f32 0.0, %v2374
        %v2376 = vpop.f32.mrb[0].mxu0
        %2377 = vmatprep.mubr.f32.mxu0 0.0
        %2378 = vmatmul.mubr.f32.gmra.mrb[0].mxu0 %v2296
        %v2379 = vpop.f32.mrb[0].mxu0
        %v2380 = vadd.f32 0.0, %v2379
        %v2381 = vpop.f32.mrb[0].mxu0
        %2382 = vdwg.mxu0
        %v2384 = vsel %vm604, %v2279, 0
        %v2387 = vsel %vm604, %v2281, 0
        %v2390 = vsel %vm604, %v2283, 0
        %v2393 = vsel %vm604, %v2285, 0
        %2395 = vmatprep.subr.mxu0 0.0
        %2396 = vmatpush1.msra.mxu0 %v1946
        %2397 = vmatprep.subr.mxu0 0.0
        %2398 = vmatpush1.msra.mxu0 %v1951
        %2399 = vmatprep.subr.mxu0 0.0
        %2400 = vmatpush1.msra.mxu0 %v1956
        %2401 = vmatprep.subr.mxu0 0.0
        %2402 = vmatpush1.msra.mxu0 %v1961
        %2403 = vmatprep.subr.mxu0 0.0
        %2404 = vmatpush1.msra.mxu0 0.0
        %2405 = vmatprep.subr.mxu0 0.0
        %2406 = vmatpush1.msra.mxu0 0.0
        %2407 = vmatprep.subr.mxu0 0.0
        %2408 = vmatpush1.msra.mxu0 0.0
        %2409 = vmatprep.subr.mxu0 0.0
        %2410 = vmatpush1.msra.mxu0 0.0
        %2411 = vmatprep.subr.mxu0 0.0
        %2412 = vmatpush1.msra.mxu0 0.0
        %2413 = vmatprep.subr.mxu0 0.0
        %2414 = vmatpush1.msra.mxu0 0.0
        %2415 = vmatprep.subr.mxu0 0.0
        %2416 = vmatpush1.msra.mxu0 0.0
        %2417 = vmatprep.subr.mxu0 0.0
        %2418 = vmatpush1.msra.mxu0 0.0
        %2419 = vmatprep.subr.mxu0 0.0
        %2420 = vmatpush1.msra.mxu0 0.0
        %2421 = vmatprep.subr.mxu0 0.0
        %2422 = vmatpush1.msra.mxu0 0.0
        %2423 = vmatprep.subr.mxu0 0.0
        %2424 = vmatpush1.msra.mxu0 0.0
        %2425 = vmatprep.subr.mxu0 0.0
        %2426 = vmatpush1.msra.mxu0 0.0
        %2427 = vmatprep.subr.mxu0 0.0
        %2428 = vmatpush1.msra.mxu0 0.0
        %2429 = vmatprep.subr.mxu0 0.0
        %2430 = vmatpush1.msra.mxu0 0.0
        %2431 = vmatprep.subr.mxu0 0.0
        %2432 = vmatpush1.msra.mxu0 0.0
        %2433 = vmatprep.subr.mxu0 0.0
        %2434 = vmatpush1.msra.mxu0 0.0
        %2435 = vmatprep.subr.mxu0 0.0
        %2436 = vmatpush1.msra.mxu0 0.0
        %2437 = vmatprep.subr.mxu0 0.0
        %2438 = vmatpush1.msra.mxu0 0.0
        %2439 = vmatprep.subr.mxu0 0.0
        %2440 = vmatpush1.msra.mxu0 0.0
        %2441 = vmatprep.subr.mxu0 0.0
        %2442 = vmatpush1.msra.mxu0 0.0
        %2443 = vmatprep.subr.mxu0 0.0
        %2444 = vmatpush1.msra.mxu0 0.0
        %2445 = vmatprep.subr.mxu0 0.0
        %2446 = vmatpush1.msra.mxu0 0.0
        %2447 = vmatprep.subr.mxu0 0.0
        %2448 = vmatpush1.msra.mxu0 0.0
        %2449 = vmatprep.subr.mxu0 0.0
        %2450 = vmatpush1.msra.mxu0 0.0
        %2451 = vmatprep.subr.mxu0 0.0
        %2452 = vmatpush1.msra.mxu0 0.0
        %2453 = vmatprep.subr.mxu0 0.0
        %2454 = vmatpush1.msra.mxu0 0.0
        %2455 = vmatprep.subr.mxu0 0.0
        %2456 = vmatpush1.msra.mxu0 0.0
        %2457 = vmatprep.subr.mxu0 0.0
        %2458 = vmatpush1.msra.mxu0 0.0
        %2459 = vmatprep.mubr.f32.mxu0 0.0
        %2460 = vmatmul.mubr.f32.gmra.mrb[0].mxu0 %v2384
        %v2461 = vpop.f32.mrb[0].mxu0
        %v2462 = vadd.f32 0.0, %v2461
        %v2463 = vpop.f32.mrb[0].mxu0
        %2464 = vmatprep.mubr.f32.mxu0 0.0
        %2465 = vmatmul.mubr.f32.gmra.mrb[0].mxu0 %v2387
        %v2466 = vpop.f32.mrb[0].mxu0
        %v2467 = vadd.f32 0.0, %v2466
        %v2468 = vpop.f32.mrb[0].mxu0
        %2469 = vmatprep.mubr.f32.mxu0 0.0
        %2470 = vmatmul.mubr.f32.gmra.mrb[0].mxu0 %v2390
        %v2471 = vpop.f32.mrb[0].mxu0
        %v2472 = vadd.f32 0.0, %v2471
        %v2473 = vpop.f32.mrb[0].mxu0
        %2474 = vmatprep.mubr.f32.mxu0 0.0
        %2475 = vmatmul.mubr.f32.gmra.mrb[0].mxu0 %v2393
        %v2476 = vpop.f32.mrb[0].mxu0
        %v2477 = vadd.f32 0.0, %v2476
        %v2478 = vpop.f32.mrb[0].mxu0
        %2479 = vdwg.mxu0
        %v2480 = vld [vmem:[%s415 + $0x8] sm:$0xff]
        %v2482 = vsel %vm1102, %v2365, 0
        %v2485 = vsel %vm1102, %v2370, 0
        %v2488 = vsel %vm1102, %v2375, 0
        %v2491 = vsel %vm1102, %v2380, 0
        %v2494 = vsel %vm1102, %v2462, 0
        %v2497 = vsel %vm1102, %v2467, 0
        %v2500 = vsel %vm1102, %v2472, 0
        %v2503 = vsel %vm1102, %v2477, 0
        %2505 = vmatprep.subr.mxu0 0.0
        %2506 = vmatpush1.msra.mxu0 %v2480
        %2507 = vmatprep.subr.mxu0 0.0
        %2508 = vmatpush1.msra.mxu0 0.0
        %2509 = vmatprep.subr.mxu0 0.0
        %2510 = vmatpush1.msra.mxu0 0.0
        %2511 = vmatprep.subr.mxu0 0.0
        %2512 = vmatpush1.msra.mxu0 0.0
        %2513 = vmatprep.subr.mxu0 0.0
        %2514 = vmatpush1.msra.mxu0 0.0
        %2515 = vmatprep.subr.mxu0 0.0
        %2516 = vmatpush1.msra.mxu0 0.0
        %2517 = vmatprep.subr.mxu0 0.0
        %2518 = vmatpush1.msra.mxu0 0.0
        %2519 = vmatprep.subr.mxu0 0.0
        %2520 = vmatpush1.msra.mxu0 0.0
        %2521 = vmatprep.subr.mxu0 0.0
        %2522 = vmatpush1.msra.mxu0 0.0
        %2523 = vmatprep.subr.mxu0 0.0
        %2524 = vmatpush1.msra.mxu0 0.0
        %2525 = vmatprep.subr.mxu0 0.0
        %2526 = vmatpush1.msra.mxu0 0.0
        %2527 = vmatprep.subr.mxu0 0.0
        %2528 = vmatpush1.msra.mxu0 0.0
        %2529 = vmatprep.subr.mxu0 0.0
        %2530 = vmatpush1.msra.mxu0 0.0
        %2531 = vmatprep.subr.mxu0 0.0
        %2532 = vmatpush1.msra.mxu0 0.0
        %2533 = vmatprep.subr.mxu0 0.0
        %2534 = vmatpush1.msra.mxu0 0.0
        %2535 = vmatprep.subr.mxu0 0.0
        %2536 = vmatpush1.msra.mxu0 0.0
        %2537 = vmatprep.subr.mxu0 0.0
        %2538 = vmatpush1.msra.mxu0 0.0
        %2539 = vmatprep.subr.mxu0 0.0
        %2540 = vmatpush1.msra.mxu0 0.0
        %2541 = vmatprep.subr.mxu0 0.0
        %2542 = vmatpush1.msra.mxu0 0.0
        %2543 = vmatprep.subr.mxu0 0.0
        %2544 = vmatpush1.msra.mxu0 0.0
        %2545 = vmatprep.subr.mxu0 0.0
        %2546 = vmatpush1.msra.mxu0 0.0
        %2547 = vmatprep.subr.mxu0 0.0
        %2548 = vmatpush1.msra.mxu0 0.0
        %2549 = vmatprep.subr.mxu0 0.0
        %2550 = vmatpush1.msra.mxu0 0.0
        %2551 = vmatprep.subr.mxu0 0.0
        %2552 = vmatpush1.msra.mxu0 0.0
        %2553 = vmatprep.subr.mxu0 0.0
        %2554 = vmatpush1.msra.mxu0 0.0
        %2555 = vmatprep.subr.mxu0 0.0
        %2556 = vmatpush1.msra.mxu0 0.0
        %2557 = vmatprep.subr.mxu0 0.0
        %2558 = vmatpush1.msra.mxu0 0.0
        %2559 = vmatprep.subr.mxu0 0.0
        %2560 = vmatpush1.msra.mxu0 0.0
        %2561 = vmatprep.subr.mxu0 0.0
        %2562 = vmatpush1.msra.mxu0 0.0
        %2563 = vmatprep.subr.mxu0 0.0
        %2564 = vmatpush1.msra.mxu0 0.0
        %2565 = vmatprep.subr.mxu0 0.0
        %2566 = vmatpush1.msra.mxu0 0.0
        %2567 = vmatprep.subr.mxu0 0.0
        %2568 = vmatpush1.msra.mxu0 0.0
        %2569 = vmatprep.mubr.f32.mxu0 0.0
        %2570 = vmatmul.mubr.f32.gmra.mrb[0].mxu0 %v2482
        %v2571 = vpop.f32.mrb[0].mxu0
        %v2572 = vadd.f32 0.0, %v2571
        %v2573 = vpop.f32.mrb[0].mxu0
        %2574 = vmatprep.mubr.f32.mxu0 0.0
        %2575 = vmatmul.mubr.f32.gmra.mrb[0].mxu0 %v2485
        %v2576 = vpop.f32.mrb[0].mxu0
        %v2577 = vadd.f32 0.0, %v2576
        %v2578 = vpop.f32.mrb[0].mxu0
        %2579 = vmatprep.mubr.f32.mxu0 0.0
        %2580 = vmatmul.mubr.f32.gmra.mrb[0].mxu0 %v2488
        %v2581 = vpop.f32.mrb[0].mxu0
        %v2582 = vadd.f32 0.0, %v2581
        %v2583 = vpop.f32.mrb[0].mxu0
        %2584 = vmatprep.mubr.f32.mxu0 0.0
        %2585 = vmatmul.mubr.f32.gmra.mrb[0].mxu0 %v2491
        %v2586 = vpop.f32.mrb[0].mxu0
        %v2587 = vadd.f32 0.0, %v2586
        %v2588 = vpop.f32.mrb[0].mxu0
        %2589 = vmatprep.mubr.f32.mxu0 0.0
        %2590 = vmatmul.mubr.f32.gmra.mrb[0].mxu0 %v2494
        %v2591 = vpop.f32.mrb[0].mxu0
        %v2592 = vadd.f32 0.0, %v2591
        %v2593 = vpop.f32.mrb[0].mxu0
        %2594 = vmatprep.mubr.f32.mxu0 0.0
        %2595 = vmatmul.mubr.f32.gmra.mrb[0].mxu0 %v2497
        %v2596 = vpop.f32.mrb[0].mxu0
        %v2597 = vadd.f32 0.0, %v2596
        %v2598 = vpop.f32.mrb[0].mxu0
        %2599 = vmatprep.mubr.f32.mxu0 0.0
        %2600 = vmatmul.mubr.f32.gmra.mrb[0].mxu0 %v2500
        %v2601 = vpop.f32.mrb[0].mxu0
        %v2602 = vadd.f32 0.0, %v2601
        %v2603 = vpop.f32.mrb[0].mxu0
        %2604 = vmatprep.mubr.f32.mxu0 0.0
        %2605 = vmatmul.mubr.f32.gmra.mrb[0].mxu0 %v2503
        %v2606 = vpop.f32.mrb[0].mxu0
        %v2607 = vadd.f32 0.0, %v2606
        %v2608 = vpop.f32.mrb[0].mxu0
        %2609 = vdwg.mxu0
        %v2611 = vsel %vm1102, %v1506, 0
        %v2614 = vsel %vm1102, %v1511, 0
        %v2617 = vsel %vm1102, %v1516, 0
        %v2620 = vsel %vm1102, %v1521, 0
        %v2623 = vsel %vm1102, %v1603, 0
        %v2626 = vsel %vm1102, %v1608, 0
        %v2629 = vsel %vm1102, %v1613, 0
        %v2632 = vsel %vm1102, %v1618, 0
        %2634 = vmatprep.subr.mxu0 0.0
        %2635 = vmatpush1.msra.mxu0 %v1621
        %2636 = vmatprep.subr.mxu0 0.0
        %2637 = vmatpush1.msra.mxu0 0.0
        %2638 = vmatprep.subr.mxu0 0.0
        %2639 = vmatpush1.msra.mxu0 0.0
        %2640 = vmatprep.subr.mxu0 0.0
        %2641 = vmatpush1.msra.mxu0 0.0
        %2642 = vmatprep.subr.mxu0 0.0
        %2643 = vmatpush1.msra.mxu0 0.0
        %2644 = vmatprep.subr.mxu0 0.0
        %2645 = vmatpush1.msra.mxu0 0.0
        %2646 = vmatprep.subr.mxu0 0.0
        %2647 = vmatpush1.msra.mxu0 0.0
        %2648 = vmatprep.subr.mxu0 0.0
        %2649 = vmatpush1.msra.mxu0 0.0
        %2650 = vmatprep.subr.mxu0 0.0
        %2651 = vmatpush1.msra.mxu0 0.0
        %2652 = vmatprep.subr.mxu0 0.0
        %2653 = vmatpush1.msra.mxu0 0.0
        %2654 = vmatprep.subr.mxu0 0.0
        %2655 = vmatpush1.msra.mxu0 0.0
        %2656 = vmatprep.subr.mxu0 0.0
        %2657 = vmatpush1.msra.mxu0 0.0
        %2658 = vmatprep.subr.mxu0 0.0
        %2659 = vmatpush1.msra.mxu0 0.0
        %2660 = vmatprep.subr.mxu0 0.0
        %2661 = vmatpush1.msra.mxu0 0.0
        %2662 = vmatprep.subr.mxu0 0.0
        %2663 = vmatpush1.msra.mxu0 0.0
        %2664 = vmatprep.subr.mxu0 0.0
        %2665 = vmatpush1.msra.mxu0 0.0
        %2666 = vmatprep.subr.mxu0 0.0
        %2667 = vmatpush1.msra.mxu0 0.0
        %2668 = vmatprep.subr.mxu0 0.0
        %2669 = vmatpush1.msra.mxu0 0.0
        %2670 = vmatprep.subr.mxu0 0.0
        %2671 = vmatpush1.msra.mxu0 0.0
        %2672 = vmatprep.subr.mxu0 0.0
        %2673 = vmatpush1.msra.mxu0 0.0
        %2674 = vmatprep.subr.mxu0 0.0
        %2675 = vmatpush1.msra.mxu0 0.0
        %2676 = vmatprep.subr.mxu0 0.0
        %2677 = vmatpush1.msra.mxu0 0.0
        %2678 = vmatprep.subr.mxu0 0.0
        %2679 = vmatpush1.msra.mxu0 0.0
        %2680 = vmatprep.subr.mxu0 0.0
        %2681 = vmatpush1.msra.mxu0 0.0
        %2682 = vmatprep.subr.mxu0 0.0
        %2683 = vmatpush1.msra.mxu0 0.0
        %2684 = vmatprep.subr.mxu0 0.0
        %2685 = vmatpush1.msra.mxu0 0.0
        %2686 = vmatprep.subr.mxu0 0.0
        %2687 = vmatpush1.msra.mxu0 0.0
        %2688 = vmatprep.subr.mxu0 0.0
        %2689 = vmatpush1.msra.mxu0 0.0
        %2690 = vmatprep.subr.mxu0 0.0
        %2691 = vmatpush1.msra.mxu0 0.0
        %2692 = vmatprep.subr.mxu0 0.0
        %2693 = vmatpush1.msra.mxu0 0.0
        %2694 = vmatprep.subr.mxu0 0.0
        %2695 = vmatpush1.msra.mxu0 0.0
        %2696 = vmatprep.subr.mxu0 0.0
        %2697 = vmatpush1.msra.mxu0 0.0
        %2698 = vmatprep.mubr.f32.mxu0 0.0
        %2699 = vmatmul.mubr.f32.gmra.mrb[0].mxu0 %v2611
        %v2700 = vpop.f32.mrb[0].mxu0
        %v2701 = vadd.f32 %v2572, %v2700
        %v2702 = vpop.f32.mrb[0].mxu0
        %2703 = vmatprep.mubr.f32.mxu0 0.0
        %2704 = vmatmul.mubr.f32.gmra.mrb[0].mxu0 %v2614
        %v2705 = vpop.f32.mrb[0].mxu0
        %v2706 = vadd.f32 %v2577, %v2705
        %v2707 = vpop.f32.mrb[0].mxu0
        %2708 = vmatprep.mubr.f32.mxu0 0.0
        %2709 = vmatmul.mubr.f32.gmra.mrb[0].mxu0 %v2617
        %v2710 = vpop.f32.mrb[0].mxu0
        %v2711 = vadd.f32 %v2582, %v2710
        %v2712 = vpop.f32.mrb[0].mxu0
        %2713 = vmatprep.mubr.f32.mxu0 0.0
        %2714 = vmatmul.mubr.f32.gmra.mrb[0].mxu0 %v2620
        %v2715 = vpop.f32.mrb[0].mxu0
        %v2716 = vadd.f32 %v2587, %v2715
        %v2717 = vpop.f32.mrb[0].mxu0
        %2718 = vmatprep.mubr.f32.mxu0 0.0
        %2719 = vmatmul.mubr.f32.gmra.mrb[0].mxu0 %v2623
        %v2720 = vpop.f32.mrb[0].mxu0
        %v2721 = vadd.f32 %v2592, %v2720
        %v2722 = vpop.f32.mrb[0].mxu0
        %2723 = vmatprep.mubr.f32.mxu0 0.0
        %2724 = vmatmul.mubr.f32.gmra.mrb[0].mxu0 %v2626
        %v2725 = vpop.f32.mrb[0].mxu0
        %v2726 = vadd.f32 %v2597, %v2725
        %v2727 = vpop.f32.mrb[0].mxu0
        %2728 = vmatprep.mubr.f32.mxu0 0.0
        %2729 = vmatmul.mubr.f32.gmra.mrb[0].mxu0 %v2629
        %v2730 = vpop.f32.mrb[0].mxu0
        %v2731 = vadd.f32 %v2602, %v2730
        %v2732 = vpop.f32.mrb[0].mxu0
        %2733 = vmatprep.mubr.f32.mxu0 0.0
        %2734 = vmatmul.mubr.f32.gmra.mrb[0].mxu0 %v2632
        %v2735 = vpop.f32.mrb[0].mxu0
        %v2736 = vadd.f32 %v2607, %v2735
        %v2737 = vpop.f32.mrb[0].mxu0
        %2738 = vdwg.mxu0
        %s2739 = scalar_lea.vmem %s410, 64
        %v2740 = vld [vmem:[%s2739] sm:$0xff]
        %v2741 = vld [vmem:[%s2739 + $0x8] sm:$0xff]
        %v2742 = vld [vmem:[%s2739 + $0x10] sm:$0xff]
        %v2743 = vld [vmem:[%s2739 + $0x18] sm:$0xff]
        %s2744 = scalar_lea.vmem %s410, 192
        %v2745 = vld [vmem:[%s2744] sm:$0xff]
        %v2746 = vld [vmem:[%s2744 + $0x8] sm:$0xff]
        %v2747 = vld [vmem:[%s2744 + $0x10] sm:$0xff]
        %v2748 = vld [vmem:[%s2744 + $0x18] sm:$0xff]
        %s2749 = scalar_lea.vmem %s410, 320
        %v2750 = vld [vmem:[%s2749] sm:$0xff]
        %v2751 = vld [vmem:[%s2749 + $0x8] sm:$0xff]
        %v2752 = vld [vmem:[%s2749 + $0x10] sm:$0xff]
        %v2753 = vld [vmem:[%s2749 + $0x18] sm:$0xff]
        %v2754 = vlaneseq
        %v2755 = vshrl.u32 %v2754, 7
        %v2756 = vsub.s32 4, %v2755
        %v2757 = vrot.slane %v601, %v2756
        %2758 = vmatprep.subr.mxu0 0.0
        %2759 = vmatpush1.msra.mxu0 %v2740
        %2760 = vmatprep.subr.mxu0 0.0
        %2761 = vmatpush1.msra.mxu0 %v2741
        %2762 = vmatprep.subr.mxu0 0.0
        %2763 = vmatpush1.msra.mxu0 %v2742
        %2764 = vmatprep.subr.mxu0 0.0
        %2765 = vmatpush1.msra.mxu0 %v2743
        %2766 = vmatprep.subr.mxu0 0.0
        %2767 = vmatpush1.msra.mxu0 0.0
        %2768 = vmatprep.subr.mxu0 0.0
        %2769 = vmatpush1.msra.mxu0 0.0
        %2770 = vmatprep.subr.mxu0 0.0
        %2771 = vmatpush1.msra.mxu0 0.0
        %2772 = vmatprep.subr.mxu0 0.0
        %2773 = vmatpush1.msra.mxu0 0.0
        %2774 = vmatprep.subr.mxu0 0.0
        %2775 = vmatpush1.msra.mxu0 0.0
        %2776 = vmatprep.subr.mxu0 0.0
        %2777 = vmatpush1.msra.mxu0 0.0
        %2778 = vmatprep.subr.mxu0 0.0
        %2779 = vmatpush1.msra.mxu0 0.0
        %2780 = vmatprep.subr.mxu0 0.0
        %2781 = vmatpush1.msra.mxu0 0.0
        %2782 = vmatprep.subr.mxu0 0.0
        %2783 = vmatpush1.msra.mxu0 0.0
        %2784 = vmatprep.subr.mxu0 0.0
        %2785 = vmatpush1.msra.mxu0 0.0
        %2786 = vmatprep.subr.mxu0 0.0
        %2787 = vmatpush1.msra.mxu0 0.0
        %2788 = vmatprep.subr.mxu0 0.0
        %2789 = vmatpush1.msra.mxu0 0.0
        %2790 = vmatprep.subr.mxu0 0.0
        %2791 = vmatpush1.msra.mxu0 0.0
        %2792 = vmatprep.subr.mxu0 0.0
        %2793 = vmatpush1.msra.mxu0 0.0
        %2794 = vmatprep.subr.mxu0 0.0
        %2795 = vmatpush1.msra.mxu0 0.0
        %2796 = vmatprep.subr.mxu0 0.0
        %2797 = vmatpush1.msra.mxu0 0.0
        %2798 = vmatprep.subr.mxu0 0.0
        %2799 = vmatpush1.msra.mxu0 0.0
        %2800 = vmatprep.subr.mxu0 0.0
        %2801 = vmatpush1.msra.mxu0 0.0
        %2802 = vmatprep.subr.mxu0 0.0
        %2803 = vmatpush1.msra.mxu0 0.0
        %2804 = vmatprep.subr.mxu0 0.0
        %2805 = vmatpush1.msra.mxu0 0.0
        %2806 = vmatprep.subr.mxu0 0.0
        %2807 = vmatpush1.msra.mxu0 0.0
        %2808 = vmatprep.subr.mxu0 0.0
        %2809 = vmatpush1.msra.mxu0 0.0
        %2810 = vmatprep.subr.mxu0 0.0
        %2811 = vmatpush1.msra.mxu0 0.0
        %2812 = vmatprep.subr.mxu0 0.0
        %2813 = vmatpush1.msra.mxu0 0.0
        %2814 = vmatprep.subr.mxu0 0.0
        %2815 = vmatpush1.msra.mxu0 0.0
        %2816 = vmatprep.subr.mxu0 0.0
        %2817 = vmatpush1.msra.mxu0 0.0
        %2818 = vmatprep.subr.mxu0 0.0
        %2819 = vmatpush1.msra.mxu0 0.0
        %2820 = vmatprep.subr.mxu0 0.0
        %2821 = vmatpush1.msra.mxu0 0.0
        %2822 = vmatprep.mubr.f32.mxu0 0.0
        %2823 = vmatmul.mubr.f32.gmra.mrb[0].mxu0 %v756
        %v2824 = vpop.f32.mrb[0].mxu0
        %v2825 = vadd.f32 %v2757, %v2824
        %v2826 = vpop.f32.mrb[0].mxu0
        %2827 = vmatprep.mubr.f32.mxu0 0.0
        %2828 = vmatmul.mubr.f32.gmra.mrb[0].mxu0 %v759
        %v2829 = vpop.f32.mrb[0].mxu0
        %v2830 = vadd.f32 %v2757, %v2829
        %v2831 = vpop.f32.mrb[0].mxu0
        %2832 = vmatprep.mubr.f32.mxu0 0.0
        %2833 = vmatmul.mubr.f32.gmra.mrb[0].mxu0 %v762
        %v2834 = vpop.f32.mrb[0].mxu0
        %v2835 = vadd.f32 %v2757, %v2834
        %v2836 = vpop.f32.mrb[0].mxu0
        %2837 = vmatprep.mubr.f32.mxu0 0.0
        %2838 = vmatmul.mubr.f32.gmra.mrb[0].mxu0 %v765
        %v2839 = vpop.f32.mrb[0].mxu0
        %v2840 = vadd.f32 %v2757, %v2839
        %v2841 = vpop.f32.mrb[0].mxu0
        %2842 = vmatprep.mubr.f32.mxu0 0.0
        %2843 = vmatmul.mubr.f32.gmra.mrb[0].mxu0 %v768
        %v2844 = vpop.f32.mrb[0].mxu0
        %v2845 = vadd.f32 %v2757, %v2844
        %v2846 = vpop.f32.mrb[0].mxu0
        %2847 = vmatprep.mubr.f32.mxu0 0.0
        %2848 = vmatmul.mubr.f32.gmra.mrb[0].mxu0 %v771
        %v2849 = vpop.f32.mrb[0].mxu0
        %v2850 = vadd.f32 %v2757, %v2849
        %v2851 = vpop.f32.mrb[0].mxu0
        %2852 = vmatprep.mubr.f32.mxu0 0.0
        %2853 = vmatmul.mubr.f32.gmra.mrb[0].mxu0 %v774
        %v2854 = vpop.f32.mrb[0].mxu0
        %v2855 = vadd.f32 %v2757, %v2854
        %v2856 = vpop.f32.mrb[0].mxu0
        %2857 = vmatprep.mubr.f32.mxu0 0.0
        %2858 = vmatmul.mubr.f32.gmra.mrb[0].mxu0 %v777
        %v2859 = vpop.f32.mrb[0].mxu0
        %v2860 = vadd.f32 %v2757, %v2859
        %v2861 = vpop.f32.mrb[0].mxu0
        %2862 = vdwg.mxu0
        %v2863 = vlaneseq
        %v2864 = vshrl.u32 %v2863, 7
        %v2865 = vsub.s32 0, %v2864
        %v2866 = vrot.slane %v602, %v2865
        %2867 = vmatprep.subr.mxu0 0.0
        %2868 = vmatpush1.msra.mxu0 %v2745
        %2869 = vmatprep.subr.mxu0 0.0
        %2870 = vmatpush1.msra.mxu0 %v2746
        %2871 = vmatprep.subr.mxu0 0.0
        %2872 = vmatpush1.msra.mxu0 %v2747
        %2873 = vmatprep.subr.mxu0 0.0
        %2874 = vmatpush1.msra.mxu0 %v2748
        %2875 = vmatprep.subr.mxu0 0.0
        %2876 = vmatpush1.msra.mxu0 0.0
        %2877 = vmatprep.subr.mxu0 0.0
        %2878 = vmatpush1.msra.mxu0 0.0
        %2879 = vmatprep.subr.mxu0 0.0
        %2880 = vmatpush1.msra.mxu0 0.0
        %2881 = vmatprep.subr.mxu0 0.0
        %2882 = vmatpush1.msra.mxu0 0.0
        %2883 = vmatprep.subr.mxu0 0.0
        %2884 = vmatpush1.msra.mxu0 0.0
        %2885 = vmatprep.subr.mxu0 0.0
        %2886 = vmatpush1.msra.mxu0 0.0
        %2887 = vmatprep.subr.mxu0 0.0
        %2888 = vmatpush1.msra.mxu0 0.0
        %2889 = vmatprep.subr.mxu0 0.0
        %2890 = vmatpush1.msra.mxu0 0.0
        %2891 = vmatprep.subr.mxu0 0.0
        %2892 = vmatpush1.msra.mxu0 0.0
        %2893 = vmatprep.subr.mxu0 0.0
        %2894 = vmatpush1.msra.mxu0 0.0
        %2895 = vmatprep.subr.mxu0 0.0
        %2896 = vmatpush1.msra.mxu0 0.0
        %2897 = vmatprep.subr.mxu0 0.0
        %2898 = vmatpush1.msra.mxu0 0.0
        %2899 = vmatprep.subr.mxu0 0.0
        %2900 = vmatpush1.msra.mxu0 0.0
        %2901 = vmatprep.subr.mxu0 0.0
        %2902 = vmatpush1.msra.mxu0 0.0
        %2903 = vmatprep.subr.mxu0 0.0
        %2904 = vmatpush1.msra.mxu0 0.0
        %2905 = vmatprep.subr.mxu0 0.0
        %2906 = vmatpush1.msra.mxu0 0.0
        %2907 = vmatprep.subr.mxu0 0.0
        %2908 = vmatpush1.msra.mxu0 0.0
        %2909 = vmatprep.subr.mxu0 0.0
        %2910 = vmatpush1.msra.mxu0 0.0
        %2911 = vmatprep.subr.mxu0 0.0
        %2912 = vmatpush1.msra.mxu0 0.0
        %2913 = vmatprep.subr.mxu0 0.0
        %2914 = vmatpush1.msra.mxu0 0.0
        %2915 = vmatprep.subr.mxu0 0.0
        %2916 = vmatpush1.msra.mxu0 0.0
        %2917 = vmatprep.subr.mxu0 0.0
        %2918 = vmatpush1.msra.mxu0 0.0
        %2919 = vmatprep.subr.mxu0 0.0
        %2920 = vmatpush1.msra.mxu0 0.0
        %2921 = vmatprep.subr.mxu0 0.0
        %2922 = vmatpush1.msra.mxu0 0.0
        %2923 = vmatprep.subr.mxu0 0.0
        %2924 = vmatpush1.msra.mxu0 0.0
        %2925 = vmatprep.subr.mxu0 0.0
        %2926 = vmatpush1.msra.mxu0 0.0
        %2927 = vmatprep.subr.mxu0 0.0
        %2928 = vmatpush1.msra.mxu0 0.0
        %2929 = vmatprep.subr.mxu0 0.0
        %2930 = vmatpush1.msra.mxu0 0.0
        %2931 = vmatprep.mubr.f32.mxu0 0.0
        %2932 = vmatmul.mubr.f32.gmra.mrb[0].mxu0 %v756
        %v2933 = vpop.f32.mrb[0].mxu0
        %v2934 = vadd.f32 %v2866, %v2933
        %v2935 = vpop.f32.mrb[0].mxu0
        %2936 = vmatprep.mubr.f32.mxu0 0.0
        %2937 = vmatmul.mubr.f32.gmra.mrb[0].mxu0 %v759
        %v2938 = vpop.f32.mrb[0].mxu0
        %v2939 = vadd.f32 %v2866, %v2938
        %v2940 = vpop.f32.mrb[0].mxu0
        %2941 = vmatprep.mubr.f32.mxu0 0.0
        %2942 = vmatmul.mubr.f32.gmra.mrb[0].mxu0 %v762
        %v2943 = vpop.f32.mrb[0].mxu0
        %v2944 = vadd.f32 %v2866, %v2943
        %v2945 = vpop.f32.mrb[0].mxu0
        %2946 = vmatprep.mubr.f32.mxu0 0.0
        %2947 = vmatmul.mubr.f32.gmra.mrb[0].mxu0 %v765
        %v2948 = vpop.f32.mrb[0].mxu0
        %v2949 = vadd.f32 %v2866, %v2948
        %v2950 = vpop.f32.mrb[0].mxu0
        %2951 = vmatprep.mubr.f32.mxu0 0.0
        %2952 = vmatmul.mubr.f32.gmra.mrb[0].mxu0 %v768
        %v2953 = vpop.f32.mrb[0].mxu0
        %v2954 = vadd.f32 %v2866, %v2953
        %v2955 = vpop.f32.mrb[0].mxu0
        %2956 = vmatprep.mubr.f32.mxu0 0.0
        %2957 = vmatmul.mubr.f32.gmra.mrb[0].mxu0 %v771
        %v2958 = vpop.f32.mrb[0].mxu0
        %v2959 = vadd.f32 %v2866, %v2958
        %v2960 = vpop.f32.mrb[0].mxu0
        %2961 = vmatprep.mubr.f32.mxu0 0.0
        %2962 = vmatmul.mubr.f32.gmra.mrb[0].mxu0 %v774
        %v2963 = vpop.f32.mrb[0].mxu0
        %v2964 = vadd.f32 %v2866, %v2963
        %v2965 = vpop.f32.mrb[0].mxu0
        %2966 = vmatprep.mubr.f32.mxu0 0.0
        %2967 = vmatmul.mubr.f32.gmra.mrb[0].mxu0 %v777
        %v2968 = vpop.f32.mrb[0].mxu0
        %v2969 = vadd.f32 %v2866, %v2968
        %v2970 = vpop.f32.mrb[0].mxu0
        %2971 = vdwg.mxu0
        %v2972 = vlaneseq
        %v2973 = vshrl.u32 %v2972, 7
        %v2974 = vsub.s32 4, %v2973
        %v2975 = vrot.slane %v602, %v2974
        %2976 = vmatprep.subr.mxu0 0.0
        %2977 = vmatpush1.msra.mxu0 %v2750
        %2978 = vmatprep.subr.mxu0 0.0
        %2979 = vmatpush1.msra.mxu0 %v2751
        %2980 = vmatprep.subr.mxu0 0.0
        %2981 = vmatpush1.msra.mxu0 %v2752
        %2982 = vmatprep.subr.mxu0 0.0
        %2983 = vmatpush1.msra.mxu0 %v2753
        %2984 = vmatprep.subr.mxu0 0.0
        %2985 = vmatpush1.msra.mxu0 0.0
        %2986 = vmatprep.subr.mxu0 0.0
        %2987 = vmatpush1.msra.mxu0 0.0
        %2988 = vmatprep.subr.mxu0 0.0
        %2989 = vmatpush1.msra.mxu0 0.0
        %2990 = vmatprep.subr.mxu0 0.0
        %2991 = vmatpush1.msra.mxu0 0.0
        %2992 = vmatprep.subr.mxu0 0.0
        %2993 = vmatpush1.msra.mxu0 0.0
        %2994 = vmatprep.subr.mxu0 0.0
        %2995 = vmatpush1.msra.mxu0 0.0
        %2996 = vmatprep.subr.mxu0 0.0
        %2997 = vmatpush1.msra.mxu0 0.0
        %2998 = vmatprep.subr.mxu0 0.0
        %2999 = vmatpush1.msra.mxu0 0.0
        %3000 = vmatprep.subr.mxu0 0.0
        %3001 = vmatpush1.msra.mxu0 0.0
        %3002 = vmatprep.subr.mxu0 0.0
        %3003 = vmatpush1.msra.mxu0 0.0
        %3004 = vmatprep.subr.mxu0 0.0
        %3005 = vmatpush1.msra.mxu0 0.0
        %3006 = vmatprep.subr.mxu0 0.0
        %3007 = vmatpush1.msra.mxu0 0.0
        %3008 = vmatprep.subr.mxu0 0.0
        %3009 = vmatpush1.msra.mxu0 0.0
        %3010 = vmatprep.subr.mxu0 0.0
        %3011 = vmatpush1.msra.mxu0 0.0
        %3012 = vmatprep.subr.mxu0 0.0
        %3013 = vmatpush1.msra.mxu0 0.0
        %3014 = vmatprep.subr.mxu0 0.0
        %3015 = vmatpush1.msra.mxu0 0.0
        %3016 = vmatprep.subr.mxu0 0.0
        %3017 = vmatpush1.msra.mxu0 0.0
        %3018 = vmatprep.subr.mxu0 0.0
        %3019 = vmatpush1.msra.mxu0 0.0
        %3020 = vmatprep.subr.mxu0 0.0
        %3021 = vmatpush1.msra.mxu0 0.0
        %3022 = vmatprep.subr.mxu0 0.0
        %3023 = vmatpush1.msra.mxu0 0.0
        %3024 = vmatprep.subr.mxu0 0.0
        %3025 = vmatpush1.msra.mxu0 0.0
        %3026 = vmatprep.subr.mxu0 0.0
        %3027 = vmatpush1.msra.mxu0 0.0
        %3028 = vmatprep.subr.mxu0 0.0
        %3029 = vmatpush1.msra.mxu0 0.0
        %3030 = vmatprep.subr.mxu0 0.0
        %3031 = vmatpush1.msra.mxu0 0.0
        %3032 = vmatprep.subr.mxu0 0.0
        %3033 = vmatpush1.msra.mxu0 0.0
        %3034 = vmatprep.subr.mxu0 0.0
        %3035 = vmatpush1.msra.mxu0 0.0
        %3036 = vmatprep.subr.mxu0 0.0
        %3037 = vmatpush1.msra.mxu0 0.0
        %3038 = vmatprep.subr.mxu0 0.0
        %3039 = vmatpush1.msra.mxu0 0.0
        %3040 = vmatprep.mubr.f32.mxu0 0.0
        %3041 = vmatmul.mubr.f32.gmra.mrb[0].mxu0 %v756
        %v3042 = vpop.f32.mrb[0].mxu0
        %v3043 = vadd.f32 %v2975, %v3042
        %v3044 = vpop.f32.mrb[0].mxu0
        %3045 = vmatprep.mubr.f32.mxu0 0.0
        %3046 = vmatmul.mubr.f32.gmra.mrb[0].mxu0 %v759
        %v3047 = vpop.f32.mrb[0].mxu0
        %v3048 = vadd.f32 %v2975, %v3047
        %v3049 = vpop.f32.mrb[0].mxu0
        %3050 = vmatprep.mubr.f32.mxu0 0.0
        %3051 = vmatmul.mubr.f32.gmra.mrb[0].mxu0 %v762
        %v3052 = vpop.f32.mrb[0].mxu0
        %v3053 = vadd.f32 %v2975, %v3052
        %v3054 = vpop.f32.mrb[0].mxu0
        %3055 = vmatprep.mubr.f32.mxu0 0.0
        %3056 = vmatmul.mubr.f32.gmra.mrb[0].mxu0 %v765
        %v3057 = vpop.f32.mrb[0].mxu0
        %v3058 = vadd.f32 %v2975, %v3057
        %v3059 = vpop.f32.mrb[0].mxu0
        %3060 = vmatprep.mubr.f32.mxu0 0.0
        %3061 = vmatmul.mubr.f32.gmra.mrb[0].mxu0 %v768
        %v3062 = vpop.f32.mrb[0].mxu0
        %v3063 = vadd.f32 %v2975, %v3062
        %v3064 = vpop.f32.mrb[0].mxu0
        %3065 = vmatprep.mubr.f32.mxu0 0.0
        %3066 = vmatmul.mubr.f32.gmra.mrb[0].mxu0 %v771
        %v3067 = vpop.f32.mrb[0].mxu0
        %v3068 = vadd.f32 %v2975, %v3067
        %v3069 = vpop.f32.mrb[0].mxu0
        %3070 = vmatprep.mubr.f32.mxu0 0.0
        %3071 = vmatmul.mubr.f32.gmra.mrb[0].mxu0 %v774
        %v3072 = vpop.f32.mrb[0].mxu0
        %v3073 = vadd.f32 %v2975, %v3072
        %v3074 = vpop.f32.mrb[0].mxu0
        %3075 = vmatprep.mubr.f32.mxu0 0.0
        %3076 = vmatmul.mubr.f32.gmra.mrb[0].mxu0 %v777
        %v3077 = vpop.f32.mrb[0].mxu0
        %v3078 = vadd.f32 %v2975, %v3077
        %v3079 = vpop.f32.mrb[0].mxu0
        %3080 = vdwg.mxu0
        %v3082 = vsel %vm1102, %v2825, 0
        %v3085 = vsel %vm1102, %v2830, 0
        %v3088 = vsel %vm1102, %v2835, 0
        %v3091 = vsel %vm1102, %v2840, 0
        %v3094 = vsel %vm1102, %v2934, 0
        %v3097 = vsel %vm1102, %v2939, 0
        %v3100 = vsel %vm1102, %v2944, 0
        %v3103 = vsel %vm1102, %v2949, 0
        %3105 = vmatprep.subr.mxu0 0.0
        %3106 = vmatpush1.xpose.msra.mxu0 %v3094
        %3107 = vmatprep.subr.mxu0 0.0
        %3108 = vmatpush1.xpose.msra.mxu0 %v3097
        %3109 = vmatprep.subr.mxu0 0.0
        %3110 = vmatpush1.xpose.msra.mxu0 %v3100
        %3111 = vmatprep.subr.mxu0 0.0
        %3112 = vmatpush1.xpose.msra.mxu0 %v3103
        %3113 = vmatprep.subr.mxu0 0.0
        %3114 = vmatpush1.xpose.msra.mxu0 0.0
        %3115 = vmatprep.subr.mxu0 0.0
        %3116 = vmatpush1.xpose.msra.mxu0 0.0
        %3117 = vmatprep.subr.mxu0 0.0
        %3118 = vmatpush1.xpose.msra.mxu0 0.0
        %3119 = vmatprep.subr.mxu0 0.0
        %3120 = vmatpush1.xpose.msra.mxu0 0.0
        %3121 = vmatprep.subr.mxu0 0.0
        %3122 = vmatpush1.xpose.msra.mxu0 0.0
        %3123 = vmatprep.subr.mxu0 0.0
        %3124 = vmatpush1.xpose.msra.mxu0 0.0
        %3125 = vmatprep.subr.mxu0 0.0
        %3126 = vmatpush1.xpose.msra.mxu0 0.0
        %3127 = vmatprep.subr.mxu0 0.0
        %3128 = vmatpush1.xpose.msra.mxu0 0.0
        %3129 = vmatprep.subr.mxu0 0.0
        %3130 = vmatpush1.xpose.msra.mxu0 0.0
        %3131 = vmatprep.subr.mxu0 0.0
        %3132 = vmatpush1.xpose.msra.mxu0 0.0
        %3133 = vmatprep.subr.mxu0 0.0
        %3134 = vmatpush1.xpose.msra.mxu0 0.0
        %3135 = vmatprep.subr.mxu0 0.0
        %3136 = vmatpush1.xpose.msra.mxu0 0.0
        %3137 = vmatprep.subr.mxu0 0.0
        %3138 = vmatpush1.xpose.msra.mxu0 0.0
        %3139 = vmatprep.subr.mxu0 0.0
        %3140 = vmatpush1.xpose.msra.mxu0 0.0
        %3141 = vmatprep.subr.mxu0 0.0
        %3142 = vmatpush1.xpose.msra.mxu0 0.0
        %3143 = vmatprep.subr.mxu0 0.0
        %3144 = vmatpush1.xpose.msra.mxu0 0.0
        %3145 = vmatprep.subr.mxu0 0.0
        %3146 = vmatpush1.xpose.msra.mxu0 0.0
        %3147 = vmatprep.subr.mxu0 0.0
        %3148 = vmatpush1.xpose.msra.mxu0 0.0
        %3149 = vmatprep.subr.mxu0 0.0
        %3150 = vmatpush1.xpose.msra.mxu0 0.0
        %3151 = vmatprep.subr.mxu0 0.0
        %3152 = vmatpush1.xpose.msra.mxu0 0.0
        %3153 = vmatprep.subr.mxu0 0.0
        %3154 = vmatpush1.xpose.msra.mxu0 0.0
        %3155 = vmatprep.subr.mxu0 0.0
        %3156 = vmatpush1.xpose.msra.mxu0 0.0
        %3157 = vmatprep.subr.mxu0 0.0
        %3158 = vmatpush1.xpose.msra.mxu0 0.0
        %3159 = vmatprep.subr.mxu0 0.0
        %3160 = vmatpush1.xpose.msra.mxu0 0.0
        %3161 = vmatprep.subr.mxu0 0.0
        %3162 = vmatpush1.xpose.msra.mxu0 0.0
        %3163 = vmatprep.subr.mxu0 0.0
        %3164 = vmatpush1.xpose.msra.mxu0 0.0
        %3165 = vmatprep.subr.mxu0 0.0
        %3166 = vmatpush1.xpose.msra.mxu0 0.0
        %3167 = vmatprep.subr.mxu0 0.0
        %3168 = vmatpush1.xpose.msra.mxu0 0.0
        %3169 = vmatprep.mubr.f32.mxu0 0.0
        %3170 = vmatmul.mubr.f32.gmra.mrb[0].mxu0 %v3082
        %v3171 = vpop.f32.mrb[0].mxu0
        %v3172 = vadd.f32 0.0, %v3171
        %v3173 = vpop.f32.mrb[0].mxu0
        %3174 = vmatprep.mubr.f32.mxu0 0.0
        %3175 = vmatmul.mubr.f32.gmra.mrb[0].mxu0 %v3085
        %v3176 = vpop.f32.mrb[0].mxu0
        %v3177 = vadd.f32 0.0, %v3176
        %v3178 = vpop.f32.mrb[0].mxu0
        %3179 = vmatprep.mubr.f32.mxu0 0.0
        %3180 = vmatmul.mubr.f32.gmra.mrb[0].mxu0 %v3088
        %v3181 = vpop.f32.mrb[0].mxu0
        %v3182 = vadd.f32 0.0, %v3181
        %v3183 = vpop.f32.mrb[0].mxu0
        %3184 = vmatprep.mubr.f32.mxu0 0.0
        %3185 = vmatmul.mubr.f32.gmra.mrb[0].mxu0 %v3091
        %v3186 = vpop.f32.mrb[0].mxu0
        %v3187 = vadd.f32 0.0, %v3186
        %v3188 = vpop.f32.mrb[0].mxu0
        %3189 = vdwg.mxu0
        %v3191 = vsel %vm1102, %v2845, 0
        %v3194 = vsel %vm1102, %v2850, 0
        %v3197 = vsel %vm1102, %v2855, 0
        %v3200 = vsel %vm1102, %v2860, 0
        %v3203 = vsel %vm1102, %v2954, 0
        %v3206 = vsel %vm1102, %v2959, 0
        %v3209 = vsel %vm1102, %v2964, 0
        %v3212 = vsel %vm1102, %v2969, 0
        %3214 = vmatprep.subr.mxu0 0.0
        %3215 = vmatpush1.xpose.msra.mxu0 %v3203
        %3216 = vmatprep.subr.mxu0 0.0
        %3217 = vmatpush1.xpose.msra.mxu0 %v3206
        %3218 = vmatprep.subr.mxu0 0.0
        %3219 = vmatpush1.xpose.msra.mxu0 %v3209
        %3220 = vmatprep.subr.mxu0 0.0
        %3221 = vmatpush1.xpose.msra.mxu0 %v3212
        %3222 = vmatprep.subr.mxu0 0.0
        %3223 = vmatpush1.xpose.msra.mxu0 0.0
        %3224 = vmatprep.subr.mxu0 0.0
        %3225 = vmatpush1.xpose.msra.mxu0 0.0
        %3226 = vmatprep.subr.mxu0 0.0
        %3227 = vmatpush1.xpose.msra.mxu0 0.0
        %3228 = vmatprep.subr.mxu0 0.0
        %3229 = vmatpush1.xpose.msra.mxu0 0.0
        %3230 = vmatprep.subr.mxu0 0.0
        %3231 = vmatpush1.xpose.msra.mxu0 0.0
        %3232 = vmatprep.subr.mxu0 0.0
        %3233 = vmatpush1.xpose.msra.mxu0 0.0
        %3234 = vmatprep.subr.mxu0 0.0
        %3235 = vmatpush1.xpose.msra.mxu0 0.0
        %3236 = vmatprep.subr.mxu0 0.0
        %3237 = vmatpush1.xpose.msra.mxu0 0.0
        %3238 = vmatprep.subr.mxu0 0.0
        %3239 = vmatpush1.xpose.msra.mxu0 0.0
        %3240 = vmatprep.subr.mxu0 0.0
        %3241 = vmatpush1.xpose.msra.mxu0 0.0
        %3242 = vmatprep.subr.mxu0 0.0
        %3243 = vmatpush1.xpose.msra.mxu0 0.0
        %3244 = vmatprep.subr.mxu0 0.0
        %3245 = vmatpush1.xpose.msra.mxu0 0.0
        %3246 = vmatprep.subr.mxu0 0.0
        %3247 = vmatpush1.xpose.msra.mxu0 0.0
        %3248 = vmatprep.subr.mxu0 0.0
        %3249 = vmatpush1.xpose.msra.mxu0 0.0
        %3250 = vmatprep.subr.mxu0 0.0
        %3251 = vmatpush1.xpose.msra.mxu0 0.0
        %3252 = vmatprep.subr.mxu0 0.0
        %3253 = vmatpush1.xpose.msra.mxu0 0.0
        %3254 = vmatprep.subr.mxu0 0.0
        %3255 = vmatpush1.xpose.msra.mxu0 0.0
        %3256 = vmatprep.subr.mxu0 0.0
        %3257 = vmatpush1.xpose.msra.mxu0 0.0
        %3258 = vmatprep.subr.mxu0 0.0
        %3259 = vmatpush1.xpose.msra.mxu0 0.0
        %3260 = vmatprep.subr.mxu0 0.0
        %3261 = vmatpush1.xpose.msra.mxu0 0.0
        %3262 = vmatprep.subr.mxu0 0.0
        %3263 = vmatpush1.xpose.msra.mxu0 0.0
        %3264 = vmatprep.subr.mxu0 0.0
        %3265 = vmatpush1.xpose.msra.mxu0 0.0
        %3266 = vmatprep.subr.mxu0 0.0
        %3267 = vmatpush1.xpose.msra.mxu0 0.0
        %3268 = vmatprep.subr.mxu0 0.0
        %3269 = vmatpush1.xpose.msra.mxu0 0.0
        %3270 = vmatprep.subr.mxu0 0.0
        %3271 = vmatpush1.xpose.msra.mxu0 0.0
        %3272 = vmatprep.subr.mxu0 0.0
        %3273 = vmatpush1.xpose.msra.mxu0 0.0
        %3274 = vmatprep.subr.mxu0 0.0
        %3275 = vmatpush1.xpose.msra.mxu0 0.0
        %3276 = vmatprep.subr.mxu0 0.0
        %3277 = vmatpush1.xpose.msra.mxu0 0.0
        %3278 = vmatprep.mubr.f32.mxu0 0.0
        %3279 = vmatmul.mubr.f32.gmra.mrb[0].mxu0 %v3191
        %v3280 = vpop.f32.mrb[0].mxu0
        %v3281 = vadd.f32 0.0, %v3280
        %v3282 = vpop.f32.mrb[0].mxu0
        %3283 = vmatprep.mubr.f32.mxu0 0.0
        %3284 = vmatmul.mubr.f32.gmra.mrb[0].mxu0 %v3194
        %v3285 = vpop.f32.mrb[0].mxu0
        %v3286 = vadd.f32 0.0, %v3285
        %v3287 = vpop.f32.mrb[0].mxu0
        %3288 = vmatprep.mubr.f32.mxu0 0.0
        %3289 = vmatmul.mubr.f32.gmra.mrb[0].mxu0 %v3197
        %v3290 = vpop.f32.mrb[0].mxu0
        %v3291 = vadd.f32 0.0, %v3290
        %v3292 = vpop.f32.mrb[0].mxu0
        %3293 = vmatprep.mubr.f32.mxu0 0.0
        %3294 = vmatmul.mubr.f32.gmra.mrb[0].mxu0 %v3200
        %v3295 = vpop.f32.mrb[0].mxu0
        %v3296 = vadd.f32 0.0, %v3295
        %v3297 = vpop.f32.mrb[0].mxu0
        %3298 = vdwg.mxu0
        %v3299 = vmul.f32 %v3172, 0.35355338
        %v3300 = vmul.f32 %v3177, 0.35355338
        %v3301 = vmul.f32 %v3182, 0.35355338
        %v3302 = vmul.f32 %v3187, 0.35355338
        %v3303 = vmul.f32 %v3281, 0.35355338
        %v3304 = vmul.f32 %v3286, 0.35355338
        %v3305 = vmul.f32 %v3291, 0.35355338
        %v3306 = vmul.f32 %v3296, 0.35355338
        %v3307 = vsel %vm1330, %v3299, -1e+30
        %v3308 = vsel %vm1330, %v3300, -1e+30
        %v3309 = vsel %vm1330, %v3301, -1e+30
        %v3310 = vsel %vm1330, %v3302, -1e+30
        %v3311 = vsel %vm1330, %v3303, -1e+30
        %v3312 = vsel %vm1330, %v3304, -1e+30
        %v3313 = vsel %vm1330, %v3305, -1e+30
        %v3314 = vsel %vm1330, %v3306, -1e+30
        %v3315 = vsel %vm604, %v3307, -inf
        %3316 = vmax.xlane.f32.xlu0 %v3315
        %v3317 = vpop.xlane.xlu0 %3316
        %v3318 = vsel %vm604, %v3308, -inf
        %3319 = vmax.xlane.f32.xlu0 %v3318
        %v3320 = vpop.xlane.xlu0 %3319
        %v3321 = vsel %vm604, %v3309, -inf
        %3322 = vmax.xlane.f32.xlu0 %v3321
        %v3323 = vpop.xlane.xlu0 %3322
        %v3324 = vsel %vm604, %v3310, -inf
        %3325 = vmax.xlane.f32.xlu0 %v3324
        %v3326 = vpop.xlane.xlu0 %3325
        %v3327 = vsel %vm604, %v3311, -inf
        %3328 = vmax.xlane.f32.xlu0 %v3327
        %v3329 = vpop.xlane.xlu0 %3328
        %v3330 = vsel %vm604, %v3312, -inf
        %3331 = vmax.xlane.f32.xlu0 %v3330
        %v3332 = vpop.xlane.xlu0 %3331
        %v3333 = vsel %vm604, %v3313, -inf
        %3334 = vmax.xlane.f32.xlu0 %v3333
        %v3335 = vpop.xlane.xlu0 %3334
        %v3336 = vsel %vm604, %v3314, -inf
        %3337 = vmax.xlane.f32.xlu0 %v3336
        %v3338 = vpop.xlane.xlu0 %3337
        %v3339 = vsub.f32 %v3307, %v3317
        %v3340 = vsub.f32 %v3308, %v3320
        %v3341 = vsub.f32 %v3309, %v3323
        %v3342 = vsub.f32 %v3310, %v3326
        %v3343 = vsub.f32 %v3311, %v3329
        %v3344 = vsub.f32 %v3312, %v3332
        %v3345 = vsub.f32 %v3313, %v3335
        %v3346 = vsub.f32 %v3314, %v3338
        %v3347 = vmul.f32 %v3339, 1.442695
        %v3348 = vpow.pop %v3347
        %v3349 = vmul.f32 %v3340, 1.442695
        %v3350 = vpow.pop %v3349
        %v3351 = vmul.f32 %v3341, 1.442695
        %v3352 = vpow.pop %v3351
        %v3353 = vmul.f32 %v3342, 1.442695
        %v3354 = vpow.pop %v3353
        %v3355 = vmul.f32 %v3343, 1.442695
        %v3356 = vpow.pop %v3355
        %v3357 = vmul.f32 %v3344, 1.442695
        %v3358 = vpow.pop %v3357
        %v3359 = vmul.f32 %v3345, 1.442695
        %v3360 = vpow.pop %v3359
        %v3361 = vmul.f32 %v3346, 1.442695
        %v3362 = vpow.pop %v3361
        %v3363 = vsel %vm604, %v3348, 0.0
        %3364 = vadd.xlane.f32.xlu0 %v3363
        %v3365 = vpop.xlane.xlu0 %3364
        %v3366 = vsel %vm604, %v3350, 0.0
        %3367 = vadd.xlane.f32.xlu0 %v3366
        %v3368 = vpop.xlane.xlu0 %3367
        %v3369 = vsel %vm604, %v3352, 0.0
        %3370 = vadd.xlane.f32.xlu0 %v3369
        %v3371 = vpop.xlane.xlu0 %3370
        %v3372 = vsel %vm604, %v3354, 0.0
        %3373 = vadd.xlane.f32.xlu0 %v3372
        %v3374 = vpop.xlane.xlu0 %3373
        %v3375 = vsel %vm604, %v3356, 0.0
        %3376 = vadd.xlane.f32.xlu0 %v3375
        %v3377 = vpop.xlane.xlu0 %3376
        %v3378 = vsel %vm604, %v3358, 0.0
        %3379 = vadd.xlane.f32.xlu0 %v3378
        %v3380 = vpop.xlane.xlu0 %3379
        %v3381 = vsel %vm604, %v3360, 0.0
        %3382 = vadd.xlane.f32.xlu0 %v3381
        %v3383 = vpop.xlane.xlu0 %3382
        %v3384 = vsel %vm604, %v3362, 0.0
        %3385 = vadd.xlane.f32.xlu0 %v3384
        %v3386 = vpop.xlane.xlu0 %3385
        %v3387 = vrcp.pop %v3365
        %v3388 = vmul.f32 %v3348, %v3387
        %v3389 = vrcp.pop %v3368
        %v3390 = vmul.f32 %v3350, %v3389
        %v3391 = vrcp.pop %v3371
        %v3392 = vmul.f32 %v3352, %v3391
        %v3393 = vrcp.pop %v3374
        %v3394 = vmul.f32 %v3354, %v3393
        %v3395 = vrcp.pop %v3377
        %v3396 = vmul.f32 %v3356, %v3395
        %v3397 = vrcp.pop %v3380
        %v3398 = vmul.f32 %v3358, %v3397
        %v3399 = vrcp.pop %v3383
        %v3400 = vmul.f32 %v3360, %v3399
        %v3401 = vrcp.pop %v3386
        %v3402 = vmul.f32 %v3362, %v3401
        %v3404 = vsel %vm604, %v3388, 0
        %v3407 = vsel %vm604, %v3390, 0
        %v3410 = vsel %vm604, %v3392, 0
        %v3413 = vsel %vm604, %v3394, 0
        %3415 = vmatprep.subr.mxu0 0.0
        %3416 = vmatpush1.msra.mxu0 %v3043
        %3417 = vmatprep.subr.mxu0 0.0
        %3418 = vmatpush1.msra.mxu0 %v3048
        %3419 = vmatprep.subr.mxu0 0.0
        %3420 = vmatpush1.msra.mxu0 %v3053
        %3421 = vmatprep.subr.mxu0 0.0
        %3422 = vmatpush1.msra.mxu0 %v3058
        %3423 = vmatprep.subr.mxu0 0.0
        %3424 = vmatpush1.msra.mxu0 0.0
        %3425 = vmatprep.subr.mxu0 0.0
        %3426 = vmatpush1.msra.mxu0 0.0
        %3427 = vmatprep.subr.mxu0 0.0
        %3428 = vmatpush1.msra.mxu0 0.0
        %3429 = vmatprep.subr.mxu0 0.0
        %3430 = vmatpush1.msra.mxu0 0.0
        %3431 = vmatprep.subr.mxu0 0.0
        %3432 = vmatpush1.msra.mxu0 0.0
        %3433 = vmatprep.subr.mxu0 0.0
        %3434 = vmatpush1.msra.mxu0 0.0
        %3435 = vmatprep.subr.mxu0 0.0
        %3436 = vmatpush1.msra.mxu0 0.0
        %3437 = vmatprep.subr.mxu0 0.0
        %3438 = vmatpush1.msra.mxu0 0.0
        %3439 = vmatprep.subr.mxu0 0.0
        %3440 = vmatpush1.msra.mxu0 0.0
        %3441 = vmatprep.subr.mxu0 0.0
        %3442 = vmatpush1.msra.mxu0 0.0
        %3443 = vmatprep.subr.mxu0 0.0
        %3444 = vmatpush1.msra.mxu0 0.0
        %3445 = vmatprep.subr.mxu0 0.0
        %3446 = vmatpush1.msra.mxu0 0.0
        %3447 = vmatprep.subr.mxu0 0.0
        %3448 = vmatpush1.msra.mxu0 0.0
        %3449 = vmatprep.subr.mxu0 0.0
        %3450 = vmatpush1.msra.mxu0 0.0
        %3451 = vmatprep.subr.mxu0 0.0
        %3452 = vmatpush1.msra.mxu0 0.0
        %3453 = vmatprep.subr.mxu0 0.0
        %3454 = vmatpush1.msra.mxu0 0.0
        %3455 = vmatprep.subr.mxu0 0.0
        %3456 = vmatpush1.msra.mxu0 0.0
        %3457 = vmatprep.subr.mxu0 0.0
        %3458 = vmatpush1.msra.mxu0 0.0
        %3459 = vmatprep.subr.mxu0 0.0
        %3460 = vmatpush1.msra.mxu0 0.0
        %3461 = vmatprep.subr.mxu0 0.0
        %3462 = vmatpush1.msra.mxu0 0.0
        %3463 = vmatprep.subr.mxu0 0.0
        %3464 = vmatpush1.msra.mxu0 0.0
        %3465 = vmatprep.subr.mxu0 0.0
        %3466 = vmatpush1.msra.mxu0 0.0
        %3467 = vmatprep.subr.mxu0 0.0
        %3468 = vmatpush1.msra.mxu0 0.0
        %3469 = vmatprep.subr.mxu0 0.0
        %3470 = vmatpush1.msra.mxu0 0.0
        %3471 = vmatprep.subr.mxu0 0.0
        %3472 = vmatpush1.msra.mxu0 0.0
        %3473 = vmatprep.subr.mxu0 0.0
        %3474 = vmatpush1.msra.mxu0 0.0
        %3475 = vmatprep.subr.mxu0 0.0
        %3476 = vmatpush1.msra.mxu0 0.0
        %3477 = vmatprep.subr.mxu0 0.0
        %3478 = vmatpush1.msra.mxu0 0.0
        %3479 = vmatprep.mubr.f32.mxu0 0.0
        %3480 = vmatmul.mubr.f32.gmra.mrb[0].mxu0 %v3404
        %v3481 = vpop.f32.mrb[0].mxu0
        %v3482 = vadd.f32 0.0, %v3481
        %v3483 = vpop.f32.mrb[0].mxu0
        %3484 = vmatprep.mubr.f32.mxu0 0.0
        %3485 = vmatmul.mubr.f32.gmra.mrb[0].mxu0 %v3407
        %v3486 = vpop.f32.mrb[0].mxu0
        %v3487 = vadd.f32 0.0, %v3486
        %v3488 = vpop.f32.mrb[0].mxu0
        %3489 = vmatprep.mubr.f32.mxu0 0.0
        %3490 = vmatmul.mubr.f32.gmra.mrb[0].mxu0 %v3410
        %v3491 = vpop.f32.mrb[0].mxu0
        %v3492 = vadd.f32 0.0, %v3491
        %v3493 = vpop.f32.mrb[0].mxu0
        %3494 = vmatprep.mubr.f32.mxu0 0.0
        %3495 = vmatmul.mubr.f32.gmra.mrb[0].mxu0 %v3413
        %v3496 = vpop.f32.mrb[0].mxu0
        %v3497 = vadd.f32 0.0, %v3496
        %v3498 = vpop.f32.mrb[0].mxu0
        %3499 = vdwg.mxu0
        %v3501 = vsel %vm604, %v3396, 0
        %v3504 = vsel %vm604, %v3398, 0
        %v3507 = vsel %vm604, %v3400, 0
        %v3510 = vsel %vm604, %v3402, 0
        %3512 = vmatprep.subr.mxu0 0.0
        %3513 = vmatpush1.msra.mxu0 %v3063
        %3514 = vmatprep.subr.mxu0 0.0
        %3515 = vmatpush1.msra.mxu0 %v3068
        %3516 = vmatprep.subr.mxu0 0.0
        %3517 = vmatpush1.msra.mxu0 %v3073
        %3518 = vmatprep.subr.mxu0 0.0
        %3519 = vmatpush1.msra.mxu0 %v3078
        %3520 = vmatprep.subr.mxu0 0.0
        %3521 = vmatpush1.msra.mxu0 0.0
        %3522 = vmatprep.subr.mxu0 0.0
        %3523 = vmatpush1.msra.mxu0 0.0
        %3524 = vmatprep.subr.mxu0 0.0
        %3525 = vmatpush1.msra.mxu0 0.0
        %3526 = vmatprep.subr.mxu0 0.0
        %3527 = vmatpush1.msra.mxu0 0.0
        %3528 = vmatprep.subr.mxu0 0.0
        %3529 = vmatpush1.msra.mxu0 0.0
        %3530 = vmatprep.subr.mxu0 0.0
        %3531 = vmatpush1.msra.mxu0 0.0
        %3532 = vmatprep.subr.mxu0 0.0
        %3533 = vmatpush1.msra.mxu0 0.0
        %3534 = vmatprep.subr.mxu0 0.0
        %3535 = vmatpush1.msra.mxu0 0.0
        %3536 = vmatprep.subr.mxu0 0.0
        %3537 = vmatpush1.msra.mxu0 0.0
        %3538 = vmatprep.subr.mxu0 0.0
        %3539 = vmatpush1.msra.mxu0 0.0
        %3540 = vmatprep.subr.mxu0 0.0
        %3541 = vmatpush1.msra.mxu0 0.0
        %3542 = vmatprep.subr.mxu0 0.0
        %3543 = vmatpush1.msra.mxu0 0.0
        %3544 = vmatprep.subr.mxu0 0.0
        %3545 = vmatpush1.msra.mxu0 0.0
        %3546 = vmatprep.subr.mxu0 0.0
        %3547 = vmatpush1.msra.mxu0 0.0
        %3548 = vmatprep.subr.mxu0 0.0
        %3549 = vmatpush1.msra.mxu0 0.0
        %3550 = vmatprep.subr.mxu0 0.0
        %3551 = vmatpush1.msra.mxu0 0.0
        %3552 = vmatprep.subr.mxu0 0.0
        %3553 = vmatpush1.msra.mxu0 0.0
        %3554 = vmatprep.subr.mxu0 0.0
        %3555 = vmatpush1.msra.mxu0 0.0
        %3556 = vmatprep.subr.mxu0 0.0
        %3557 = vmatpush1.msra.mxu0 0.0
        %3558 = vmatprep.subr.mxu0 0.0
        %3559 = vmatpush1.msra.mxu0 0.0
        %3560 = vmatprep.subr.mxu0 0.0
        %3561 = vmatpush1.msra.mxu0 0.0
        %3562 = vmatprep.subr.mxu0 0.0
        %3563 = vmatpush1.msra.mxu0 0.0
        %3564 = vmatprep.subr.mxu0 0.0
        %3565 = vmatpush1.msra.mxu0 0.0
        %3566 = vmatprep.subr.mxu0 0.0
        %3567 = vmatpush1.msra.mxu0 0.0
        %3568 = vmatprep.subr.mxu0 0.0
        %3569 = vmatpush1.msra.mxu0 0.0
        %3570 = vmatprep.subr.mxu0 0.0
        %3571 = vmatpush1.msra.mxu0 0.0
        %3572 = vmatprep.subr.mxu0 0.0
        %3573 = vmatpush1.msra.mxu0 0.0
        %3574 = vmatprep.subr.mxu0 0.0
        %3575 = vmatpush1.msra.mxu0 0.0
        %3576 = vmatprep.mubr.f32.mxu0 0.0
        %3577 = vmatmul.mubr.f32.gmra.mrb[0].mxu0 %v3501
        %v3578 = vpop.f32.mrb[0].mxu0
        %v3579 = vadd.f32 0.0, %v3578
        %v3580 = vpop.f32.mrb[0].mxu0
        %3581 = vmatprep.mubr.f32.mxu0 0.0
        %3582 = vmatmul.mubr.f32.gmra.mrb[0].mxu0 %v3504
        %v3583 = vpop.f32.mrb[0].mxu0
        %v3584 = vadd.f32 0.0, %v3583
        %v3585 = vpop.f32.mrb[0].mxu0
        %3586 = vmatprep.mubr.f32.mxu0 0.0
        %3587 = vmatmul.mubr.f32.gmra.mrb[0].mxu0 %v3507
        %v3588 = vpop.f32.mrb[0].mxu0
        %v3589 = vadd.f32 0.0, %v3588
        %v3590 = vpop.f32.mrb[0].mxu0
        %3591 = vmatprep.mubr.f32.mxu0 0.0
        %3592 = vmatmul.mubr.f32.gmra.mrb[0].mxu0 %v3510
        %v3593 = vpop.f32.mrb[0].mxu0
        %v3594 = vadd.f32 0.0, %v3593
        %v3595 = vpop.f32.mrb[0].mxu0
        %3596 = vdwg.mxu0
        %v3597 = vld [vmem:[%s415 + $0x10] sm:$0xff]
        %v3599 = vsel %vm1102, %v3482, 0
        %v3602 = vsel %vm1102, %v3487, 0
        %v3605 = vsel %vm1102, %v3492, 0
        %v3608 = vsel %vm1102, %v3497, 0
        %v3611 = vsel %vm1102, %v3579, 0
        %v3614 = vsel %vm1102, %v3584, 0
        %v3617 = vsel %vm1102, %v3589, 0
        %v3620 = vsel %vm1102, %v3594, 0
        %3622 = vmatprep.subr.mxu0 0.0
        %3623 = vmatpush1.msra.mxu0 %v3597
        %3624 = vmatprep.subr.mxu0 0.0
        %3625 = vmatpush1.msra.mxu0 0.0
        %3626 = vmatprep.subr.mxu0 0.0
        %3627 = vmatpush1.msra.mxu0 0.0
        %3628 = vmatprep.subr.mxu0 0.0
        %3629 = vmatpush1.msra.mxu0 0.0
        %3630 = vmatprep.subr.mxu0 0.0
        %3631 = vmatpush1.msra.mxu0 0.0
        %3632 = vmatprep.subr.mxu0 0.0
        %3633 = vmatpush1.msra.mxu0 0.0
        %3634 = vmatprep.subr.mxu0 0.0
        %3635 = vmatpush1.msra.mxu0 0.0
        %3636 = vmatprep.subr.mxu0 0.0
        %3637 = vmatpush1.msra.mxu0 0.0
        %3638 = vmatprep.subr.mxu0 0.0
        %3639 = vmatpush1.msra.mxu0 0.0
        %3640 = vmatprep.subr.mxu0 0.0
        %3641 = vmatpush1.msra.mxu0 0.0
        %3642 = vmatprep.subr.mxu0 0.0
        %3643 = vmatpush1.msra.mxu0 0.0
        %3644 = vmatprep.subr.mxu0 0.0
        %3645 = vmatpush1.msra.mxu0 0.0
        %3646 = vmatprep.subr.mxu0 0.0
        %3647 = vmatpush1.msra.mxu0 0.0
        %3648 = vmatprep.subr.mxu0 0.0
        %3649 = vmatpush1.msra.mxu0 0.0
        %3650 = vmatprep.subr.mxu0 0.0
        %3651 = vmatpush1.msra.mxu0 0.0
        %3652 = vmatprep.subr.mxu0 0.0
        %3653 = vmatpush1.msra.mxu0 0.0
        %3654 = vmatprep.subr.mxu0 0.0
        %3655 = vmatpush1.msra.mxu0 0.0
        %3656 = vmatprep.subr.mxu0 0.0
        %3657 = vmatpush1.msra.mxu0 0.0
        %3658 = vmatprep.subr.mxu0 0.0
        %3659 = vmatpush1.msra.mxu0 0.0
        %3660 = vmatprep.subr.mxu0 0.0
        %3661 = vmatpush1.msra.mxu0 0.0
        %3662 = vmatprep.subr.mxu0 0.0
        %3663 = vmatpush1.msra.mxu0 0.0
        %3664 = vmatprep.subr.mxu0 0.0
        %3665 = vmatpush1.msra.mxu0 0.0
        %3666 = vmatprep.subr.mxu0 0.0
        %3667 = vmatpush1.msra.mxu0 0.0
        %3668 = vmatprep.subr.mxu0 0.0
        %3669 = vmatpush1.msra.mxu0 0.0
        %3670 = vmatprep.subr.mxu0 0.0
        %3671 = vmatpush1.msra.mxu0 0.0
        %3672 = vmatprep.subr.mxu0 0.0
        %3673 = vmatpush1.msra.mxu0 0.0
        %3674 = vmatprep.subr.mxu0 0.0
        %3675 = vmatpush1.msra.mxu0 0.0
        %3676 = vmatprep.subr.mxu0 0.0
        %3677 = vmatpush1.msra.mxu0 0.0
        %3678 = vmatprep.subr.mxu0 0.0
        %3679 = vmatpush1.msra.mxu0 0.0
        %3680 = vmatprep.subr.mxu0 0.0
        %3681 = vmatpush1.msra.mxu0 0.0
        %3682 = vmatprep.subr.mxu0 0.0
        %3683 = vmatpush1.msra.mxu0 0.0
        %3684 = vmatprep.subr.mxu0 0.0
        %3685 = vmatpush1.msra.mxu0 0.0
        %3686 = vmatprep.mubr.f32.mxu0 0.0
        %3687 = vmatmul.mubr.f32.gmra.mrb[0].mxu0 %v3599
        %v3688 = vpop.f32.mrb[0].mxu0
        %v3689 = vadd.f32 0.0, %v3688
        %v3690 = vpop.f32.mrb[0].mxu0
        %3691 = vmatprep.mubr.f32.mxu0 0.0
        %3692 = vmatmul.mubr.f32.gmra.mrb[0].mxu0 %v3602
        %v3693 = vpop.f32.mrb[0].mxu0
        %v3694 = vadd.f32 0.0, %v3693
        %v3695 = vpop.f32.mrb[0].mxu0
        %3696 = vmatprep.mubr.f32.mxu0 0.0
        %3697 = vmatmul.mubr.f32.gmra.mrb[0].mxu0 %v3605
        %v3698 = vpop.f32.mrb[0].mxu0
        %v3699 = vadd.f32 0.0, %v3698
        %v3700 = vpop.f32.mrb[0].mxu0
        %3701 = vmatprep.mubr.f32.mxu0 0.0
        %3702 = vmatmul.mubr.f32.gmra.mrb[0].mxu0 %v3608
        %v3703 = vpop.f32.mrb[0].mxu0
        %v3704 = vadd.f32 0.0, %v3703
        %v3705 = vpop.f32.mrb[0].mxu0
        %3706 = vmatprep.mubr.f32.mxu0 0.0
        %3707 = vmatmul.mubr.f32.gmra.mrb[0].mxu0 %v3611
        %v3708 = vpop.f32.mrb[0].mxu0
        %v3709 = vadd.f32 0.0, %v3708
        %v3710 = vpop.f32.mrb[0].mxu0
        %3711 = vmatprep.mubr.f32.mxu0 0.0
        %3712 = vmatmul.mubr.f32.gmra.mrb[0].mxu0 %v3614
        %v3713 = vpop.f32.mrb[0].mxu0
        %v3714 = vadd.f32 0.0, %v3713
        %v3715 = vpop.f32.mrb[0].mxu0
        %3716 = vmatprep.mubr.f32.mxu0 0.0
        %3717 = vmatmul.mubr.f32.gmra.mrb[0].mxu0 %v3617
        %v3718 = vpop.f32.mrb[0].mxu0
        %v3719 = vadd.f32 0.0, %v3718
        %v3720 = vpop.f32.mrb[0].mxu0
        %3721 = vmatprep.mubr.f32.mxu0 0.0
        %3722 = vmatmul.mubr.f32.gmra.mrb[0].mxu0 %v3620
        %v3723 = vpop.f32.mrb[0].mxu0
        %v3724 = vadd.f32 0.0, %v3723
        %v3725 = vpop.f32.mrb[0].mxu0
        %3726 = vdwg.mxu0
        %v3727 = vadd.f32 %v2701, %v3689
        %v3728 = vadd.f32 %v2706, %v3694
        %v3729 = vadd.f32 %v2711, %v3699
        %v3730 = vadd.f32 %v2716, %v3704
        %v3731 = vadd.f32 %v2721, %v3709
        %v3732 = vadd.f32 %v2726, %v3714
        %v3733 = vadd.f32 %v2731, %v3719
        %v3734 = vadd.f32 %v2736, %v3724
        %s3735 = scalar_lea.vmem %s410, 96
        %v3736 = vld [vmem:[%s3735] sm:$0xff]
        %v3737 = vld [vmem:[%s3735 + $0x8] sm:$0xff]
        %v3738 = vld [vmem:[%s3735 + $0x10] sm:$0xff]
        %v3739 = vld [vmem:[%s3735 + $0x18] sm:$0xff]
        %s3740 = scalar_lea.vmem %s410, 224
        %v3741 = vld [vmem:[%s3740] sm:$0xff]
        %v3742 = vld [vmem:[%s3740 + $0x8] sm:$0xff]
        %v3743 = vld [vmem:[%s3740 + $0x10] sm:$0xff]
        %v3744 = vld [vmem:[%s3740 + $0x18] sm:$0xff]
        %s3745 = scalar_lea.vmem %s410, 352
        %v3746 = vld [vmem:[%s3745] sm:$0xff]
        %v3747 = vld [vmem:[%s3745 + $0x8] sm:$0xff]
        %v3748 = vld [vmem:[%s3745 + $0x10] sm:$0xff]
        %v3749 = vld [vmem:[%s3745 + $0x18] sm:$0xff]
        %v3750 = vlaneseq
        %v3751 = vshrl.u32 %v3750, 7
        %v3752 = vsub.s32 5, %v3751
        %v3753 = vrot.slane %v601, %v3752
        %3754 = vmatprep.subr.mxu0 0.0
        %3755 = vmatpush1.msra.mxu0 %v3736
        %3756 = vmatprep.subr.mxu0 0.0
        %3757 = vmatpush1.msra.mxu0 %v3737
        %3758 = vmatprep.subr.mxu0 0.0
        %3759 = vmatpush1.msra.mxu0 %v3738
        %3760 = vmatprep.subr.mxu0 0.0
        %3761 = vmatpush1.msra.mxu0 %v3739
        %3762 = vmatprep.subr.mxu0 0.0
        %3763 = vmatpush1.msra.mxu0 0.0
        %3764 = vmatprep.subr.mxu0 0.0
        %3765 = vmatpush1.msra.mxu0 0.0
        %3766 = vmatprep.subr.mxu0 0.0
        %3767 = vmatpush1.msra.mxu0 0.0
        %3768 = vmatprep.subr.mxu0 0.0
        %3769 = vmatpush1.msra.mxu0 0.0
        %3770 = vmatprep.subr.mxu0 0.0
        %3771 = vmatpush1.msra.mxu0 0.0
        %3772 = vmatprep.subr.mxu0 0.0
        %3773 = vmatpush1.msra.mxu0 0.0
        %3774 = vmatprep.subr.mxu0 0.0
        %3775 = vmatpush1.msra.mxu0 0.0
        %3776 = vmatprep.subr.mxu0 0.0
        %3777 = vmatpush1.msra.mxu0 0.0
        %3778 = vmatprep.subr.mxu0 0.0
        %3779 = vmatpush1.msra.mxu0 0.0
        %3780 = vmatprep.subr.mxu0 0.0
        %3781 = vmatpush1.msra.mxu0 0.0
        %3782 = vmatprep.subr.mxu0 0.0
        %3783 = vmatpush1.msra.mxu0 0.0
        %3784 = vmatprep.subr.mxu0 0.0
        %3785 = vmatpush1.msra.mxu0 0.0
        %3786 = vmatprep.subr.mxu0 0.0
        %3787 = vmatpush1.msra.mxu0 0.0
        %3788 = vmatprep.subr.mxu0 0.0
        %3789 = vmatpush1.msra.mxu0 0.0
        %3790 = vmatprep.subr.mxu0 0.0
        %3791 = vmatpush1.msra.mxu0 0.0
        %3792 = vmatprep.subr.mxu0 0.0
        %3793 = vmatpush1.msra.mxu0 0.0
        %3794 = vmatprep.subr.mxu0 0.0
        %3795 = vmatpush1.msra.mxu0 0.0
        %3796 = vmatprep.subr.mxu0 0.0
        %3797 = vmatpush1.msra.mxu0 0.0
        %3798 = vmatprep.subr.mxu0 0.0
        %3799 = vmatpush1.msra.mxu0 0.0
        %3800 = vmatprep.subr.mxu0 0.0
        %3801 = vmatpush1.msra.mxu0 0.0
        %3802 = vmatprep.subr.mxu0 0.0
        %3803 = vmatpush1.msra.mxu0 0.0
        %3804 = vmatprep.subr.mxu0 0.0
        %3805 = vmatpush1.msra.mxu0 0.0
        %3806 = vmatprep.subr.mxu0 0.0
        %3807 = vmatpush1.msra.mxu0 0.0
        %3808 = vmatprep.subr.mxu0 0.0
        %3809 = vmatpush1.msra.mxu0 0.0
        %3810 = vmatprep.subr.mxu0 0.0
        %3811 = vmatpush1.msra.mxu0 0.0
        %3812 = vmatprep.subr.mxu0 0.0
        %3813 = vmatpush1.msra.mxu0 0.0
        %3814 = vmatprep.subr.mxu0 0.0
        %3815 = vmatpush1.msra.mxu0 0.0
        %3816 = vmatprep.subr.mxu0 0.0
        %3817 = vmatpush1.msra.mxu0 0.0
        %3818 = vmatprep.mubr.f32.mxu0 0.0
        %3819 = vmatmul.mubr.f32.gmra.mrb[0].mxu0 %v756
        %v3820 = vpop.f32.mrb[0].mxu0
        %v3821 = vadd.f32 %v3753, %v3820
        %v3822 = vpop.f32.mrb[0].mxu0
        %3823 = vmatprep.mubr.f32.mxu0 0.0
        %3824 = vmatmul.mubr.f32.gmra.mrb[0].mxu0 %v759
        %v3825 = vpop.f32.mrb[0].mxu0
        %v3826 = vadd.f32 %v3753, %v3825
        %v3827 = vpop.f32.mrb[0].mxu0
        %3828 = vmatprep.mubr.f32.mxu0 0.0
        %3829 = vmatmul.mubr.f32.gmra.mrb[0].mxu0 %v762
        %v3830 = vpop.f32.mrb[0].mxu0
        %v3831 = vadd.f32 %v3753, %v3830
        %v3832 = vpop.f32.mrb[0].mxu0
        %3833 = vmatprep.mubr.f32.mxu0 0.0
        %3834 = vmatmul.mubr.f32.gmra.mrb[0].mxu0 %v765
        %v3835 = vpop.f32.mrb[0].mxu0
        %v3836 = vadd.f32 %v3753, %v3835
        %v3837 = vpop.f32.mrb[0].mxu0
        %3838 = vmatprep.mubr.f32.mxu0 0.0
        %3839 = vmatmul.mubr.f32.gmra.mrb[0].mxu0 %v768
        %v3840 = vpop.f32.mrb[0].mxu0
        %v3841 = vadd.f32 %v3753, %v3840
        %v3842 = vpop.f32.mrb[0].mxu0
        %3843 = vmatprep.mubr.f32.mxu0 0.0
        %3844 = vmatmul.mubr.f32.gmra.mrb[0].mxu0 %v771
        %v3845 = vpop.f32.mrb[0].mxu0
        %v3846 = vadd.f32 %v3753, %v3845
        %v3847 = vpop.f32.mrb[0].mxu0
        %3848 = vmatprep.mubr.f32.mxu0 0.0
        %3849 = vmatmul.mubr.f32.gmra.mrb[0].mxu0 %v774
        %v3850 = vpop.f32.mrb[0].mxu0
        %v3851 = vadd.f32 %v3753, %v3850
        %v3852 = vpop.f32.mrb[0].mxu0
        %3853 = vmatprep.mubr.f32.mxu0 0.0
        %3854 = vmatmul.mubr.f32.gmra.mrb[0].mxu0 %v777
        %v3855 = vpop.f32.mrb[0].mxu0
        %v3856 = vadd.f32 %v3753, %v3855
        %v3857 = vpop.f32.mrb[0].mxu0
        %3858 = vdwg.mxu0
        %v3859 = vlaneseq
        %v3860 = vshrl.u32 %v3859, 7
        %v3861 = vsub.s32 1, %v3860
        %v3862 = vrot.slane %v602, %v3861
        %3863 = vmatprep.subr.mxu0 0.0
        %3864 = vmatpush1.msra.mxu0 %v3741
        %3865 = vmatprep.subr.mxu0 0.0
        %3866 = vmatpush1.msra.mxu0 %v3742
        %3867 = vmatprep.subr.mxu0 0.0
        %3868 = vmatpush1.msra.mxu0 %v3743
        %3869 = vmatprep.subr.mxu0 0.0
        %3870 = vmatpush1.msra.mxu0 %v3744
        %3871 = vmatprep.subr.mxu0 0.0
        %3872 = vmatpush1.msra.mxu0 0.0
        %3873 = vmatprep.subr.mxu0 0.0
        %3874 = vmatpush1.msra.mxu0 0.0
        %3875 = vmatprep.subr.mxu0 0.0
        %3876 = vmatpush1.msra.mxu0 0.0
        %3877 = vmatprep.subr.mxu0 0.0
        %3878 = vmatpush1.msra.mxu0 0.0
        %3879 = vmatprep.subr.mxu0 0.0
        %3880 = vmatpush1.msra.mxu0 0.0
        %3881 = vmatprep.subr.mxu0 0.0
        %3882 = vmatpush1.msra.mxu0 0.0
        %3883 = vmatprep.subr.mxu0 0.0
        %3884 = vmatpush1.msra.mxu0 0.0
        %3885 = vmatprep.subr.mxu0 0.0
        %3886 = vmatpush1.msra.mxu0 0.0
        %3887 = vmatprep.subr.mxu0 0.0
        %3888 = vmatpush1.msra.mxu0 0.0
        %3889 = vmatprep.subr.mxu0 0.0
        %3890 = vmatpush1.msra.mxu0 0.0
        %3891 = vmatprep.subr.mxu0 0.0
        %3892 = vmatpush1.msra.mxu0 0.0
        %3893 = vmatprep.subr.mxu0 0.0
        %3894 = vmatpush1.msra.mxu0 0.0
        %3895 = vmatprep.subr.mxu0 0.0
        %3896 = vmatpush1.msra.mxu0 0.0
        %3897 = vmatprep.subr.mxu0 0.0
        %3898 = vmatpush1.msra.mxu0 0.0
        %3899 = vmatprep.subr.mxu0 0.0
        %3900 = vmatpush1.msra.mxu0 0.0
        %3901 = vmatprep.subr.mxu0 0.0
        %3902 = vmatpush1.msra.mxu0 0.0
        %3903 = vmatprep.subr.mxu0 0.0
        %3904 = vmatpush1.msra.mxu0 0.0
        %3905 = vmatprep.subr.mxu0 0.0
        %3906 = vmatpush1.msra.mxu0 0.0
        %3907 = vmatprep.subr.mxu0 0.0
        %3908 = vmatpush1.msra.mxu0 0.0
        %3909 = vmatprep.subr.mxu0 0.0
        %3910 = vmatpush1.msra.mxu0 0.0
        %3911 = vmatprep.subr.mxu0 0.0
        %3912 = vmatpush1.msra.mxu0 0.0
        %3913 = vmatprep.subr.mxu0 0.0
        %3914 = vmatpush1.msra.mxu0 0.0
        %3915 = vmatprep.subr.mxu0 0.0
        %3916 = vmatpush1.msra.mxu0 0.0
        %3917 = vmatprep.subr.mxu0 0.0
        %3918 = vmatpush1.msra.mxu0 0.0
        %3919 = vmatprep.subr.mxu0 0.0
        %3920 = vmatpush1.msra.mxu0 0.0
        %3921 = vmatprep.subr.mxu0 0.0
        %3922 = vmatpush1.msra.mxu0 0.0
        %3923 = vmatprep.subr.mxu0 0.0
        %3924 = vmatpush1.msra.mxu0 0.0
        %3925 = vmatprep.subr.mxu0 0.0
        %3926 = vmatpush1.msra.mxu0 0.0
        %3927 = vmatprep.mubr.f32.mxu0 0.0
        %3928 = vmatmul.mubr.f32.gmra.mrb[0].mxu0 %v756
        %v3929 = vpop.f32.mrb[0].mxu0
        %v3930 = vadd.f32 %v3862, %v3929
        %v3931 = vpop.f32.mrb[0].mxu0
        %3932 = vmatprep.mubr.f32.mxu0 0.0
        %3933 = vmatmul.mubr.f32.gmra.mrb[0].mxu0 %v759
        %v3934 = vpop.f32.mrb[0].mxu0
        %v3935 = vadd.f32 %v3862, %v3934
        %v3936 = vpop.f32.mrb[0].mxu0
        %3937 = vmatprep.mubr.f32.mxu0 0.0
        %3938 = vmatmul.mubr.f32.gmra.mrb[0].mxu0 %v762
        %v3939 = vpop.f32.mrb[0].mxu0
        %v3940 = vadd.f32 %v3862, %v3939
        %v3941 = vpop.f32.mrb[0].mxu0
        %3942 = vmatprep.mubr.f32.mxu0 0.0
        %3943 = vmatmul.mubr.f32.gmra.mrb[0].mxu0 %v765
        %v3944 = vpop.f32.mrb[0].mxu0
        %v3945 = vadd.f32 %v3862, %v3944
        %v3946 = vpop.f32.mrb[0].mxu0
        %3947 = vmatprep.mubr.f32.mxu0 0.0
        %3948 = vmatmul.mubr.f32.gmra.mrb[0].mxu0 %v768
        %v3949 = vpop.f32.mrb[0].mxu0
        %v3950 = vadd.f32 %v3862, %v3949
        %v3951 = vpop.f32.mrb[0].mxu0
        %3952 = vmatprep.mubr.f32.mxu0 0.0
        %3953 = vmatmul.mubr.f32.gmra.mrb[0].mxu0 %v771
        %v3954 = vpop.f32.mrb[0].mxu0
        %v3955 = vadd.f32 %v3862, %v3954
        %v3956 = vpop.f32.mrb[0].mxu0
        %3957 = vmatprep.mubr.f32.mxu0 0.0
        %3958 = vmatmul.mubr.f32.gmra.mrb[0].mxu0 %v774
        %v3959 = vpop.f32.mrb[0].mxu0
        %v3960 = vadd.f32 %v3862, %v3959
        %v3961 = vpop.f32.mrb[0].mxu0
        %3962 = vmatprep.mubr.f32.mxu0 0.0
        %3963 = vmatmul.mubr.f32.gmra.mrb[0].mxu0 %v777
        %v3964 = vpop.f32.mrb[0].mxu0
        %v3965 = vadd.f32 %v3862, %v3964
        %v3966 = vpop.f32.mrb[0].mxu0
        %3967 = vdwg.mxu0
        %v3968 = vlaneseq
        %v3969 = vshrl.u32 %v3968, 7
        %v3970 = vsub.s32 5, %v3969
        %v3971 = vrot.slane %v602, %v3970
        %3972 = vmatprep.subr.mxu0 0.0
        %3973 = vmatpush1.msra.mxu0 %v3746
        %3974 = vmatprep.subr.mxu0 0.0
        %3975 = vmatpush1.msra.mxu0 %v3747
        %3976 = vmatprep.subr.mxu0 0.0
        %3977 = vmatpush1.msra.mxu0 %v3748
        %3978 = vmatprep.subr.mxu0 0.0
        %3979 = vmatpush1.msra.mxu0 %v3749
        %3980 = vmatprep.subr.mxu0 0.0
        %3981 = vmatpush1.msra.mxu0 0.0
        %3982 = vmatprep.subr.mxu0 0.0
        %3983 = vmatpush1.msra.mxu0 0.0
        %3984 = vmatprep.subr.mxu0 0.0
        %3985 = vmatpush1.msra.mxu0 0.0
        %3986 = vmatprep.subr.mxu0 0.0
        %3987 = vmatpush1.msra.mxu0 0.0
        %3988 = vmatprep.subr.mxu0 0.0
        %3989 = vmatpush1.msra.mxu0 0.0
        %3990 = vmatprep.subr.mxu0 0.0
        %3991 = vmatpush1.msra.mxu0 0.0
        %3992 = vmatprep.subr.mxu0 0.0
        %3993 = vmatpush1.msra.mxu0 0.0
        %3994 = vmatprep.subr.mxu0 0.0
        %3995 = vmatpush1.msra.mxu0 0.0
        %3996 = vmatprep.subr.mxu0 0.0
        %3997 = vmatpush1.msra.mxu0 0.0
        %3998 = vmatprep.subr.mxu0 0.0
        %3999 = vmatpush1.msra.mxu0 0.0
        %4000 = vmatprep.subr.mxu0 0.0
        %4001 = vmatpush1.msra.mxu0 0.0
        %4002 = vmatprep.subr.mxu0 0.0
        %4003 = vmatpush1.msra.mxu0 0.0
        %4004 = vmatprep.subr.mxu0 0.0
        %4005 = vmatpush1.msra.mxu0 0.0
        %4006 = vmatprep.subr.mxu0 0.0
        %4007 = vmatpush1.msra.mxu0 0.0
        %4008 = vmatprep.subr.mxu0 0.0
        %4009 = vmatpush1.msra.mxu0 0.0
        %4010 = vmatprep.subr.mxu0 0.0
        %4011 = vmatpush1.msra.mxu0 0.0
        %4012 = vmatprep.subr.mxu0 0.0
        %4013 = vmatpush1.msra.mxu0 0.0
        %4014 = vmatprep.subr.mxu0 0.0
        %4015 = vmatpush1.msra.mxu0 0.0
        %4016 = vmatprep.subr.mxu0 0.0
        %4017 = vmatpush1.msra.mxu0 0.0
        %4018 = vmatprep.subr.mxu0 0.0
        %4019 = vmatpush1.msra.mxu0 0.0
        %4020 = vmatprep.subr.mxu0 0.0
        %4021 = vmatpush1.msra.mxu0 0.0
        %4022 = vmatprep.subr.mxu0 0.0
        %4023 = vmatpush1.msra.mxu0 0.0
        %4024 = vmatprep.subr.mxu0 0.0
        %4025 = vmatpush1.msra.mxu0 0.0
        %4026 = vmatprep.subr.mxu0 0.0
        %4027 = vmatpush1.msra.mxu0 0.0
        %4028 = vmatprep.subr.mxu0 0.0
        %4029 = vmatpush1.msra.mxu0 0.0
        %4030 = vmatprep.subr.mxu0 0.0
        %4031 = vmatpush1.msra.mxu0 0.0
        %4032 = vmatprep.subr.mxu0 0.0
        %4033 = vmatpush1.msra.mxu0 0.0
        %4034 = vmatprep.subr.mxu0 0.0
        %4035 = vmatpush1.msra.mxu0 0.0
        %4036 = vmatprep.mubr.f32.mxu0 0.0
        %4037 = vmatmul.mubr.f32.gmra.mrb[0].mxu0 %v756
        %v4038 = vpop.f32.mrb[0].mxu0
        %v4039 = vadd.f32 %v3971, %v4038
        %v4040 = vpop.f32.mrb[0].mxu0
        %4041 = vmatprep.mubr.f32.mxu0 0.0
        %4042 = vmatmul.mubr.f32.gmra.mrb[0].mxu0 %v759
        %v4043 = vpop.f32.mrb[0].mxu0
        %v4044 = vadd.f32 %v3971, %v4043
        %v4045 = vpop.f32.mrb[0].mxu0
        %4046 = vmatprep.mubr.f32.mxu0 0.0
        %4047 = vmatmul.mubr.f32.gmra.mrb[0].mxu0 %v762
        %v4048 = vpop.f32.mrb[0].mxu0
        %v4049 = vadd.f32 %v3971, %v4048
        %v4050 = vpop.f32.mrb[0].mxu0
        %4051 = vmatprep.mubr.f32.mxu0 0.0
        %4052 = vmatmul.mubr.f32.gmra.mrb[0].mxu0 %v765
        %v4053 = vpop.f32.mrb[0].mxu0
        %v4054 = vadd.f32 %v3971, %v4053
        %v4055 = vpop.f32.mrb[0].mxu0
        %4056 = vmatprep.mubr.f32.mxu0 0.0
        %4057 = vmatmul.mubr.f32.gmra.mrb[0].mxu0 %v768
        %v4058 = vpop.f32.mrb[0].mxu0
        %v4059 = vadd.f32 %v3971, %v4058
        %v4060 = vpop.f32.mrb[0].mxu0
        %4061 = vmatprep.mubr.f32.mxu0 0.0
        %4062 = vmatmul.mubr.f32.gmra.mrb[0].mxu0 %v771
        %v4063 = vpop.f32.mrb[0].mxu0
        %v4064 = vadd.f32 %v3971, %v4063
        %v4065 = vpop.f32.mrb[0].mxu0
        %4066 = vmatprep.mubr.f32.mxu0 0.0
        %4067 = vmatmul.mubr.f32.gmra.mrb[0].mxu0 %v774
        %v4068 = vpop.f32.mrb[0].mxu0
        %v4069 = vadd.f32 %v3971, %v4068
        %v4070 = vpop.f32.mrb[0].mxu0
        %4071 = vmatprep.mubr.f32.mxu0 0.0
        %4072 = vmatmul.mubr.f32.gmra.mrb[0].mxu0 %v777
        %v4073 = vpop.f32.mrb[0].mxu0
        %v4074 = vadd.f32 %v3971, %v4073
        %v4075 = vpop.f32.mrb[0].mxu0
        %4076 = vdwg.mxu0
        %v4078 = vsel %vm1102, %v3821, 0
        %v4081 = vsel %vm1102, %v3826, 0
        %v4084 = vsel %vm1102, %v3831, 0
        %v4087 = vsel %vm1102, %v3836, 0
        %v4090 = vsel %vm1102, %v3930, 0
        %v4093 = vsel %vm1102, %v3935, 0
        %v4096 = vsel %vm1102, %v3940, 0
        %v4099 = vsel %vm1102, %v3945, 0
        %4101 = vmatprep.subr.mxu0 0.0
        %4102 = vmatpush1.xpose.msra.mxu0 %v4090
        %4103 = vmatprep.subr.mxu0 0.0
        %4104 = vmatpush1.xpose.msra.mxu0 %v4093
        %4105 = vmatprep.subr.mxu0 0.0
        %4106 = vmatpush1.xpose.msra.mxu0 %v4096
        %4107 = vmatprep.subr.mxu0 0.0
        %4108 = vmatpush1.xpose.msra.mxu0 %v4099
        %4109 = vmatprep.subr.mxu0 0.0
        %4110 = vmatpush1.xpose.msra.mxu0 0.0
        %4111 = vmatprep.subr.mxu0 0.0
        %4112 = vmatpush1.xpose.msra.mxu0 0.0
        %4113 = vmatprep.subr.mxu0 0.0
        %4114 = vmatpush1.xpose.msra.mxu0 0.0
        %4115 = vmatprep.subr.mxu0 0.0
        %4116 = vmatpush1.xpose.msra.mxu0 0.0
        %4117 = vmatprep.subr.mxu0 0.0
        %4118 = vmatpush1.xpose.msra.mxu0 0.0
        %4119 = vmatprep.subr.mxu0 0.0
        %4120 = vmatpush1.xpose.msra.mxu0 0.0
        %4121 = vmatprep.subr.mxu0 0.0
        %4122 = vmatpush1.xpose.msra.mxu0 0.0
        %4123 = vmatprep.subr.mxu0 0.0
        %4124 = vmatpush1.xpose.msra.mxu0 0.0
        %4125 = vmatprep.subr.mxu0 0.0
        %4126 = vmatpush1.xpose.msra.mxu0 0.0
        %4127 = vmatprep.subr.mxu0 0.0
        %4128 = vmatpush1.xpose.msra.mxu0 0.0
        %4129 = vmatprep.subr.mxu0 0.0
        %4130 = vmatpush1.xpose.msra.mxu0 0.0
        %4131 = vmatprep.subr.mxu0 0.0
        %4132 = vmatpush1.xpose.msra.mxu0 0.0
        %4133 = vmatprep.subr.mxu0 0.0
        %4134 = vmatpush1.xpose.msra.mxu0 0.0
        %4135 = vmatprep.subr.mxu0 0.0
        %4136 = vmatpush1.xpose.msra.mxu0 0.0
        %4137 = vmatprep.subr.mxu0 0.0
        %4138 = vmatpush1.xpose.msra.mxu0 0.0
        %4139 = vmatprep.subr.mxu0 0.0
        %4140 = vmatpush1.xpose.msra.mxu0 0.0
        %4141 = vmatprep.subr.mxu0 0.0
        %4142 = vmatpush1.xpose.msra.mxu0 0.0
        %4143 = vmatprep.subr.mxu0 0.0
        %4144 = vmatpush1.xpose.msra.mxu0 0.0
        %4145 = vmatprep.subr.mxu0 0.0
        %4146 = vmatpush1.xpose.msra.mxu0 0.0
        %4147 = vmatprep.subr.mxu0 0.0
        %4148 = vmatpush1.xpose.msra.mxu0 0.0
        %4149 = vmatprep.subr.mxu0 0.0
        %4150 = vmatpush1.xpose.msra.mxu0 0.0
        %4151 = vmatprep.subr.mxu0 0.0
        %4152 = vmatpush1.xpose.msra.mxu0 0.0
        %4153 = vmatprep.subr.mxu0 0.0
        %4154 = vmatpush1.xpose.msra.mxu0 0.0
        %4155 = vmatprep.subr.mxu0 0.0
        %4156 = vmatpush1.xpose.msra.mxu0 0.0
        %4157 = vmatprep.subr.mxu0 0.0
        %4158 = vmatpush1.xpose.msra.mxu0 0.0
        %4159 = vmatprep.subr.mxu0 0.0
        %4160 = vmatpush1.xpose.msra.mxu0 0.0
        %4161 = vmatprep.subr.mxu0 0.0
        %4162 = vmatpush1.xpose.msra.mxu0 0.0
        %4163 = vmatprep.subr.mxu0 0.0
        %4164 = vmatpush1.xpose.msra.mxu0 0.0
        %4165 = vmatprep.mubr.f32.mxu0 0.0
        %4166 = vmatmul.mubr.f32.gmra.mrb[0].mxu0 %v4078
        %v4167 = vpop.f32.mrb[0].mxu0
        %v4168 = vadd.f32 0.0, %v4167
        %v4169 = vpop.f32.mrb[0].mxu0
        %4170 = vmatprep.mubr.f32.mxu0 0.0
        %4171 = vmatmul.mubr.f32.gmra.mrb[0].mxu0 %v4081
        %v4172 = vpop.f32.mrb[0].mxu0
        %v4173 = vadd.f32 0.0, %v4172
        %v4174 = vpop.f32.mrb[0].mxu0
        %4175 = vmatprep.mubr.f32.mxu0 0.0
        %4176 = vmatmul.mubr.f32.gmra.mrb[0].mxu0 %v4084
        %v4177 = vpop.f32.mrb[0].mxu0
        %v4178 = vadd.f32 0.0, %v4177
        %v4179 = vpop.f32.mrb[0].mxu0
        %4180 = vmatprep.mubr.f32.mxu0 0.0
        %4181 = vmatmul.mubr.f32.gmra.mrb[0].mxu0 %v4087
        %v4182 = vpop.f32.mrb[0].mxu0
        %v4183 = vadd.f32 0.0, %v4182
        %v4184 = vpop.f32.mrb[0].mxu0
        %4185 = vdwg.mxu0
        %v4187 = vsel %vm1102, %v3841, 0
        %v4190 = vsel %vm1102, %v3846, 0
        %v4193 = vsel %vm1102, %v3851, 0
        %v4196 = vsel %vm1102, %v3856, 0
        %v4199 = vsel %vm1102, %v3950, 0
        %v4202 = vsel %vm1102, %v3955, 0
        %v4205 = vsel %vm1102, %v3960, 0
        %v4208 = vsel %vm1102, %v3965, 0
        %4210 = vmatprep.subr.mxu0 0.0
        %4211 = vmatpush1.xpose.msra.mxu0 %v4199
        %4212 = vmatprep.subr.mxu0 0.0
        %4213 = vmatpush1.xpose.msra.mxu0 %v4202
        %4214 = vmatprep.subr.mxu0 0.0
        %4215 = vmatpush1.xpose.msra.mxu0 %v4205
        %4216 = vmatprep.subr.mxu0 0.0
        %4217 = vmatpush1.xpose.msra.mxu0 %v4208
        %4218 = vmatprep.subr.mxu0 0.0
        %4219 = vmatpush1.xpose.msra.mxu0 0.0
        %4220 = vmatprep.subr.mxu0 0.0
        %4221 = vmatpush1.xpose.msra.mxu0 0.0
        %4222 = vmatprep.subr.mxu0 0.0
        %4223 = vmatpush1.xpose.msra.mxu0 0.0
        %4224 = vmatprep.subr.mxu0 0.0
        %4225 = vmatpush1.xpose.msra.mxu0 0.0
        %4226 = vmatprep.subr.mxu0 0.0
        %4227 = vmatpush1.xpose.msra.mxu0 0.0
        %4228 = vmatprep.subr.mxu0 0.0
        %4229 = vmatpush1.xpose.msra.mxu0 0.0
        %4230 = vmatprep.subr.mxu0 0.0
        %4231 = vmatpush1.xpose.msra.mxu0 0.0
        %4232 = vmatprep.subr.mxu0 0.0
        %4233 = vmatpush1.xpose.msra.mxu0 0.0
        %4234 = vmatprep.subr.mxu0 0.0
        %4235 = vmatpush1.xpose.msra.mxu0 0.0
        %4236 = vmatprep.subr.mxu0 0.0
        %4237 = vmatpush1.xpose.msra.mxu0 0.0
        %4238 = vmatprep.subr.mxu0 0.0
        %4239 = vmatpush1.xpose.msra.mxu0 0.0
        %4240 = vmatprep.subr.mxu0 0.0
        %4241 = vmatpush1.xpose.msra.mxu0 0.0
        %4242 = vmatprep.subr.mxu0 0.0
        %4243 = vmatpush1.xpose.msra.mxu0 0.0
        %4244 = vmatprep.subr.mxu0 0.0
        %4245 = vmatpush1.xpose.msra.mxu0 0.0
        %4246 = vmatprep.subr.mxu0 0.0
        %4247 = vmatpush1.xpose.msra.mxu0 0.0
        %4248 = vmatprep.subr.mxu0 0.0
        %4249 = vmatpush1.xpose.msra.mxu0 0.0
        %4250 = vmatprep.subr.mxu0 0.0
        %4251 = vmatpush1.xpose.msra.mxu0 0.0
        %4252 = vmatprep.subr.mxu0 0.0
        %4253 = vmatpush1.xpose.msra.mxu0 0.0
        %4254 = vmatprep.subr.mxu0 0.0
        %4255 = vmatpush1.xpose.msra.mxu0 0.0
        %4256 = vmatprep.subr.mxu0 0.0
        %4257 = vmatpush1.xpose.msra.mxu0 0.0
        %4258 = vmatprep.subr.mxu0 0.0
        %4259 = vmatpush1.xpose.msra.mxu0 0.0
        %4260 = vmatprep.subr.mxu0 0.0
        %4261 = vmatpush1.xpose.msra.mxu0 0.0
        %4262 = vmatprep.subr.mxu0 0.0
        %4263 = vmatpush1.xpose.msra.mxu0 0.0
        %4264 = vmatprep.subr.mxu0 0.0
        %4265 = vmatpush1.xpose.msra.mxu0 0.0
        %4266 = vmatprep.subr.mxu0 0.0
        %4267 = vmatpush1.xpose.msra.mxu0 0.0
        %4268 = vmatprep.subr.mxu0 0.0
        %4269 = vmatpush1.xpose.msra.mxu0 0.0
        %4270 = vmatprep.subr.mxu0 0.0
        %4271 = vmatpush1.xpose.msra.mxu0 0.0
        %4272 = vmatprep.subr.mxu0 0.0
        %4273 = vmatpush1.xpose.msra.mxu0 0.0
        %4274 = vmatprep.mubr.f32.mxu0 0.0
        %4275 = vmatmul.mubr.f32.gmra.mrb[0].mxu0 %v4187
        %v4276 = vpop.f32.mrb[0].mxu0
        %v4277 = vadd.f32 0.0, %v4276
        %v4278 = vpop.f32.mrb[0].mxu0
        %4279 = vmatprep.mubr.f32.mxu0 0.0
        %4280 = vmatmul.mubr.f32.gmra.mrb[0].mxu0 %v4190
        %v4281 = vpop.f32.mrb[0].mxu0
        %v4282 = vadd.f32 0.0, %v4281
        %v4283 = vpop.f32.mrb[0].mxu0
        %4284 = vmatprep.mubr.f32.mxu0 0.0
        %4285 = vmatmul.mubr.f32.gmra.mrb[0].mxu0 %v4193
        %v4286 = vpop.f32.mrb[0].mxu0
        %v4287 = vadd.f32 0.0, %v4286
        %v4288 = vpop.f32.mrb[0].mxu0
        %4289 = vmatprep.mubr.f32.mxu0 0.0
        %4290 = vmatmul.mubr.f32.gmra.mrb[0].mxu0 %v4196
        %v4291 = vpop.f32.mrb[0].mxu0
        %v4292 = vadd.f32 0.0, %v4291
        %v4293 = vpop.f32.mrb[0].mxu0
        %4294 = vdwg.mxu0
        %v4295 = vmul.f32 %v4168, 0.35355338
        %v4296 = vmul.f32 %v4173, 0.35355338
        %v4297 = vmul.f32 %v4178, 0.35355338
        %v4298 = vmul.f32 %v4183, 0.35355338
        %v4299 = vmul.f32 %v4277, 0.35355338
        %v4300 = vmul.f32 %v4282, 0.35355338
        %v4301 = vmul.f32 %v4287, 0.35355338
        %v4302 = vmul.f32 %v4292, 0.35355338
        %v4303 = vsel %vm1330, %v4295, -1e+30
        %v4304 = vsel %vm1330, %v4296, -1e+30
        %v4305 = vsel %vm1330, %v4297, -1e+30
        %v4306 = vsel %vm1330, %v4298, -1e+30
        %v4307 = vsel %vm1330, %v4299, -1e+30
        %v4308 = vsel %vm1330, %v4300, -1e+30
        %v4309 = vsel %vm1330, %v4301, -1e+30
        %v4310 = vsel %vm1330, %v4302, -1e+30
        %v4311 = vsel %vm604, %v4303, -inf
        %4312 = vmax.xlane.f32.xlu0 %v4311
        %v4313 = vpop.xlane.xlu0 %4312
        %v4314 = vsel %vm604, %v4304, -inf
        %4315 = vmax.xlane.f32.xlu0 %v4314
        %v4316 = vpop.xlane.xlu0 %4315
        %v4317 = vsel %vm604, %v4305, -inf
        %4318 = vmax.xlane.f32.xlu0 %v4317
        %v4319 = vpop.xlane.xlu0 %4318
        %v4320 = vsel %vm604, %v4306, -inf
        %4321 = vmax.xlane.f32.xlu0 %v4320
        %v4322 = vpop.xlane.xlu0 %4321
        %v4323 = vsel %vm604, %v4307, -inf
        %4324 = vmax.xlane.f32.xlu0 %v4323
        %v4325 = vpop.xlane.xlu0 %4324
        %v4326 = vsel %vm604, %v4308, -inf
        %4327 = vmax.xlane.f32.xlu0 %v4326
        %v4328 = vpop.xlane.xlu0 %4327
        %v4329 = vsel %vm604, %v4309, -inf
        %4330 = vmax.xlane.f32.xlu0 %v4329
        %v4331 = vpop.xlane.xlu0 %4330
        %v4332 = vsel %vm604, %v4310, -inf
        %4333 = vmax.xlane.f32.xlu0 %v4332
        %v4334 = vpop.xlane.xlu0 %4333
        %v4335 = vsub.f32 %v4303, %v4313
        %v4336 = vsub.f32 %v4304, %v4316
        %v4337 = vsub.f32 %v4305, %v4319
        %v4338 = vsub.f32 %v4306, %v4322
        %v4339 = vsub.f32 %v4307, %v4325
        %v4340 = vsub.f32 %v4308, %v4328
        %v4341 = vsub.f32 %v4309, %v4331
        %v4342 = vsub.f32 %v4310, %v4334
        %v4343 = vmul.f32 %v4335, 1.442695
        %v4344 = vpow.pop %v4343
        %v4345 = vmul.f32 %v4336, 1.442695
        %v4346 = vpow.pop %v4345
        %v4347 = vmul.f32 %v4337, 1.442695
        %v4348 = vpow.pop %v4347
        %v4349 = vmul.f32 %v4338, 1.442695
        %v4350 = vpow.pop %v4349
        %v4351 = vmul.f32 %v4339, 1.442695
        %v4352 = vpow.pop %v4351
        %v4353 = vmul.f32 %v4340, 1.442695
        %v4354 = vpow.pop %v4353
        %v4355 = vmul.f32 %v4341, 1.442695
        %v4356 = vpow.pop %v4355
        %v4357 = vmul.f32 %v4342, 1.442695
        %v4358 = vpow.pop %v4357
        %v4359 = vsel %vm604, %v4344, 0.0
        %4360 = vadd.xlane.f32.xlu0 %v4359
        %v4361 = vpop.xlane.xlu0 %4360
        %v4362 = vsel %vm604, %v4346, 0.0
        %4363 = vadd.xlane.f32.xlu0 %v4362
        %v4364 = vpop.xlane.xlu0 %4363
        %v4365 = vsel %vm604, %v4348, 0.0
        %4366 = vadd.xlane.f32.xlu0 %v4365
        %v4367 = vpop.xlane.xlu0 %4366
        %v4368 = vsel %vm604, %v4350, 0.0
        %4369 = vadd.xlane.f32.xlu0 %v4368
        %v4370 = vpop.xlane.xlu0 %4369
        %v4371 = vsel %vm604, %v4352, 0.0
        %4372 = vadd.xlane.f32.xlu0 %v4371
        %v4373 = vpop.xlane.xlu0 %4372
        %v4374 = vsel %vm604, %v4354, 0.0
        %4375 = vadd.xlane.f32.xlu0 %v4374
        %v4376 = vpop.xlane.xlu0 %4375
        %v4377 = vsel %vm604, %v4356, 0.0
        %4378 = vadd.xlane.f32.xlu0 %v4377
        %v4379 = vpop.xlane.xlu0 %4378
        %v4380 = vsel %vm604, %v4358, 0.0
        %4381 = vadd.xlane.f32.xlu0 %v4380
        %v4382 = vpop.xlane.xlu0 %4381
        %v4383 = vrcp.pop %v4361
        %v4384 = vmul.f32 %v4344, %v4383
        %v4385 = vrcp.pop %v4364
        %v4386 = vmul.f32 %v4346, %v4385
        %v4387 = vrcp.pop %v4367
        %v4388 = vmul.f32 %v4348, %v4387
        %v4389 = vrcp.pop %v4370
        %v4390 = vmul.f32 %v4350, %v4389
        %v4391 = vrcp.pop %v4373
        %v4392 = vmul.f32 %v4352, %v4391
        %v4393 = vrcp.pop %v4376
        %v4394 = vmul.f32 %v4354, %v4393
        %v4395 = vrcp.pop %v4379
        %v4396 = vmul.f32 %v4356, %v4395
        %v4397 = vrcp.pop %v4382
        %v4398 = vmul.f32 %v4358, %v4397
        %v4400 = vsel %vm604, %v4384, 0
        %v4403 = vsel %vm604, %v4386, 0
        %v4406 = vsel %vm604, %v4388, 0
        %v4409 = vsel %vm604, %v4390, 0
        %4411 = vmatprep.subr.mxu0 0.0
        %4412 = vmatpush1.msra.mxu0 %v4039
        %4413 = vmatprep.subr.mxu0 0.0
        %4414 = vmatpush1.msra.mxu0 %v4044
        %4415 = vmatprep.subr.mxu0 0.0
        %4416 = vmatpush1.msra.mxu0 %v4049
        %4417 = vmatprep.subr.mxu0 0.0
        %4418 = vmatpush1.msra.mxu0 %v4054
        %4419 = vmatprep.subr.mxu0 0.0
        %4420 = vmatpush1.msra.mxu0 0.0
        %4421 = vmatprep.subr.mxu0 0.0
        %4422 = vmatpush1.msra.mxu0 0.0
        %4423 = vmatprep.subr.mxu0 0.0
        %4424 = vmatpush1.msra.mxu0 0.0
        %4425 = vmatprep.subr.mxu0 0.0
        %4426 = vmatpush1.msra.mxu0 0.0
        %4427 = vmatprep.subr.mxu0 0.0
        %4428 = vmatpush1.msra.mxu0 0.0
        %4429 = vmatprep.subr.mxu0 0.0
        %4430 = vmatpush1.msra.mxu0 0.0
        %4431 = vmatprep.subr.mxu0 0.0
        %4432 = vmatpush1.msra.mxu0 0.0
        %4433 = vmatprep.subr.mxu0 0.0
        %4434 = vmatpush1.msra.mxu0 0.0
        %4435 = vmatprep.subr.mxu0 0.0
        %4436 = vmatpush1.msra.mxu0 0.0
        %4437 = vmatprep.subr.mxu0 0.0
        %4438 = vmatpush1.msra.mxu0 0.0
        %4439 = vmatprep.subr.mxu0 0.0
        %4440 = vmatpush1.msra.mxu0 0.0
        %4441 = vmatprep.subr.mxu0 0.0
        %4442 = vmatpush1.msra.mxu0 0.0
        %4443 = vmatprep.subr.mxu0 0.0
        %4444 = vmatpush1.msra.mxu0 0.0
        %4445 = vmatprep.subr.mxu0 0.0
        %4446 = vmatpush1.msra.mxu0 0.0
        %4447 = vmatprep.subr.mxu0 0.0
        %4448 = vmatpush1.msra.mxu0 0.0
        %4449 = vmatprep.subr.mxu0 0.0
        %4450 = vmatpush1.msra.mxu0 0.0
        %4451 = vmatprep.subr.mxu0 0.0
        %4452 = vmatpush1.msra.mxu0 0.0
        %4453 = vmatprep.subr.mxu0 0.0
        %4454 = vmatpush1.msra.mxu0 0.0
        %4455 = vmatprep.subr.mxu0 0.0
        %4456 = vmatpush1.msra.mxu0 0.0
        %4457 = vmatprep.subr.mxu0 0.0
        %4458 = vmatpush1.msra.mxu0 0.0
        %4459 = vmatprep.subr.mxu0 0.0
        %4460 = vmatpush1.msra.mxu0 0.0
        %4461 = vmatprep.subr.mxu0 0.0
        %4462 = vmatpush1.msra.mxu0 0.0
        %4463 = vmatprep.subr.mxu0 0.0
        %4464 = vmatpush1.msra.mxu0 0.0
        %4465 = vmatprep.subr.mxu0 0.0
        %4466 = vmatpush1.msra.mxu0 0.0
        %4467 = vmatprep.subr.mxu0 0.0
        %4468 = vmatpush1.msra.mxu0 0.0
        %4469 = vmatprep.subr.mxu0 0.0
        %4470 = vmatpush1.msra.mxu0 0.0
        %4471 = vmatprep.subr.mxu0 0.0
        %4472 = vmatpush1.msra.mxu0 0.0
        %4473 = vmatprep.subr.mxu0 0.0
        %4474 = vmatpush1.msra.mxu0 0.0
        %4475 = vmatprep.mubr.f32.mxu0 0.0
        %4476 = vmatmul.mubr.f32.gmra.mrb[0].mxu0 %v4400
        %v4477 = vpop.f32.mrb[0].mxu0
        %v4478 = vadd.f32 0.0, %v4477
        %v4479 = vpop.f32.mrb[0].mxu0
        %4480 = vmatprep.mubr.f32.mxu0 0.0
        %4481 = vmatmul.mubr.f32.gmra.mrb[0].mxu0 %v4403
        %v4482 = vpop.f32.mrb[0].mxu0
        %v4483 = vadd.f32 0.0, %v4482
        %v4484 = vpop.f32.mrb[0].mxu0
        %4485 = vmatprep.mubr.f32.mxu0 0.0
        %4486 = vmatmul.mubr.f32.gmra.mrb[0].mxu0 %v4406
        %v4487 = vpop.f32.mrb[0].mxu0
        %v4488 = vadd.f32 0.0, %v4487
        %v4489 = vpop.f32.mrb[0].mxu0
        %4490 = vmatprep.mubr.f32.mxu0 0.0
        %4491 = vmatmul.mubr.f32.gmra.mrb[0].mxu0 %v4409
        %v4492 = vpop.f32.mrb[0].mxu0
        %v4493 = vadd.f32 0.0, %v4492
        %v4494 = vpop.f32.mrb[0].mxu0
        %4495 = vdwg.mxu0
        %v4497 = vsel %vm604, %v4392, 0
        %v4500 = vsel %vm604, %v4394, 0
        %v4503 = vsel %vm604, %v4396, 0
        %v4506 = vsel %vm604, %v4398, 0
        %4508 = vmatprep.subr.mxu0 0.0
        %4509 = vmatpush1.msra.mxu0 %v4059
        %4510 = vmatprep.subr.mxu0 0.0
        %4511 = vmatpush1.msra.mxu0 %v4064
        %4512 = vmatprep.subr.mxu0 0.0
        %4513 = vmatpush1.msra.mxu0 %v4069
        %4514 = vmatprep.subr.mxu0 0.0
        %4515 = vmatpush1.msra.mxu0 %v4074
        %4516 = vmatprep.subr.mxu0 0.0
        %4517 = vmatpush1.msra.mxu0 0.0
        %4518 = vmatprep.subr.mxu0 0.0
        %4519 = vmatpush1.msra.mxu0 0.0
        %4520 = vmatprep.subr.mxu0 0.0
        %4521 = vmatpush1.msra.mxu0 0.0
        %4522 = vmatprep.subr.mxu0 0.0
        %4523 = vmatpush1.msra.mxu0 0.0
        %4524 = vmatprep.subr.mxu0 0.0
        %4525 = vmatpush1.msra.mxu0 0.0
        %4526 = vmatprep.subr.mxu0 0.0
        %4527 = vmatpush1.msra.mxu0 0.0
        %4528 = vmatprep.subr.mxu0 0.0
        %4529 = vmatpush1.msra.mxu0 0.0
        %4530 = vmatprep.subr.mxu0 0.0
        %4531 = vmatpush1.msra.mxu0 0.0
        %4532 = vmatprep.subr.mxu0 0.0
        %4533 = vmatpush1.msra.mxu0 0.0
        %4534 = vmatprep.subr.mxu0 0.0
        %4535 = vmatpush1.msra.mxu0 0.0
        %4536 = vmatprep.subr.mxu0 0.0
        %4537 = vmatpush1.msra.mxu0 0.0
        %4538 = vmatprep.subr.mxu0 0.0
        %4539 = vmatpush1.msra.mxu0 0.0
        %4540 = vmatprep.subr.mxu0 0.0
        %4541 = vmatpush1.msra.mxu0 0.0
        %4542 = vmatprep.subr.mxu0 0.0
        %4543 = vmatpush1.msra.mxu0 0.0
        %4544 = vmatprep.subr.mxu0 0.0
        %4545 = vmatpush1.msra.mxu0 0.0
        %4546 = vmatprep.subr.mxu0 0.0
        %4547 = vmatpush1.msra.mxu0 0.0
        %4548 = vmatprep.subr.mxu0 0.0
        %4549 = vmatpush1.msra.mxu0 0.0
        %4550 = vmatprep.subr.mxu0 0.0
        %4551 = vmatpush1.msra.mxu0 0.0
        %4552 = vmatprep.subr.mxu0 0.0
        %4553 = vmatpush1.msra.mxu0 0.0
        %4554 = vmatprep.subr.mxu0 0.0
        %4555 = vmatpush1.msra.mxu0 0.0
        %4556 = vmatprep.subr.mxu0 0.0
        %4557 = vmatpush1.msra.mxu0 0.0
        %4558 = vmatprep.subr.mxu0 0.0
        %4559 = vmatpush1.msra.mxu0 0.0
        %4560 = vmatprep.subr.mxu0 0.0
        %4561 = vmatpush1.msra.mxu0 0.0
        %4562 = vmatprep.subr.mxu0 0.0
        %4563 = vmatpush1.msra.mxu0 0.0
        %4564 = vmatprep.subr.mxu0 0.0
        %4565 = vmatpush1.msra.mxu0 0.0
        %4566 = vmatprep.subr.mxu0 0.0
        %4567 = vmatpush1.msra.mxu0 0.0
        %4568 = vmatprep.subr.mxu0 0.0
        %4569 = vmatpush1.msra.mxu0 0.0
        %4570 = vmatprep.subr.mxu0 0.0
        %4571 = vmatpush1.msra.mxu0 0.0
        %4572 = vmatprep.mubr.f32.mxu0 0.0
        %4573 = vmatmul.mubr.f32.gmra.mrb[0].mxu0 %v4497
        %v4574 = vpop.f32.mrb[0].mxu0
        %v4575 = vadd.f32 0.0, %v4574
        %v4576 = vpop.f32.mrb[0].mxu0
        %4577 = vmatprep.mubr.f32.mxu0 0.0
        %4578 = vmatmul.mubr.f32.gmra.mrb[0].mxu0 %v4500
        %v4579 = vpop.f32.mrb[0].mxu0
        %v4580 = vadd.f32 0.0, %v4579
        %v4581 = vpop.f32.mrb[0].mxu0
        %4582 = vmatprep.mubr.f32.mxu0 0.0
        %4583 = vmatmul.mubr.f32.gmra.mrb[0].mxu0 %v4503
        %v4584 = vpop.f32.mrb[0].mxu0
        %v4585 = vadd.f32 0.0, %v4584
        %v4586 = vpop.f32.mrb[0].mxu0
        %4587 = vmatprep.mubr.f32.mxu0 0.0
        %4588 = vmatmul.mubr.f32.gmra.mrb[0].mxu0 %v4506
        %v4589 = vpop.f32.mrb[0].mxu0
        %v4590 = vadd.f32 0.0, %v4589
        %v4591 = vpop.f32.mrb[0].mxu0
        %4592 = vdwg.mxu0
        %v4593 = vld [vmem:[%s415 + $0x18] sm:$0xff]
        %v4595 = vsel %vm1102, %v4478, 0
        %v4598 = vsel %vm1102, %v4483, 0
        %v4601 = vsel %vm1102, %v4488, 0
        %v4604 = vsel %vm1102, %v4493, 0
        %v4607 = vsel %vm1102, %v4575, 0
        %v4610 = vsel %vm1102, %v4580, 0
        %v4613 = vsel %vm1102, %v4585, 0
        %v4616 = vsel %vm1102, %v4590, 0
        %4618 = vmatprep.subr.mxu0 0.0
        %4619 = vmatpush1.msra.mxu0 %v4593
        %4620 = vmatprep.subr.mxu0 0.0
        %4621 = vmatpush1.msra.mxu0 0.0
        %4622 = vmatprep.subr.mxu0 0.0
        %4623 = vmatpush1.msra.mxu0 0.0
        %4624 = vmatprep.subr.mxu0 0.0
        %4625 = vmatpush1.msra.mxu0 0.0
        %4626 = vmatprep.subr.mxu0 0.0
        %4627 = vmatpush1.msra.mxu0 0.0
        %4628 = vmatprep.subr.mxu0 0.0
        %4629 = vmatpush1.msra.mxu0 0.0
        %4630 = vmatprep.subr.mxu0 0.0
        %4631 = vmatpush1.msra.mxu0 0.0
        %4632 = vmatprep.subr.mxu0 0.0
        %4633 = vmatpush1.msra.mxu0 0.0
        %4634 = vmatprep.subr.mxu0 0.0
        %4635 = vmatpush1.msra.mxu0 0.0
        %4636 = vmatprep.subr.mxu0 0.0
        %4637 = vmatpush1.msra.mxu0 0.0
        %4638 = vmatprep.subr.mxu0 0.0
        %4639 = vmatpush1.msra.mxu0 0.0
        %4640 = vmatprep.subr.mxu0 0.0
        %4641 = vmatpush1.msra.mxu0 0.0
        %4642 = vmatprep.subr.mxu0 0.0
        %4643 = vmatpush1.msra.mxu0 0.0
        %4644 = vmatprep.subr.mxu0 0.0
        %4645 = vmatpush1.msra.mxu0 0.0
        %4646 = vmatprep.subr.mxu0 0.0
        %4647 = vmatpush1.msra.mxu0 0.0
        %4648 = vmatprep.subr.mxu0 0.0
        %4649 = vmatpush1.msra.mxu0 0.0
        %4650 = vmatprep.subr.mxu0 0.0
        %4651 = vmatpush1.msra.mxu0 0.0
        %4652 = vmatprep.subr.mxu0 0.0
        %4653 = vmatpush1.msra.mxu0 0.0
        %4654 = vmatprep.subr.mxu0 0.0
        %4655 = vmatpush1.msra.mxu0 0.0
        %4656 = vmatprep.subr.mxu0 0.0
        %4657 = vmatpush1.msra.mxu0 0.0
        %4658 = vmatprep.subr.mxu0 0.0
        %4659 = vmatpush1.msra.mxu0 0.0
        %4660 = vmatprep.subr.mxu0 0.0
        %4661 = vmatpush1.msra.mxu0 0.0
        %4662 = vmatprep.subr.mxu0 0.0
        %4663 = vmatpush1.msra.mxu0 0.0
        %4664 = vmatprep.subr.mxu0 0.0
        %4665 = vmatpush1.msra.mxu0 0.0
        %4666 = vmatprep.subr.mxu0 0.0
        %4667 = vmatpush1.msra.mxu0 0.0
        %4668 = vmatprep.subr.mxu0 0.0
        %4669 = vmatpush1.msra.mxu0 0.0
        %4670 = vmatprep.subr.mxu0 0.0
        %4671 = vmatpush1.msra.mxu0 0.0
        %4672 = vmatprep.subr.mxu0 0.0
        %4673 = vmatpush1.msra.mxu0 0.0
        %4674 = vmatprep.subr.mxu0 0.0
        %4675 = vmatpush1.msra.mxu0 0.0
        %4676 = vmatprep.subr.mxu0 0.0
        %4677 = vmatpush1.msra.mxu0 0.0
        %4678 = vmatprep.subr.mxu0 0.0
        %4679 = vmatpush1.msra.mxu0 0.0
        %4680 = vmatprep.subr.mxu0 0.0
        %4681 = vmatpush1.msra.mxu0 0.0
        %4682 = vmatprep.mubr.f32.mxu0 0.0
        %4683 = vmatmul.mubr.f32.gmra.mrb[0].mxu0 %v4595
        %v4684 = vpop.f32.mrb[0].mxu0
        %v4685 = vadd.f32 0.0, %v4684
        %v4686 = vpop.f32.mrb[0].mxu0
        %4687 = vmatprep.mubr.f32.mxu0 0.0
        %4688 = vmatmul.mubr.f32.gmra.mrb[0].mxu0 %v4598
        %v4689 = vpop.f32.mrb[0].mxu0
        %v4690 = vadd.f32 0.0, %v4689
        %v4691 = vpop.f32.mrb[0].mxu0
        %4692 = vmatprep.mubr.f32.mxu0 0.0
        %4693 = vmatmul.mubr.f32.gmra.mrb[0].mxu0 %v4601
        %v4694 = vpop.f32.mrb[0].mxu0
        %v4695 = vadd.f32 0.0, %v4694
        %v4696 = vpop.f32.mrb[0].mxu0
        %4697 = vmatprep.mubr.f32.mxu0 0.0
        %4698 = vmatmul.mubr.f32.gmra.mrb[0].mxu0 %v4604
        %v4699 = vpop.f32.mrb[0].mxu0
        %v4700 = vadd.f32 0.0, %v4699
        %v4701 = vpop.f32.mrb[0].mxu0
        %4702 = vmatprep.mubr.f32.mxu0 0.0
        %4703 = vmatmul.mubr.f32.gmra.mrb[0].mxu0 %v4607
        %v4704 = vpop.f32.mrb[0].mxu0
        %v4705 = vadd.f32 0.0, %v4704
        %v4706 = vpop.f32.mrb[0].mxu0
        %4707 = vmatprep.mubr.f32.mxu0 0.0
        %4708 = vmatmul.mubr.f32.gmra.mrb[0].mxu0 %v4610
        %v4709 = vpop.f32.mrb[0].mxu0
        %v4710 = vadd.f32 0.0, %v4709
        %v4711 = vpop.f32.mrb[0].mxu0
        %4712 = vmatprep.mubr.f32.mxu0 0.0
        %4713 = vmatmul.mubr.f32.gmra.mrb[0].mxu0 %v4613
        %v4714 = vpop.f32.mrb[0].mxu0
        %v4715 = vadd.f32 0.0, %v4714
        %v4716 = vpop.f32.mrb[0].mxu0
        %4717 = vmatprep.mubr.f32.mxu0 0.0
        %4718 = vmatmul.mubr.f32.gmra.mrb[0].mxu0 %v4616
        %v4719 = vpop.f32.mrb[0].mxu0
        %v4720 = vadd.f32 0.0, %v4719
        %v4721 = vpop.f32.mrb[0].mxu0
        %4722 = vdwg.mxu0
        %v4723 = vadd.f32 %v3727, %v4685
        %v4724 = vadd.f32 %v3728, %v4690
        %v4725 = vadd.f32 %v3729, %v4695
        %v4726 = vadd.f32 %v3730, %v4700
        %v4727 = vadd.f32 %v3731, %v4705
        %v4728 = vadd.f32 %v3732, %v4710
        %v4729 = vadd.f32 %v3733, %v4715
        %v4730 = vadd.f32 %v3734, %v4720
        %v4731 = vadd.f32 %v593, %v4723
        %v4732 = vadd.f32 %v594, %v4724
        %v4733 = vadd.f32 %v595, %v4725
        %v4734 = vadd.f32 %v596, %v4726
        %v4735 = vadd.f32 %v597, %v4727
        %v4736 = vadd.f32 %v598, %v4728
        %v4737 = vadd.f32 %v599, %v4729
        %v4738 = vadd.f32 %v600, %v4730
        %v4739 = vlaneseq
        %v4740 = vshrl.u32 %v4739, 7
        %v4741 = vsub.s32 6, %v4740
        %v4742 = vrot.slane %v602, %v4741
        %v4743 = vadd.f32 %v4731, %v4742
        %v4744 = vadd.f32 %v4732, %v4742
        %v4745 = vadd.f32 %v4733, %v4742
        %v4746 = vadd.f32 %v4734, %v4742
        %v4747 = vadd.f32 %v4735, %v4742
        %v4748 = vadd.f32 %v4736, %v4742
        %v4749 = vadd.f32 %v4737, %v4742
        %v4750 = vadd.f32 %v4738, %v4742
        %v4751 = vsel %vm604, %v4743, 0.0
        %4752 = vadd.xlane.f32.xlu0 %v4751
        %v4753 = vpop.xlane.xlu0 %4752
        %v4754 = vsel %vm604, %v4744, 0.0
        %4755 = vadd.xlane.f32.xlu0 %v4754
        %v4756 = vpop.xlane.xlu0 %4755
        %v4757 = vsel %vm604, %v4745, 0.0
        %4758 = vadd.xlane.f32.xlu0 %v4757
        %v4759 = vpop.xlane.xlu0 %4758
        %v4760 = vsel %vm604, %v4746, 0.0
        %4761 = vadd.xlane.f32.xlu0 %v4760
        %v4762 = vpop.xlane.xlu0 %4761
        %v4763 = vsel %vm604, %v4747, 0.0
        %4764 = vadd.xlane.f32.xlu0 %v4763
        %v4765 = vpop.xlane.xlu0 %4764
        %v4766 = vsel %vm604, %v4748, 0.0
        %4767 = vadd.xlane.f32.xlu0 %v4766
        %v4768 = vpop.xlane.xlu0 %4767
        %v4769 = vsel %vm604, %v4749, 0.0
        %4770 = vadd.xlane.f32.xlu0 %v4769
        %v4771 = vpop.xlane.xlu0 %4770
        %v4772 = vsel %vm604, %v4750, 0.0
        %4773 = vadd.xlane.f32.xlu0 %v4772
        %v4774 = vpop.xlane.xlu0 %4773
        %v4775 = vmul.f32 %v4753, %v629
        %v4776 = vmul.f32 %v4756, %v629
        %v4777 = vmul.f32 %v4759, %v629
        %v4778 = vmul.f32 %v4762, %v629
        %v4779 = vmul.f32 %v4765, %v629
        %v4780 = vmul.f32 %v4768, %v629
        %v4781 = vmul.f32 %v4771, %v629
        %v4782 = vmul.f32 %v4774, %v629
        %v4783 = vsub.f32 %v4743, %v4775
        %v4784 = vsub.f32 %v4744, %v4776
        %v4785 = vsub.f32 %v4745, %v4777
        %v4786 = vsub.f32 %v4746, %v4778
        %v4787 = vsub.f32 %v4747, %v4779
        %v4788 = vsub.f32 %v4748, %v4780
        %v4789 = vsub.f32 %v4749, %v4781
        %v4790 = vsub.f32 %v4750, %v4782
        %v4791 = vmul.f32 %v4783, %v4783
        %v4792 = vmul.f32 %v4784, %v4784
        %v4793 = vmul.f32 %v4785, %v4785
        %v4794 = vmul.f32 %v4786, %v4786
        %v4795 = vmul.f32 %v4787, %v4787
        %v4796 = vmul.f32 %v4788, %v4788
        %v4797 = vmul.f32 %v4789, %v4789
        %v4798 = vmul.f32 %v4790, %v4790
        %v4799 = vsel %vm604, %v4791, 0.0
        %4800 = vadd.xlane.f32.xlu0 %v4799
        %v4801 = vpop.xlane.xlu0 %4800
        %v4802 = vsel %vm604, %v4792, 0.0
        %4803 = vadd.xlane.f32.xlu0 %v4802
        %v4804 = vpop.xlane.xlu0 %4803
        %v4805 = vsel %vm604, %v4793, 0.0
        %4806 = vadd.xlane.f32.xlu0 %v4805
        %v4807 = vpop.xlane.xlu0 %4806
        %v4808 = vsel %vm604, %v4794, 0.0
        %4809 = vadd.xlane.f32.xlu0 %v4808
        %v4810 = vpop.xlane.xlu0 %4809
        %v4811 = vsel %vm604, %v4795, 0.0
        %4812 = vadd.xlane.f32.xlu0 %v4811
        %v4813 = vpop.xlane.xlu0 %4812
        %v4814 = vsel %vm604, %v4796, 0.0
        %4815 = vadd.xlane.f32.xlu0 %v4814
        %v4816 = vpop.xlane.xlu0 %4815
        %v4817 = vsel %vm604, %v4797, 0.0
        %4818 = vadd.xlane.f32.xlu0 %v4817
        %v4819 = vpop.xlane.xlu0 %4818
        %v4820 = vsel %vm604, %v4798, 0.0
        %4821 = vadd.xlane.f32.xlu0 %v4820
        %v4822 = vpop.xlane.xlu0 %4821
        %v4823 = vmul.f32 %v4801, %v629
        %v4824 = vmul.f32 %v4804, %v629
        %v4825 = vmul.f32 %v4807, %v629
        %v4826 = vmul.f32 %v4810, %v629
        %v4827 = vmul.f32 %v4813, %v629
        %v4828 = vmul.f32 %v4816, %v629
        %v4829 = vmul.f32 %v4819, %v629
        %v4830 = vmul.f32 %v4822, %v629
        %v4831 = vadd.f32 %v4823, 1e-06
        %v4832 = vadd.f32 %v4824, 1e-06
        %v4833 = vadd.f32 %v4825, 1e-06
        %v4834 = vadd.f32 %v4826, 1e-06
        %v4835 = vadd.f32 %v4827, 1e-06
        %v4836 = vadd.f32 %v4828, 1e-06
        %v4837 = vadd.f32 %v4829, 1e-06
        %v4838 = vadd.f32 %v4830, 1e-06
        %v4839 = vrsqrt.pop %v4831
        %v4840 = vrsqrt.pop %v4832
        %v4841 = vrsqrt.pop %v4833
        %v4842 = vrsqrt.pop %v4834
        %v4843 = vrsqrt.pop %v4835
        %v4844 = vrsqrt.pop %v4836
        %v4845 = vrsqrt.pop %v4837
        %v4846 = vrsqrt.pop %v4838
        %v4847 = vmul.f32 %v4783, %v4839
        %v4848 = vmul.f32 %v4784, %v4840
        %v4849 = vmul.f32 %v4785, %v4841
        %v4850 = vmul.f32 %v4786, %v4842
        %v4851 = vmul.f32 %v4787, %v4843
        %v4852 = vmul.f32 %v4788, %v4844
        %v4853 = vmul.f32 %v4789, %v4845
        %v4854 = vmul.f32 %v4790, %v4846
        %v4855 = vlaneseq
        %v4856 = vshrl.u32 %v4855, 7
        %v4857 = vsub.s32 7, %v4856
        %v4858 = vrot.slane %v602, %v4857
        %v4859 = vmul.f32 %v4847, %v4858
        %v4860 = vmul.f32 %v4848, %v4858
        %v4861 = vmul.f32 %v4849, %v4858
        %v4862 = vmul.f32 %v4850, %v4858
        %v4863 = vmul.f32 %v4851, %v4858
        %v4864 = vmul.f32 %v4852, %v4858
        %v4865 = vmul.f32 %v4853, %v4858
        %v4866 = vmul.f32 %v4854, %v4858
        %v4867 = vlaneseq
        %v4868 = vshrl.u32 %v4867, 7
        %v4869 = vsub.s32 0, %v4868
        %v4870 = vrot.slane %v603, %v4869
        %v4871 = vadd.f32 %v4859, %v4870
        %v4872 = vadd.f32 %v4860, %v4870
        %v4873 = vadd.f32 %v4861, %v4870
        %v4874 = vadd.f32 %v4862, %v4870
        %v4875 = vadd.f32 %v4863, %v4870
        %v4876 = vadd.f32 %v4864, %v4870
        %v4877 = vadd.f32 %v4865, %v4870
        %v4878 = vadd.f32 %v4866, %v4870
        %v4879 = vld [vmem:[%s420] sm:$0xff]
        %v4880 = vld [vmem:[%s420 + $0x8] sm:$0xff]
        %v4881 = vld [vmem:[%s420 + $0x10] sm:$0xff]
        %v4882 = vld [vmem:[%s420 + $0x18] sm:$0xff]
        %v4883 = vlaneseq
        %v4884 = vshrl.u32 %v4883, 7
        %v4885 = vsub.s32 1, %v4884
        %v4886 = vrot.slane %v603, %v4885
        %v4888 = vsel %vm604, %v4871, 0
        %v4891 = vsel %vm604, %v4872, 0
        %v4894 = vsel %vm604, %v4873, 0
        %v4897 = vsel %vm604, %v4874, 0
        %v4900 = vsel %vm604, %v4875, 0
        %v4903 = vsel %vm604, %v4876, 0
        %v4906 = vsel %vm604, %v4877, 0
        %v4909 = vsel %vm604, %v4878, 0
        %4911 = vmatprep.subr.mxu0 0.0
        %4912 = vmatpush1.msra.mxu0 %v4879
        %4913 = vmatprep.subr.mxu0 0.0
        %4914 = vmatpush1.msra.mxu0 %v4880
        %4915 = vmatprep.subr.mxu0 0.0
        %4916 = vmatpush1.msra.mxu0 %v4881
        %4917 = vmatprep.subr.mxu0 0.0
        %4918 = vmatpush1.msra.mxu0 %v4882
        %4919 = vmatprep.subr.mxu0 0.0
        %4920 = vmatpush1.msra.mxu0 0.0
        %4921 = vmatprep.subr.mxu0 0.0
        %4922 = vmatpush1.msra.mxu0 0.0
        %4923 = vmatprep.subr.mxu0 0.0
        %4924 = vmatpush1.msra.mxu0 0.0
        %4925 = vmatprep.subr.mxu0 0.0
        %4926 = vmatpush1.msra.mxu0 0.0
        %4927 = vmatprep.subr.mxu0 0.0
        %4928 = vmatpush1.msra.mxu0 0.0
        %4929 = vmatprep.subr.mxu0 0.0
        %4930 = vmatpush1.msra.mxu0 0.0
        %4931 = vmatprep.subr.mxu0 0.0
        %4932 = vmatpush1.msra.mxu0 0.0
        %4933 = vmatprep.subr.mxu0 0.0
        %4934 = vmatpush1.msra.mxu0 0.0
        %4935 = vmatprep.subr.mxu0 0.0
        %4936 = vmatpush1.msra.mxu0 0.0
        %4937 = vmatprep.subr.mxu0 0.0
        %4938 = vmatpush1.msra.mxu0 0.0
        %4939 = vmatprep.subr.mxu0 0.0
        %4940 = vmatpush1.msra.mxu0 0.0
        %4941 = vmatprep.subr.mxu0 0.0
        %4942 = vmatpush1.msra.mxu0 0.0
        %4943 = vmatprep.subr.mxu0 0.0
        %4944 = vmatpush1.msra.mxu0 0.0
        %4945 = vmatprep.subr.mxu0 0.0
        %4946 = vmatpush1.msra.mxu0 0.0
        %4947 = vmatprep.subr.mxu0 0.0
        %4948 = vmatpush1.msra.mxu0 0.0
        %4949 = vmatprep.subr.mxu0 0.0
        %4950 = vmatpush1.msra.mxu0 0.0
        %4951 = vmatprep.subr.mxu0 0.0
        %4952 = vmatpush1.msra.mxu0 0.0
        %4953 = vmatprep.subr.mxu0 0.0
        %4954 = vmatpush1.msra.mxu0 0.0
        %4955 = vmatprep.subr.mxu0 0.0
        %4956 = vmatpush1.msra.mxu0 0.0
        %4957 = vmatprep.subr.mxu0 0.0
        %4958 = vmatpush1.msra.mxu0 0.0
        %4959 = vmatprep.subr.mxu0 0.0
        %4960 = vmatpush1.msra.mxu0 0.0
        %4961 = vmatprep.subr.mxu0 0.0
        %4962 = vmatpush1.msra.mxu0 0.0
        %4963 = vmatprep.subr.mxu0 0.0
        %4964 = vmatpush1.msra.mxu0 0.0
        %4965 = vmatprep.subr.mxu0 0.0
        %4966 = vmatpush1.msra.mxu0 0.0
        %4967 = vmatprep.subr.mxu0 0.0
        %4968 = vmatpush1.msra.mxu0 0.0
        %4969 = vmatprep.subr.mxu0 0.0
        %4970 = vmatpush1.msra.mxu0 0.0
        %4971 = vmatprep.subr.mxu0 0.0
        %4972 = vmatpush1.msra.mxu0 0.0
        %4973 = vmatprep.subr.mxu0 0.0
        %4974 = vmatpush1.msra.mxu0 0.0
        %4975 = vmatprep.mubr.f32.mxu0 0.0
        %4976 = vmatmul.mubr.f32.gmra.mrb[0].mxu0 %v4888
        %v4977 = vpop.f32.mrb[0].mxu0
        %v4978 = vadd.f32 %v4886, %v4977
        %v4979 = vpop.f32.mrb[0].mxu0
        %4980 = vmatprep.mubr.f32.mxu0 0.0
        %4981 = vmatmul.mubr.f32.gmra.mrb[0].mxu0 %v4891
        %v4982 = vpop.f32.mrb[0].mxu0
        %v4983 = vadd.f32 %v4886, %v4982
        %v4984 = vpop.f32.mrb[0].mxu0
        %4985 = vmatprep.mubr.f32.mxu0 0.0
        %4986 = vmatmul.mubr.f32.gmra.mrb[0].mxu0 %v4894
        %v4987 = vpop.f32.mrb[0].mxu0
        %v4988 = vadd.f32 %v4886, %v4987
        %v4989 = vpop.f32.mrb[0].mxu0
        %4990 = vmatprep.mubr.f32.mxu0 0.0
        %4991 = vmatmul.mubr.f32.gmra.mrb[0].mxu0 %v4897
        %v4992 = vpop.f32.mrb[0].mxu0
        %v4993 = vadd.f32 %v4886, %v4992
        %v4994 = vpop.f32.mrb[0].mxu0
        %4995 = vmatprep.mubr.f32.mxu0 0.0
        %4996 = vmatmul.mubr.f32.gmra.mrb[0].mxu0 %v4900
        %v4997 = vpop.f32.mrb[0].mxu0
        %v4998 = vadd.f32 %v4886, %v4997
        %v4999 = vpop.f32.mrb[0].mxu0
        %5000 = vmatprep.mubr.f32.mxu0 0.0
        %5001 = vmatmul.mubr.f32.gmra.mrb[0].mxu0 %v4903
        %v5002 = vpop.f32.mrb[0].mxu0
        %v5003 = vadd.f32 %v4886, %v5002
        %v5004 = vpop.f32.mrb[0].mxu0
        %5005 = vmatprep.mubr.f32.mxu0 0.0
        %5006 = vmatmul.mubr.f32.gmra.mrb[0].mxu0 %v4906
        %v5007 = vpop.f32.mrb[0].mxu0
        %v5008 = vadd.f32 %v4886, %v5007
        %v5009 = vpop.f32.mrb[0].mxu0
        %5010 = vmatprep.mubr.f32.mxu0 0.0
        %5011 = vmatmul.mubr.f32.gmra.mrb[0].mxu0 %v4909
        %v5012 = vpop.f32.mrb[0].mxu0
        %v5013 = vadd.f32 %v4886, %v5012
        %v5014 = vpop.f32.mrb[0].mxu0
        %5015 = vdwg.mxu0
        %v5016 = vmul.f32 %v4978, 0.5
        %v5017 = vmul.f32 %v4983, 0.5
        %v5018 = vmul.f32 %v4988, 0.5
        %v5019 = vmul.f32 %v4993, 0.5
        %v5020 = vmul.f32 %v4998, 0.5
        %v5021 = vmul.f32 %v5003, 0.5
        %v5022 = vmul.f32 %v5008, 0.5
        %v5023 = vmul.f32 %v5013, 0.5
        %v5024 = vmul.f32 %v4978, 0.70710677
        %v5025 = vmul.f32 %v4983, 0.70710677
        %v5026 = vmul.f32 %v4988, 0.70710677
        %v5027 = vmul.f32 %v4993, 0.70710677
        %v5028 = vmul.f32 %v4998, 0.70710677
        %v5029 = vmul.f32 %v5003, 0.70710677
        %v5030 = vmul.f32 %v5008, 0.70710677
        %v5031 = vmul.f32 %v5013, 0.70710677
        %v5032 = verf.f32.pop %v5024
        %v5033 = verf.f32.pop %v5025
        %v5034 = verf.f32.pop %v5026
        %v5035 = verf.f32.pop %v5027
        %v5036 = verf.f32.pop %v5028
        %v5037 = verf.f32.pop %v5029
        %v5038 = verf.f32.pop %v5030
        %v5039 = verf.f32.pop %v5031
        %v5040 = vadd.f32 %v5032, 1.0
        %v5041 = vadd.f32 %v5033, 1.0
        %v5042 = vadd.f32 %v5034, 1.0
        %v5043 = vadd.f32 %v5035, 1.0
        %v5044 = vadd.f32 %v5036, 1.0
        %v5045 = vadd.f32 %v5037, 1.0
        %v5046 = vadd.f32 %v5038, 1.0
        %v5047 = vadd.f32 %v5039, 1.0
        %v5048 = vmul.f32 %v5016, %v5040
        %v5049 = vmul.f32 %v5017, %v5041
        %v5050 = vmul.f32 %v5018, %v5042
        %v5051 = vmul.f32 %v5019, %v5043
        %v5052 = vmul.f32 %v5020, %v5044
        %v5053 = vmul.f32 %v5021, %v5045
        %v5054 = vmul.f32 %v5022, %v5046
        %v5055 = vmul.f32 %v5023, %v5047
        %v5056 = vld [vmem:[%s425] sm:$0xff]
        %v5057 = vld [vmem:[%s425 + $0x8] sm:$0xff]
        %v5058 = vld [vmem:[%s425 + $0x10] sm:$0xff]
        %v5059 = vld [vmem:[%s425 + $0x18] sm:$0xff]
        %v5060 = vld [vmem:[%s425 + $0x20] sm:$0xff]
        %v5061 = vld [vmem:[%s425 + $0x28] sm:$0xff]
        %v5062 = vld [vmem:[%s425 + $0x30] sm:$0xff]
        %v5063 = vld [vmem:[%s425 + $0x38] sm:$0xff]
        %v5064 = vld [vmem:[%s425 + $0x40] sm:$0xff]
        %v5065 = vld [vmem:[%s425 + $0x48] sm:$0xff]
        %v5066 = vld [vmem:[%s425 + $0x50] sm:$0xff]
        %v5067 = vld [vmem:[%s425 + $0x58] sm:$0xff]
        %v5068 = vld [vmem:[%s425 + $0x60] sm:$0xff]
        %v5069 = vld [vmem:[%s425 + $0x68] sm:$0xff]
        %v5070 = vld [vmem:[%s425 + $0x70] sm:$0xff]
        %v5071 = vld [vmem:[%s425 + $0x78] sm:$0xff]
        %5072 = vmatprep.subr.mxu0 0.0
        %5073 = vmatpush1.msra.mxu0 %v5056
        %5074 = vmatprep.subr.mxu0 0.0
        %5075 = vmatpush1.msra.mxu0 %v5057
        %5076 = vmatprep.subr.mxu0 0.0
        %5077 = vmatpush1.msra.mxu0 %v5058
        %5078 = vmatprep.subr.mxu0 0.0
        %5079 = vmatpush1.msra.mxu0 %v5059
        %5080 = vmatprep.subr.mxu0 0.0
        %5081 = vmatpush1.msra.mxu0 %v5060
        %5082 = vmatprep.subr.mxu0 0.0
        %5083 = vmatpush1.msra.mxu0 %v5061
        %5084 = vmatprep.subr.mxu0 0.0
        %5085 = vmatpush1.msra.mxu0 %v5062
        %5086 = vmatprep.subr.mxu0 0.0
        %5087 = vmatpush1.msra.mxu0 %v5063
        %5088 = vmatprep.subr.mxu0 0.0
        %5089 = vmatpush1.msra.mxu0 %v5064
        %5090 = vmatprep.subr.mxu0 0.0
        %5091 = vmatpush1.msra.mxu0 %v5065
        %5092 = vmatprep.subr.mxu0 0.0
        %5093 = vmatpush1.msra.mxu0 %v5066
        %5094 = vmatprep.subr.mxu0 0.0
        %5095 = vmatpush1.msra.mxu0 %v5067
        %5096 = vmatprep.subr.mxu0 0.0
        %5097 = vmatpush1.msra.mxu0 %v5068
        %5098 = vmatprep.subr.mxu0 0.0
        %5099 = vmatpush1.msra.mxu0 %v5069
        %5100 = vmatprep.subr.mxu0 0.0
        %5101 = vmatpush1.msra.mxu0 %v5070
        %5102 = vmatprep.subr.mxu0 0.0
        %5103 = vmatpush1.msra.mxu0 %v5071
        %5104 = vmatprep.subr.mxu0 0.0
        %5105 = vmatpush1.msra.mxu0 0.0
        %5106 = vmatprep.subr.mxu0 0.0
        %5107 = vmatpush1.msra.mxu0 0.0
        %5108 = vmatprep.subr.mxu0 0.0
        %5109 = vmatpush1.msra.mxu0 0.0
        %5110 = vmatprep.subr.mxu0 0.0
        %5111 = vmatpush1.msra.mxu0 0.0
        %5112 = vmatprep.subr.mxu0 0.0
        %5113 = vmatpush1.msra.mxu0 0.0
        %5114 = vmatprep.subr.mxu0 0.0
        %5115 = vmatpush1.msra.mxu0 0.0
        %5116 = vmatprep.subr.mxu0 0.0
        %5117 = vmatpush1.msra.mxu0 0.0
        %5118 = vmatprep.subr.mxu0 0.0
        %5119 = vmatpush1.msra.mxu0 0.0
        %5120 = vmatprep.subr.mxu0 0.0
        %5121 = vmatpush1.msra.mxu0 0.0
        %5122 = vmatprep.subr.mxu0 0.0
        %5123 = vmatpush1.msra.mxu0 0.0
        %5124 = vmatprep.subr.mxu0 0.0
        %5125 = vmatpush1.msra.mxu0 0.0
        %5126 = vmatprep.subr.mxu0 0.0
        %5127 = vmatpush1.msra.mxu0 0.0
        %5128 = vmatprep.subr.mxu0 0.0
        %5129 = vmatpush1.msra.mxu0 0.0
        %5130 = vmatprep.subr.mxu0 0.0
        %5131 = vmatpush1.msra.mxu0 0.0
        %5132 = vmatprep.subr.mxu0 0.0
        %5133 = vmatpush1.msra.mxu0 0.0
        %5134 = vmatprep.subr.mxu0 0.0
        %5135 = vmatpush1.msra.mxu0 0.0
        %5136 = vmatprep.mubr.f32.mxu0 0.0
        %5137 = vmatmul.mubr.f32.gmra.mrb[0].mxu0 %v5048
        %v5138 = vpop.f32.mrb[0].mxu0
        %v5139 = vadd.f32 0.0, %v5138
        %v5140 = vpop.f32.mrb[0].mxu0
        %5141 = vmatprep.mubr.f32.mxu0 0.0
        %5142 = vmatmul.mubr.f32.gmra.mrb[0].mxu0 %v5049
        %v5143 = vpop.f32.mrb[0].mxu0
        %v5144 = vadd.f32 0.0, %v5143
        %v5145 = vpop.f32.mrb[0].mxu0
        %5146 = vmatprep.mubr.f32.mxu0 0.0
        %5147 = vmatmul.mubr.f32.gmra.mrb[0].mxu0 %v5050
        %v5148 = vpop.f32.mrb[0].mxu0
        %v5149 = vadd.f32 0.0, %v5148
        %v5150 = vpop.f32.mrb[0].mxu0
        %5151 = vmatprep.mubr.f32.mxu0 0.0
        %5152 = vmatmul.mubr.f32.gmra.mrb[0].mxu0 %v5051
        %v5153 = vpop.f32.mrb[0].mxu0
        %v5154 = vadd.f32 0.0, %v5153
        %v5155 = vpop.f32.mrb[0].mxu0
        %5156 = vmatprep.mubr.f32.mxu0 0.0
        %5157 = vmatmul.mubr.f32.gmra.mrb[0].mxu0 %v5052
        %v5158 = vpop.f32.mrb[0].mxu0
        %v5159 = vadd.f32 0.0, %v5158
        %v5160 = vpop.f32.mrb[0].mxu0
        %5161 = vmatprep.mubr.f32.mxu0 0.0
        %5162 = vmatmul.mubr.f32.gmra.mrb[0].mxu0 %v5053
        %v5163 = vpop.f32.mrb[0].mxu0
        %v5164 = vadd.f32 0.0, %v5163
        %v5165 = vpop.f32.mrb[0].mxu0
        %5166 = vmatprep.mubr.f32.mxu0 0.0
        %5167 = vmatmul.mubr.f32.gmra.mrb[0].mxu0 %v5054
        %v5168 = vpop.f32.mrb[0].mxu0
        %v5169 = vadd.f32 0.0, %v5168
        %v5170 = vpop.f32.mrb[0].mxu0
        %5171 = vmatprep.mubr.f32.mxu0 0.0
        %5172 = vmatmul.mubr.f32.gmra.mrb[0].mxu0 %v5055
        %v5173 = vpop.f32.mrb[0].mxu0
        %v5174 = vadd.f32 0.0, %v5173
        %v5175 = vpop.f32.mrb[0].mxu0
        %5176 = vdwg.mxu0
        %v5177 = vadd.f32 %v4743, %v5139
        %v5178 = vadd.f32 %v4744, %v5144
        %v5179 = vadd.f32 %v4745, %v5149
        %v5180 = vadd.f32 %v4746, %v5154
        %v5181 = vadd.f32 %v4747, %v5159
        %v5182 = vadd.f32 %v4748, %v5164
        %v5183 = vadd.f32 %v4749, %v5169
        %v5184 = vadd.f32 %v4750, %v5174
        %v5185 = vlaneseq
        %v5186 = vshrl.u32 %v5185, 7
        %v5187 = vsub.s32 2, %v5186
        %v5188 = vrot.slane %v603, %v5187
        %v5189 = vadd.f32 %v5177, %v5188
        %v5190 = vadd.f32 %v5178, %v5188
        %v5191 = vadd.f32 %v5179, %v5188
        %v5192 = vadd.f32 %v5180, %v5188
        %v5193 = vadd.f32 %v5181, %v5188
        %v5194 = vadd.f32 %v5182, %v5188
        %v5195 = vadd.f32 %v5183, %v5188
        %v5196 = vadd.f32 %v5184, %v5188
        %v5197 = vlaneseq
        %v5198 = vshrl.u32 %v5197, 7
        %v5199 = vadd.s32 %v5198, 8
        %v5200 = vadd.s32 %v5198, 16
        %v5201 = vadd.s32 %v5198, 24
        %v5202 = vadd.s32 %v5198, 32
        %v5203 = vadd.s32 %v5198, 40
        %v5204 = vadd.s32 %v5198, 48
        %v5205 = vadd.s32 %v5198, 56
        %vm5206 = vcmp.lt.s32.totalorder %v5198, 0
        %v5207 = vsub.s32 0, %v5198
        %v5208 = vsel %vm5206, %v5207, %v5198
        %v5209 = vshrl.u32 %v5208, 5
        %v5210 = vand.u32 %v5208, 31
        %v5211 = vsub.s32 0, %v5210
        %v5212 = vsel %vm5206, %v5211, %v5210
        %vm5213 = vcmp.lt.s32.totalorder %v5199, 0
        %v5214 = vsub.s32 0, %v5199
        %v5215 = vsel %vm5213, %v5214, %v5199
        %v5216 = vshrl.u32 %v5215, 5
        %v5217 = vand.u32 %v5215, 31
        %v5218 = vsub.s32 0, %v5217
        %v5219 = vsel %vm5213, %v5218, %v5217
        %vm5220 = vcmp.lt.s32.totalorder %v5200, 0
        %v5221 = vsub.s32 0, %v5200
        %v5222 = vsel %vm5220, %v5221, %v5200
        %v5223 = vshrl.u32 %v5222, 5
        %v5224 = vand.u32 %v5222, 31
        %v5225 = vsub.s32 0, %v5224
        %v5226 = vsel %vm5220, %v5225, %v5224
        %vm5227 = vcmp.lt.s32.totalorder %v5201, 0
        %v5228 = vsub.s32 0, %v5201
        %v5229 = vsel %vm5227, %v5228, %v5201
        %v5230 = vshrl.u32 %v5229, 5
        %v5231 = vand.u32 %v5229, 31
        %v5232 = vsub.s32 0, %v5231
        %v5233 = vsel %vm5227, %v5232, %v5231
        %vm5234 = vcmp.lt.s32.totalorder %v5202, 0
        %v5235 = vsub.s32 0, %v5202
        %v5236 = vsel %vm5234, %v5235, %v5202
        %v5237 = vshrl.u32 %v5236, 5
        %v5238 = vand.u32 %v5236, 31
        %v5239 = vsub.s32 0, %v5238
        %v5240 = vsel %vm5234, %v5239, %v5238
        %vm5241 = vcmp.lt.s32.totalorder %v5203, 0
        %v5242 = vsub.s32 0, %v5203
        %v5243 = vsel %vm5241, %v5242, %v5203
        %v5244 = vshrl.u32 %v5243, 5
        %v5245 = vand.u32 %v5243, 31
        %v5246 = vsub.s32 0, %v5245
        %v5247 = vsel %vm5241, %v5246, %v5245
        %vm5248 = vcmp.lt.s32.totalorder %v5204, 0
        %v5249 = vsub.s32 0, %v5204
        %v5250 = vsel %vm5248, %v5249, %v5204
        %v5251 = vshrl.u32 %v5250, 5
        %v5252 = vand.u32 %v5250, 31
        %v5253 = vsub.s32 0, %v5252
        %v5254 = vsel %vm5248, %v5253, %v5252
        %vm5255 = vcmp.lt.s32.totalorder %v5205, 0
        %v5256 = vsub.s32 0, %v5205
        %v5257 = vsel %vm5255, %v5256, %v5205
        %v5258 = vshrl.u32 %v5257, 5
        %v5259 = vand.u32 %v5257, 31
        %v5260 = vsub.s32 0, %v5259
        %v5261 = vsel %vm5255, %v5260, %v5259
        %vm5262 = vcmp.ne.s32.totalorder %v5212, 0
        %vm5263 = vcmp.ne.s32.totalorder %v5219, 0
        %vm5264 = vcmp.ne.s32.totalorder %v5226, 0
        %vm5265 = vcmp.ne.s32.totalorder %v5233, 0
        %vm5266 = vcmp.ne.s32.totalorder %v5240, 0
        %vm5267 = vcmp.ne.s32.totalorder %v5247, 0
        %vm5268 = vcmp.ne.s32.totalorder %v5254, 0
        %vm5269 = vcmp.ne.s32.totalorder %v5261, 0
        %vm5270 = vcmp.lt.s32.totalorder %v5212, 0
        %vm5271 = vcmp.lt.s32.totalorder %v5219, 0
        %vm5272 = vcmp.lt.s32.totalorder %v5226, 0
        %vm5273 = vcmp.lt.s32.totalorder %v5233, 0
        %vm5274 = vcmp.lt.s32.totalorder %v5240, 0
        %vm5275 = vcmp.lt.s32.totalorder %v5247, 0
        %vm5276 = vcmp.lt.s32.totalorder %v5254, 0
        %vm5277 = vcmp.lt.s32.totalorder %v5261, 0
        %vm5278 = vmand %vm5270, %vm5262
        %vm5279 = vmand %vm5271, %vm5263
        %vm5280 = vmand %vm5272, %vm5264
        %vm5281 = vmand %vm5273, %vm5265
        %vm5282 = vmand %vm5274, %vm5266
        %vm5283 = vmand %vm5275, %vm5267
        %vm5284 = vmand %vm5276, %vm5268
        %vm5285 = vmand %vm5277, %vm5269
        %v5286 = vadd.s32 %v5212, 32
        %v5287 = vadd.s32 %v5219, 32
        %v5288 = vadd.s32 %v5226, 32
        %v5289 = vadd.s32 %v5233, 32
        %v5290 = vadd.s32 %v5240, 32
        %v5291 = vadd.s32 %v5247, 32
        %v5292 = vadd.s32 %v5254, 32
        %v5293 = vadd.s32 %v5261, 32
        %v5294 = vsel %vm5278, %v5286, %v5212
        %v5295 = vsel %vm5279, %v5287, %v5219
        %v5296 = vsel %vm5280, %v5288, %v5226
        %v5297 = vsel %vm5281, %v5289, %v5233
        %v5298 = vsel %vm5282, %v5290, %v5240
        %v5299 = vsel %vm5283, %v5291, %v5247
        %v5300 = vsel %vm5284, %v5292, %v5254
        %v5301 = vsel %vm5285, %v5293, %v5261
        %vm5302 = vcmp.lt.s32.totalorder %v5294, 26
        %vm5303 = vcmp.lt.s32.totalorder %v5295, 26
        %vm5304 = vcmp.lt.s32.totalorder %v5296, 26
        %vm5305 = vcmp.lt.s32.totalorder %v5297, 26
        %vm5306 = vcmp.lt.s32.totalorder %v5298, 26
        %vm5307 = vcmp.lt.s32.totalorder %v5299, 26
        %vm5308 = vcmp.lt.s32.totalorder %v5300, 26
        %vm5309 = vcmp.lt.s32.totalorder %v5301, 26
        %v5310 = vsel %vm5302, 1, 0
        %v5311 = vsel %vm5303, 1, 0
        %v5312 = vsel %vm5304, 1, 0
        %v5313 = vsel %vm5305, 1, 0
        %v5314 = vsel %vm5306, 1, 0
        %v5315 = vsel %vm5307, 1, 0
        %v5316 = vsel %vm5308, 1, 0
        %v5317 = vsel %vm5309, 1, 0
        %vm5318 = vcmp.eq.s32.totalorder %v5310, 1
        %vm5319 = vcmp.eq.s32.totalorder %v5311, 1
        %vm5320 = vcmp.eq.s32.totalorder %v5312, 1
        %vm5321 = vcmp.eq.s32.totalorder %v5313, 1
        %vm5322 = vcmp.eq.s32.totalorder %v5314, 1
        %vm5323 = vcmp.eq.s32.totalorder %v5315, 1
        %vm5324 = vcmp.eq.s32.totalorder %v5316, 1
        %vm5325 = vcmp.eq.s32.totalorder %v5317, 1
        %v5326 = vsel %vm5318, %v5189, 0.0
        %v5327 = vsel %vm5319, %v5190, 0.0
        %v5328 = vsel %vm5320, %v5191, 0.0
        %v5329 = vsel %vm5321, %v5192, 0.0
        %v5330 = vsel %vm5322, %v5193, 0.0
        %v5331 = vsel %vm5323, %v5194, 0.0
        %v5332 = vsel %vm5324, %v5195, 0.0
        %v5333 = vsel %vm5325, %v5196, 0.0
        %5334 = vst.msk [vmem:[#allocation2] sm:$0xff] %vm604, %v5326
        %5335 = vst.msk [vmem:[#allocation2 + $0x8] sm:$0xff] %vm604, %v5327
        %5336 = vst.msk [vmem:[#allocation2 + $0x10] sm:$0xff] %vm604, %v5328
        %5337 = vst.msk [vmem:[#allocation2 + $0x18] sm:$0xff] %vm604, %v5329
        %5338 = vst.msk [vmem:[#allocation2 + $0x20] sm:$0xff] %vm604, %v5330
        %5339 = vst.msk [vmem:[#allocation2 + $0x28] sm:$0xff] %vm604, %v5331
        %5340 = vst.msk [vmem:[#allocation2 + $0x30] sm:$0xff] %vm604, %v5332
        %5341 = vst.msk [vmem:[#allocation2 + $0x38] sm:$0xff] %vm604, %v5333
        %p5342 = scmp.eq.s32.totalorder %s22, 1
        // Predicated region
        $region65: #{ast_forward.1} parent=59 // pred_check
          %p5343 = pneg %p5342
        $region66: #{ast_forward.1} parent=59 // pred_check_branch
          %5345 = sbr.rel (%p5343) target = $region68
        $region67: #{ast_forward.1} parent=59 // pred_region
          %v5346 = vld [vmem:[#allocation2] ss:$32 sm:$0x1]
          %v5347 = vld [vmem:[#allocation2] ss:$32 sm:$0x2]
          %v5348 = vor.u32 %v5346, %v5347
          %v5349 = vld [vmem:[%s8] sm:$0x1]
          %v5350 = vld [vmem:[%s8 + $0x1] sm:$0x1]
          %vm5351 = vcmask 254976
          %v5352 = vsel %vm5351, %v5348, 0.0
          %5353 = vadd.xlane.f32.xlu0 %v5352
          %v5354 = vpop.xlane.xlu0 %5353
          %v5355 = vmul.f32 %v5354, %v629
          %v5356 = vsub.f32 %v5348, %v5355
          %v5357 = vmul.f32 %v5356, %v5356
          %v5358 = vsel %vm5351, %v5357, 0.0
          %5359 = vadd.xlane.f32.xlu0 %v5358
          %v5360 = vpop.xlane.xlu0 %5359
          %v5361 = vmul.f32 %v5360, %v629
          %v5362 = vadd.f32 %v5361, 1e-06
          %v5363 = vrsqrt.pop %v5362
          %v5364 = vmul.f32 %v5356, %v5363
          %v5365 = vlaneseq
          %v5366 = vshrl.u32 %v5365, 7
          %v5367 = vsub.s32 0, %v5366
          %v5368 = vrot.slane %v5349, %v5367
          %v5369 = vmul.f32 %v5364, %v5368
          %v5370 = vlaneseq
          %v5371 = vshrl.u32 %v5370, 7
          %v5372 = vsub.s32 0, %v5371
          %v5373 = vrot.slane %v5350, %v5372
          %v5374 = vadd.f32 %v5369, %v5373
          %v5375 = vld [vmem:[%s9] sm:$0xff]
          %v5376 = vld [vmem:[%s9 + $0x8] sm:$0xff]
          %v5377 = vld [vmem:[%s9 + $0x10] sm:$0xff]
          %v5378 = vld [vmem:[%s9 + $0x18] sm:$0xff]
          %v5379 = vld [vmem:[%s8 + $0x2] sm:$0x1]
          %v5380 = vlaneseq
          %v5381 = vshrl.u32 %v5380, 7
          %v5382 = vsub.s32 0, %v5381
          %v5383 = vrot.slane %v5379, %v5382
          %v5385 = vsel %vm604, %v5374, 0
          %5387 = vmatprep.subr.mxu0 0.0
          %5388 = vmatpush1.msra.mxu0 %v5375
          %5389 = vmatprep.subr.mxu0 0.0
          %5390 = vmatpush1.msra.mxu0 %v5376
          %5391 = vmatprep.subr.mxu0 0.0
          %5392 = vmatpush1.msra.mxu0 %v5377
          %5393 = vmatprep.subr.mxu0 0.0
          %5394 = vmatpush1.msra.mxu0 %v5378
          %5395 = vmatprep.subr.mxu0 0.0
          %5396 = vmatpush1.msra.mxu0 0.0
          %5397 = vmatprep.subr.mxu0 0.0
          %5398 = vmatpush1.msra.mxu0 0.0
          %5399 = vmatprep.subr.mxu0 0.0
          %5400 = vmatpush1.msra.mxu0 0.0
          %5401 = vmatprep.subr.mxu0 0.0
          %5402 = vmatpush1.msra.mxu0 0.0
          %5403 = vmatprep.subr.mxu0 0.0
          %5404 = vmatpush1.msra.mxu0 0.0
          %5405 = vmatprep.subr.mxu0 0.0
          %5406 = vmatpush1.msra.mxu0 0.0
          %5407 = vmatprep.subr.mxu0 0.0
          %5408 = vmatpush1.msra.mxu0 0.0
          %5409 = vmatprep.subr.mxu0 0.0
          %5410 = vmatpush1.msra.mxu0 0.0
          %5411 = vmatprep.subr.mxu0 0.0
          %5412 = vmatpush1.msra.mxu0 0.0
          %5413 = vmatprep.subr.mxu0 0.0
          %5414 = vmatpush1.msra.mxu0 0.0
          %5415 = vmatprep.subr.mxu0 0.0
          %5416 = vmatpush1.msra.mxu0 0.0
          %5417 = vmatprep.subr.mxu0 0.0
          %5418 = vmatpush1.msra.mxu0 0.0
          %5419 = vmatprep.subr.mxu0 0.0
          %5420 = vmatpush1.msra.mxu0 0.0
          %5421 = vmatprep.subr.mxu0 0.0
          %5422 = vmatpush1.msra.mxu0 0.0
          %5423 = vmatprep.subr.mxu0 0.0
          %5424 = vmatpush1.msra.mxu0 0.0
          %5425 = vmatprep.subr.mxu0 0.0
          %5426 = vmatpush1.msra.mxu0 0.0
          %5427 = vmatprep.subr.mxu0 0.0
          %5428 = vmatpush1.msra.mxu0 0.0
          %5429 = vmatprep.subr.mxu0 0.0
          %5430 = vmatpush1.msra.mxu0 0.0
          %5431 = vmatprep.subr.mxu0 0.0
          %5432 = vmatpush1.msra.mxu0 0.0
          %5433 = vmatprep.subr.mxu0 0.0
          %5434 = vmatpush1.msra.mxu0 0.0
          %5435 = vmatprep.subr.mxu0 0.0
          %5436 = vmatpush1.msra.mxu0 0.0
          %5437 = vmatprep.subr.mxu0 0.0
          %5438 = vmatpush1.msra.mxu0 0.0
          %5439 = vmatprep.subr.mxu0 0.0
          %5440 = vmatpush1.msra.mxu0 0.0
          %5441 = vmatprep.subr.mxu0 0.0
          %5442 = vmatpush1.msra.mxu0 0.0
          %5443 = vmatprep.subr.mxu0 0.0
          %5444 = vmatpush1.msra.mxu0 0.0
          %5445 = vmatprep.subr.mxu0 0.0
          %5446 = vmatpush1.msra.mxu0 0.0
          %5447 = vmatprep.subr.mxu0 0.0
          %5448 = vmatpush1.msra.mxu0 0.0
          %5449 = vmatprep.subr.mxu0 0.0
          %5450 = vmatpush1.msra.mxu0 0.0
          %5451 = vmatprep.mubr.f32.mxu0 0.0
          %5452 = vmatmul.mubr.f32.gmra.mrb[0].mxu0 %v5385
          %v5453 = vpop.f32.mrb[0].mxu0
          %v5454 = vadd.f32 %v5383, %v5453
          %v5455 = vpop.f32.mrb[0].mxu0
          %5456 = vdwg.mxu0
          %v5457 = vsub.f32 0.0, %v5454
          %v5458 = vmul.f32 %v5457, 1.442695
          %v5459 = vpow.pop %v5458
          %v5460 = vadd.f32 %v5459, 1.0
          %v5461 = vrcp.pop %v5460
          %v5462 = vmul.f32 1.0, %v5461
          %5463 = vst [vmem:[#allocation3] sm:$0x3] %v5462
        $region68: #{ast_forward.1} parent=59 // pred_fallthru
          _
        // Predicated region
        $region69: #{ast_forward.1} parent=59 // pred_check
          %p5464 = pneg %p270
        $region70: #{ast_forward.1} parent=59 // pred_check_branch
          %5466 = sbr.rel (%p5464) target = $region72
        $region71: #{ast_forward.1} parent=59 // pred_region
          %s5468 = ssub.s32 32, 32
          %5469 = vsyncadd [#allocation4], %s5468
          %s5471 = sshll.u32 [#allocation3], 4
          %s5472 = int_to_ptr.vmem [resolvable:$true] %s5471
          %5474 = dma.vmem_to_hbm [thread:$0]  %s5472, 32, %s10, [#allocation4]
        $region72: #{ast_forward.1} parent=59 // pred_fallthru
          _
        // Predicated region
        $region73: #{ast_forward.1} parent=59 // pred_check
          %p5475 = pneg %p270
        $region74: #{ast_forward.1} parent=59 // pred_check_branch
          %5477 = sbr.rel (%p5475) target = $region76
        $region75: #{ast_forward.1} parent=59 // pred_region
          %5478 = dma.done [#allocation4], 32
        $region76: #{ast_forward.1} parent=59 // pred_fallthru
          _
      $region60: #{ast_forward.1} parent=5 // pred_fallthru
        _
      %p5479 = scmp.le.s32.totalorder 2, %s17
      // Predicated region
      $region77: #{ast_forward.1} parent=5 // pred_check
        %p5480 = pneg %p5479
      $region78: #{ast_forward.1} parent=5 // pred_check_branch
        %5482 = sbr.rel (%p5480) target = $region80
      $region79: #{ast_forward.1} parent=5 // pred_region
        %s5483 = ssub.s32 %s17, 2
      $region80: #{ast_forward.1} parent=5 // pred_fallthru
        _
    $region6: #{ast_forward.1} parent=1 // loop_footer
      %s21 = sadd.s32 1, %s17
    $region7: #{ast_forward.1} parent=1 // loop_footer_branch
      %16 = sbr.rel target = $region3
    $region8: #{ast_forward.1} parent=1 // loop_exit
      _
    %5484 = vsyncpa [#allocation4], 1
    %s5485 = scalar_lea.sflag [#allocation4], 1
    %5486 = vsyncpa %s5485, 1

</llo_original>
